<compile_context>
chip_gen: v6e
topology: v6e:2x2x1
jax: 0.10.0
libtpu: 0.0.40
codegen_flags: <defaults>
</compile_context>

<pallas_src>
import jax
import jax.numpy as jnp
from jax.experimental import pallas as pl
from jax.experimental.pallas import tpu as pltpu

NEG_SLOPE = 0.01  # nn.LeakyReLU / F.leaky_relu default
BN_EPS = 1e-5


def mlp_decoder_kernel(x_ref, wbd1_ref, bt1_ref, wbd2_ref, w1_ref, b1_ref,
                       w2_ref, b2_ref, w3_ref, b3_ref, o_ref):
    # x_ref: (N*d1, TB) bf16 -- feature-major, samples on the lane axis.
    # tolow.0 : per-position Linear(d1->d2) as one block-diagonal matmul, + LeakyReLU
    h = jnp.dot(wbd1_ref[...], x_ref[...], preferred_element_type=jnp.float32)
    h = h + bt1_ref[...]
    h = jnp.maximum(h, NEG_SLOPE * h)
    # tolow.2 : per-position Linear(d2->1) (block-diagonal)  =>  z laid out (N, TB)
    # (its bias is folded into b1 below, since fc1 is linear in z)
    z = jnp.dot(wbd2_ref[...], h, preferred_element_type=jnp.float32)
    # fc1 -> LeakyReLU   (bn1 is folded into fc2's weight/bias)
    a1 = jnp.dot(w1_ref[...], z, preferred_element_type=jnp.float32) + b1_ref[...]
    a1 = jnp.maximum(a1, NEG_SLOPE * a1)
    # fc2(+bn1) -> LeakyReLU   (bn2 is folded into fc3's weight/bias)
    a2 = jnp.dot(w2_ref[...], a1, preferred_element_type=jnp.float32) + b2_ref[...]
    a2 = jnp.maximum(a2, NEG_SLOPE * a2)
    # TODO(synk): F.dropout(p=0.3) treated as inference-mode identity.
    # fc3(+bn2): per-sample scalar via sublane reduction (avoids an M=1 matmul);
    # result is a lane-dense (1, TB) row.
    out = jnp.sum(a2 * w3_ref[...], axis=0, keepdims=True) + b3_ref[...]
    o_ref[...] = out.astype(o_ref.dtype)


def _choose_tile(B, max_cols=2048):
    """Samples per grid step (lane width of the tile).

    Small batches use a single full-width block (block == full dim is always
    layout-legal).  Larger batches use lane-aligned (multiple-of-128) tiles with
    at least 2 grid steps so the 'parallel' axis can engage both v7x TensorCores.
    Returns (tb, padded_batch)."""
    if B < 256:
        return B, B
    tb = max(128, min(max_cols, ((B // 2) // 128) * 128))
    b_pad = ((B + tb - 1) // tb) * tb
    return tb, b_pad


def mlp_decoder_forward(x, params, *, max_cols=2048, x_dtype=jnp.bfloat16):
    """x: (B, N, d1).  params: dict of PyTorch-layout weights (see __main__)."""
    B, N, d1 = x.shape
    wt1, bt1 = params["tolow0_w"], params["tolow0_b"]        # (d2, d1), (d2,)
    wt2, bt2 = params["tolow2_w"], params["tolow2_b"]        # (1, d2),  (1,)
    w1, b1 = params["fc1_w"], params["fc1_b"]                # (d4, N),  (d4,)
    w2, b2 = params["fc2_w"], params["fc2_b"]                # (d5, d4), (d5,)
    w3, b3 = params["fc3_w"], params["fc3_b"]                # (1, d5),  (1,)
    d2c = wt1.shape[0]
    d4 = w1.shape[0]
    d5 = w2.shape[0]
    f32 = jnp.float32

    # --- tiling: samples on the lane axis, tb columns per grid step ---
    tb, b_pad = _choose_tile(B, max_cols)
    n_tiles = b_pad // tb
    if b_pad != B:
        x = jnp.pad(x, ((0, b_pad - B), (0, 0), (0, 0)))   # zero-padded samples, sliced off below
    # Feature-major activation slab (layout plumbing done once, outside the kernel).
    # bf16 halves the HBM bytes streamed for the only batch-scaling array.
    x_t = x.reshape(b_pad, N * d1).T.astype(x_dtype)        # (N*d1, B_pad)

    # --- parameter glue (plain JAX, done once) ---
    # tolow as block-diagonal weights: positions stay independent, samples stay on lanes.
    w_bd1 = jnp.kron(jnp.eye(N, dtype=f32), wt1.astype(f32)).astype(x_dtype)  # (N*d2, N*d1)
    bt1_col = jnp.tile(bt1.astype(f32), N).reshape(N * d2c, 1)                # (N*d2, 1)
    w_bd2 = jnp.kron(jnp.eye(N, dtype=f32), wt2.astype(f32))                  # (N, N*d2)
    # fc1, with the tolow.2 bias absorbed (z feeds fc1 linearly).
    w1_f = w1.astype(f32)                                                     # (d4, N)
    b1_eff = (b1.astype(f32) + bt2.astype(f32)[0] * w1_f.sum(axis=1)).reshape(d4, 1)
    # bn1 folded into fc2, bn2 folded into fc3 (inference-mode running stats).
    s1 = params["bn1_gamma"] / jnp.sqrt(params["bn1_var"] + BN_EPS)
    t1 = params["bn1_beta"] - params["bn1_mean"] * s1
    w2_eff = w2.astype(f32) * s1[None, :]                                     # (d5, d4)
    b2_eff = (b2.astype(f32) + w2.astype(f32) @ t1).reshape(d5, 1)
    s2 = params["bn2_gamma"] / jnp.sqrt(params["bn2_var"] + BN_EPS)
    t2 = params["bn2_beta"] - params["bn2_mean"] * s2
    w3_eff = (w3.astype(f32)[0] * s2).reshape(d5, 1)                          # (d5, 1)
    b3_eff = (b3.astype(f32) + w3.astype(f32) @ t2).reshape(1, 1)             # (1, 1)

    args = (x_t, w_bd1, bt1_col, w_bd2, w1_f, b1_eff, w2_eff, b2_eff, w3_eff, b3_eff)

    def run(buffered_params):
        pm = dict(pipeline_mode=pl.Buffered(1)) if buffered_params else {}
        resident = lambda a: pl.BlockSpec(a.shape, lambda i: (0, 0), **pm)
        return pl.pallas_call(
            mlp_decoder_kernel,
            out_shape=jax.ShapeDtypeStruct((1, b_pad), jnp.float32),
            grid_spec=pltpu.PrefetchScalarGridSpec(
                num_scalar_prefetch=0,
                grid=(n_tiles,),
                in_specs=[pl.BlockSpec((N * d1, tb), lambda i: (0, i))]   # streamed activations
                         + [resident(a) for a in args[1:]],               # resident parameters
                out_specs=pl.BlockSpec((1, tb), lambda i: (0, i)),        # lane-dense output row
            ),
            compiler_params=pltpu.CompilerParams(
                dimension_semantics=("parallel",),
                # explicit scoped-VMEM budget; tiles at max_cols=2048 use ~10 MiB,
                # raise this together with max_cols on v5e/v6e (128 MiB physical).
                vmem_limit_bytes=32 * 1024 * 1024,
            ),
        )(*args)

    try:
        out_row = run(buffered_params=True)
    except Exception:
        # pl.Buffered(1) not supported by this jax/libtpu: plain double-buffered specs
        # (the parameter blocks are only a few hundred KB, so this costs almost nothing).
        out_row = run(buffered_params=False)

    return out_row[0, :B].reshape(B, 1)


def mlp_decoder_reference(x, params):
    """Pure-JAX f32 reference mirroring the PyTorch forward (inference BN, identity dropout)."""
    h = jnp.einsum("bnd,kd->bnk", x, params["tolow0_w"]) + params["tolow0_b"]
    h = jnp.where(h >= 0, h, NEG_SLOPE * h)
    z = jnp.einsum("bnk,ok->bno", h, params["tolow2_w"]) + params["tolow2_b"]
    z = z.reshape(z.shape[0], -1)
    a1 = z @ params["fc1_w"].T + params["fc1_b"]
    a1 = jnp.where(a1 >= 0, a1, NEG_SLOPE * a1)
    a1 = ((a1 - params["bn1_mean"]) / jnp.sqrt(params["bn1_var"] + BN_EPS)
          * params["bn1_gamma"] + params["bn1_beta"])
    a2 = a1 @ params["fc2_w"].T + params["fc2_b"]
    a2 = jnp.where(a2 >= 0, a2, NEG_SLOPE * a2)
    a2 = ((a2 - params["bn2_mean"]) / jnp.sqrt(params["bn2_var"] + BN_EPS)
          * params["bn2_gamma"] + params["bn2_beta"])
    return a2 @ params["fc3_w"].T + params["fc3_b"]


if __name__ == "__main__":
    key = jax.random.PRNGKey(0)
    keys = jax.random.split(key, 22)

    # dims = [_, d1, d2, d3, d4, d5]; x is (B, N=d3, d1) so x.reshape(B,-1) has dims[3] cols.
    d1, d2, d3, d4, d5 = 32, 16, 16, 64, 32
    B, N = 8, d3

    def linear(kw, kb, out_f, in_f):
        bound = 1.0 / (in_f ** 0.5)
        w = jax.random.uniform(kw, (out_f, in_f), jnp.float32, -bound, bound)
        b = jax.random.uniform(kb, (out_f,), jnp.float32, -bound, bound)
        return w, b

    params = {}
    params["tolow0_w"], params["tolow0_b"] = linear(keys[0], keys[1], d2, d1)
    params["tolow2_w"], params["tolow2_b"] = linear(keys[2], keys[3], 1, d2)
    params["fc1_w"], params["fc1_b"] = linear(keys[4], keys[5], d4, d3)
    params["fc2_w"], params["fc2_b"] = linear(keys[6], keys[7], d5, d4)
    params["fc3_w"], params["fc3_b"] = linear(keys[8], keys[9], 1, d5)
    params["bn1_gamma"] = jax.random.uniform(keys[10], (d4,), jnp.float32, 0.5, 1.5)
    params["bn1_beta"] = 0.1 * jax.random.normal(keys[11], (d4,), jnp.float32)
    params["bn1_mean"] = 0.1 * jax.random.normal(keys[12], (d4,), jnp.float32)
    params["bn1_var"] = jax.random.uniform(keys[13], (d4,), jnp.float32, 0.5, 1.5)
    params["bn2_gamma"] = jax.random.uniform(keys[14], (d5,), jnp.float32, 0.5, 1.5)
    params["bn2_beta"] = 0.1 * jax.random.normal(keys[15], (d5,), jnp.float32)
    params["bn2_mean"] = 0.1 * jax.random.normal(keys[16], (d5,), jnp.float32)
    params["bn2_var"] = jax.random.uniform(keys[17], (d5,), jnp.float32, 0.5, 1.5)

    # Test data made bf16-representable so the f32 reference remains a *tight* check
    # on the bf16-streamed kernel (the kernel's bf16 casts are then lossless and
    # only f32 accumulation-order differences remain).
    params["tolow0_w"] = params["tolow0_w"].astype(jnp.bfloat16).astype(jnp.float32)
    x = jax.random.normal(keys[18], (B, N, d1), jnp.float32)
    x = x.astype(jnp.bfloat16).astype(jnp.float32)

    out = mlp_decoder_forward(x, params)
    out = jax.block_until_ready(out)
    ref = mlp_decoder_reference(x, params)
    assert out.shape == (B, 1), out.shape
    assert jnp.allclose(out, ref, atol=1e-3, rtol=1e-3), \
        float(jnp.max(jnp.abs(out - ref)))

    # Second smoke test: larger batch exercising the multi-tile (grid >= 2),
    # lane-aligned, zero-padded path.
    B2 = 300
    x2 = jax.random.normal(keys[19], (B2, N, d1), jnp.float32)
    x2 = x2.astype(jnp.bfloat16).astype(jnp.float32)
    out2 = jax.block_until_ready(mlp_decoder_forward(x2, params))
    ref2 = mlp_decoder_reference(x2, params)
    assert out2.shape == (B2, 1), out2.shape
    assert jnp.allclose(out2, ref2, atol=1e-3, rtol=1e-3), \
        float(jnp.max(jnp.abs(out2 - ref2)))

    print("KERNEL_OK")
</pallas_src>

<mosaic_0001>
module attributes {stable_mosaic.version = 11 : i64} {
  func.func @mlp_decoder_kernel(%arg0: i32, %arg1: memref<512x8xbf16, #tpu.memory_space<vmem>>, %arg2: memref<256x512xbf16, #tpu.memory_space<vmem>>, %arg3: memref<256x1xf32, #tpu.memory_space<vmem>>, %arg4: memref<16x256xf32, #tpu.memory_space<vmem>>, %arg5: memref<64x16xf32, #tpu.memory_space<vmem>>, %arg6: memref<64x1xf32, #tpu.memory_space<vmem>>, %arg7: memref<32x64xf32, #tpu.memory_space<vmem>>, %arg8: memref<32x1xf32, #tpu.memory_space<vmem>>, %arg9: memref<32x1xf32, #tpu.memory_space<vmem>>, %arg10: memref<1x1xf32, #tpu.memory_space<vmem>>, %arg11: memref<1x8xf32, #tpu.memory_space<vmem>>) attributes {dimension_semantics = [#tpu.dimension_semantics<parallel>], iteration_bounds = array<i64: 1>, scalar_prefetch = 0 : i64, scratch_operands = 0 : i64, tpu.core_type = #tpu.core_type<tc>, window_params = [{transform_indices = @transform_0, window_bounds = array<i64: 512, 8>}, {pipeline_mode = #tpu.pipeline_mode<synchronous>, transform_indices = @transform_1, window_bounds = array<i64: 256, 512>}, {pipeline_mode = #tpu.pipeline_mode<synchronous>, transform_indices = @transform_2, window_bounds = array<i64: 256, 1>}, {pipeline_mode = #tpu.pipeline_mode<synchronous>, transform_indices = @transform_3, window_bounds = array<i64: 16, 256>}, {pipeline_mode = #tpu.pipeline_mode<synchronous>, transform_indices = @transform_4, window_bounds = array<i64: 64, 16>}, {pipeline_mode = #tpu.pipeline_mode<synchronous>, transform_indices = @transform_5, window_bounds = array<i64: 64, 1>}, {pipeline_mode = #tpu.pipeline_mode<synchronous>, transform_indices = @transform_6, window_bounds = array<i64: 32, 64>}, {pipeline_mode = #tpu.pipeline_mode<synchronous>, transform_indices = @transform_7, window_bounds = array<i64: 32, 1>}, {pipeline_mode = #tpu.pipeline_mode<synchronous>, transform_indices = @transform_8, window_bounds = array<i64: 32, 1>}, {pipeline_mode = #tpu.pipeline_mode<synchronous>, transform_indices = @transform_9, window_bounds = array<i64: 1, 1>}, {transform_indices = @transform_10, window_bounds = array<i64: 1, 8>}]} {
    %c0 = arith.constant 0 : index
    %c0_0 = arith.constant 0 : index
    %0 = vector.load %arg2[%c0, %c0_0] : memref<256x512xbf16, #tpu.memory_space<vmem>>, vector<256x512xbf16>
    %c0_1 = arith.constant 0 : index
    %c0_2 = arith.constant 0 : index
    %1 = vector.load %arg1[%c0_1, %c0_2] : memref<512x8xbf16, #tpu.memory_space<vmem>>, vector<512x8xbf16>
    %cst = arith.constant dense<0.000000e+00> : vector<256x8xf32>
    %2 = tpu.matmul %0, %1, %cst {dimension_numbers = #tpu.dot_dimension_numbers<[1], [0], [0], [1], [0, 0, 1, 1], [], []>} : vector<256x512xbf16>, vector<512x8xbf16>, vector<256x8xf32> -> vector<256x8xf32>
    %c0_3 = arith.constant 0 : index
    %c0_4 = arith.constant 0 : index
    %3 = vector.load %arg3[%c0_3, %c0_4] : memref<256x1xf32, #tpu.memory_space<vmem>>, vector<256x1xf32>
    %4 = vector.broadcast %3 : vector<256x1xf32> to vector<256x8xf32>
    %5 = arith.addf %2, %4 : vector<256x8xf32>
    %cst_5 = arith.constant 0.00999999977 : f32
    %6 = vector.broadcast %cst_5 : f32 to vector<256x8xf32>
    %7 = arith.mulf %6, %5 : vector<256x8xf32>
    %8 = arith.maximumf %5, %7 : vector<256x8xf32>
    %c0_6 = arith.constant 0 : index
    %c0_7 = arith.constant 0 : index
    %9 = vector.load %arg4[%c0_6, %c0_7] : memref<16x256xf32, #tpu.memory_space<vmem>>, vector<16x256xf32>
    %cst_8 = arith.constant dense<0.000000e+00> : vector<16x8xf32>
    %10 = tpu.matmul %9, %8, %cst_8 {dimension_numbers = #tpu.dot_dimension_numbers<[1], [0], [0], [1], [0, 0, 1, 1], [], []>} : vector<16x256xf32>, vector<256x8xf32>, vector<16x8xf32> -> vector<16x8xf32>
    %c0_9 = arith.constant 0 : index
    %c0_10 = arith.constant 0 : index
    %11 = vector.load %arg5[%c0_9, %c0_10] : memref<64x16xf32, #tpu.memory_space<vmem>>, vector<64x16xf32>
    %cst_11 = arith.constant dense<0.000000e+00> : vector<64x8xf32>
    %12 = tpu.matmul %11, %10, %cst_11 {dimension_numbers = #tpu.dot_dimension_numbers<[1], [0], [0], [1], [0, 0, 1, 1], [], []>} : vector<64x16xf32>, vector<16x8xf32>, vector<64x8xf32> -> vector<64x8xf32>
    %c0_12 = arith.constant 0 : index
    %c0_13 = arith.constant 0 : index
    %13 = vector.load %arg6[%c0_12, %c0_13] : memref<64x1xf32, #tpu.memory_space<vmem>>, vector<64x1xf32>
    %14 = vector.broadcast %13 : vector<64x1xf32> to vector<64x8xf32>
    %15 = arith.addf %12, %14 : vector<64x8xf32>
    %cst_14 = arith.constant 0.00999999977 : f32
    %16 = vector.broadcast %cst_14 : f32 to vector<64x8xf32>
    %17 = arith.mulf %16, %15 : vector<64x8xf32>
    %18 = arith.maximumf %15, %17 : vector<64x8xf32>
    %c0_15 = arith.constant 0 : index
    %c0_16 = arith.constant 0 : index
    %19 = vector.load %arg7[%c0_15, %c0_16] : memref<32x64xf32, #tpu.memory_space<vmem>>, vector<32x64xf32>
    %cst_17 = arith.constant dense<0.000000e+00> : vector<32x8xf32>
    %20 = tpu.matmul %19, %18, %cst_17 {dimension_numbers = #tpu.dot_dimension_numbers<[1], [0], [0], [1], [0, 0, 1, 1], [], []>} : vector<32x64xf32>, vector<64x8xf32>, vector<32x8xf32> -> vector<32x8xf32>
    %c0_18 = arith.constant 0 : index
    %c0_19 = arith.constant 0 : index
    %21 = vector.load %arg8[%c0_18, %c0_19] : memref<32x1xf32, #tpu.memory_space<vmem>>, vector<32x1xf32>
    %22 = vector.broadcast %21 : vector<32x1xf32> to vector<32x8xf32>
    %23 = arith.addf %20, %22 : vector<32x8xf32>
    %cst_20 = arith.constant 0.00999999977 : f32
    %24 = vector.broadcast %cst_20 : f32 to vector<32x8xf32>
    %25 = arith.mulf %24, %23 : vector<32x8xf32>
    %26 = arith.maximumf %23, %25 : vector<32x8xf32>
    %c0_21 = arith.constant 0 : index
    %c0_22 = arith.constant 0 : index
    %27 = vector.load %arg9[%c0_21, %c0_22] : memref<32x1xf32, #tpu.memory_space<vmem>>, vector<32x1xf32>
    %28 = vector.broadcast %27 : vector<32x1xf32> to vector<32x8xf32>
    %29 = arith.mulf %26, %28 : vector<32x8xf32>
    %cst_23 = arith.constant dense<0.000000e+00> : vector<8xf32>
    %30 = vector.multi_reduction <add>, %29, %cst_23 [0] : vector<32x8xf32> to vector<8xf32>
    %31 = vector.shape_cast %30 : vector<8xf32> to vector<1x8xf32>
    %c0_24 = arith.constant 0 : index
    %c0_25 = arith.constant 0 : index
    %32 = vector.load %arg10[%c0_24, %c0_25] : memref<1x1xf32, #tpu.memory_space<vmem>>, vector<1x1xf32>
    %33 = vector.broadcast %32 : vector<1x1xf32> to vector<1x8xf32>
    %34 = arith.addf %31, %33 : vector<1x8xf32>
    %c0_26 = arith.constant 0 : index
    %c0_27 = arith.constant 0 : index
    %35 = vector.load %arg11[%c0_26, %c0_27] : memref<1x8xf32, #tpu.memory_space<vmem>>, vector<1x8xf32>
    tpu.vector_store %arg11[%c0_26, %c0_27], %34 {strides = array<i32>} : memref<1x8xf32, #tpu.memory_space<vmem>>, vector<1x8xf32>,
    return
  }
  func.func @transform_0(%arg0: i32) -> (i32, i32) {
    %c0_i32 = arith.constant 0 : i32
    %c0_i32_0 = arith.constant 0 : i32
    return %c0_i32, %arg0 : i32, i32
  }
  func.func @transform_1(%arg0: i32) -> (i32, i32) {
    %c0_i32 = arith.constant 0 : i32
    %c0_i32_0 = arith.constant 0 : i32
    %c0_i32_1 = arith.constant 0 : i32
    return %c0_i32, %c0_i32_0 : i32, i32
  }
  func.func @transform_2(%arg0: i32) -> (i32, i32) {
    %c0_i32 = arith.constant 0 : i32
    %c0_i32_0 = arith.constant 0 : i32
    %c0_i32_1 = arith.constant 0 : i32
    return %c0_i32, %c0_i32_0 : i32, i32
  }
  func.func @transform_3(%arg0: i32) -> (i32, i32) {
    %c0_i32 = arith.constant 0 : i32
    %c0_i32_0 = arith.constant 0 : i32
    %c0_i32_1 = arith.constant 0 : i32
    return %c0_i32, %c0_i32_0 : i32, i32
  }
  func.func @transform_4(%arg0: i32) -> (i32, i32) {
    %c0_i32 = arith.constant 0 : i32
    %c0_i32_0 = arith.constant 0 : i32
    %c0_i32_1 = arith.constant 0 : i32
    return %c0_i32, %c0_i32_0 : i32, i32
  }
  func.func @transform_5(%arg0: i32) -> (i32, i32) {
    %c0_i32 = arith.constant 0 : i32
    %c0_i32_0 = arith.constant 0 : i32
    %c0_i32_1 = arith.constant 0 : i32
    return %c0_i32, %c0_i32_0 : i32, i32
  }
  func.func @transform_6(%arg0: i32) -> (i32, i32) {
    %c0_i32 = arith.constant 0 : i32
    %c0_i32_0 = arith.constant 0 : i32
    %c0_i32_1 = arith.constant 0 : i32
    return %c0_i32, %c0_i32_0 : i32, i32
  }
  func.func @transform_7(%arg0: i32) -> (i32, i32) {
    %c0_i32 = arith.constant 0 : i32
    %c0_i32_0 = arith.constant 0 : i32
    %c0_i32_1 = arith.constant 0 : i32
    return %c0_i32, %c0_i32_0 : i32, i32
  }
  func.func @transform_8(%arg0: i32) -> (i32, i32) {
    %c0_i32 = arith.constant 0 : i32
    %c0_i32_0 = arith.constant 0 : i32
    %c0_i32_1 = arith.constant 0 : i32
    return %c0_i32, %c0_i32_0 : i32, i32
  }
  func.func @transform_9(%arg0: i32) -> (i32, i32) {
    %c0_i32 = arith.constant 0 : i32
    %c0_i32_0 = arith.constant 0 : i32
    %c0_i32_1 = arith.constant 0 : i32
    return %c0_i32, %c0_i32_0 : i32, i32
  }
  func.func @transform_10(%arg0: i32) -> (i32, i32) {
    %c0_i32 = arith.constant 0 : i32
    %c0_i32_0 = arith.constant 0 : i32
    return %c0_i32, %arg0 : i32, i32
  }
}

module attributes {stable_mosaic.version = 11 : i64} {
  func.func @mlp_decoder_kernel(%arg0: i32, %arg1: memref<512x8xbf16, #tpu.memory_space<vmem>>, %arg2: memref<256x512xbf16, #tpu.memory_space<vmem>>, %arg3: memref<256x1xf32, #tpu.memory_space<vmem>>, %arg4: memref<16x256xf32, #tpu.memory_space<vmem>>, %arg5: memref<64x16xf32, #tpu.memory_space<vmem>>, %arg6: memref<64x1xf32, #tpu.memory_space<vmem>>, %arg7: memref<32x64xf32, #tpu.memory_space<vmem>>, %arg8: memref<32x1xf32, #tpu.memory_space<vmem>>, %arg9: memref<32x1xf32, #tpu.memory_space<vmem>>, %arg10: memref<1x1xf32, #tpu.memory_space<vmem>>, %arg11: memref<1x8xf32, #tpu.memory_space<vmem>>) attributes {dimension_semantics = [#tpu.dimension_semantics<parallel>], iteration_bounds = array<i64: 1>, scalar_prefetch = 0 : i64, scratch_operands = 0 : i64, tpu.core_type = #tpu.core_type<tc>, window_params = [{transform_indices = @transform_0, window_bounds = array<i64: 512, 8>}, {pipeline_mode = #tpu.pipeline_mode<synchronous>, transform_indices = @transform_1, window_bounds = array<i64: 256, 512>}, {pipeline_mode = #tpu.pipeline_mode<synchronous>, transform_indices = @transform_2, window_bounds = array<i64: 256, 1>}, {pipeline_mode = #tpu.pipeline_mode<synchronous>, transform_indices = @transform_3, window_bounds = array<i64: 16, 256>}, {pipeline_mode = #tpu.pipeline_mode<synchronous>, transform_indices = @transform_4, window_bounds = array<i64: 64, 16>}, {pipeline_mode = #tpu.pipeline_mode<synchronous>, transform_indices = @transform_5, window_bounds = array<i64: 64, 1>}, {pipeline_mode = #tpu.pipeline_mode<synchronous>, transform_indices = @transform_6, window_bounds = array<i64: 32, 64>}, {pipeline_mode = #tpu.pipeline_mode<synchronous>, transform_indices = @transform_7, window_bounds = array<i64: 32, 1>}, {pipeline_mode = #tpu.pipeline_mode<synchronous>, transform_indices = @transform_8, window_bounds = array<i64: 32, 1>}, {pipeline_mode = #tpu.pipeline_mode<synchronous>, transform_indices = @transform_9, window_bounds = array<i64: 1, 1>}, {transform_indices = @transform_10, window_bounds = array<i64: 1, 8>}]} {
    %c0 = arith.constant 0 : index
    %c0_0 = arith.constant 0 : index
    %0 = vector.load %arg2[%c0, %c0_0] : memref<256x512xbf16, #tpu.memory_space<vmem>>, vector<256x512xbf16>
    %c0_1 = arith.constant 0 : index
    %c0_2 = arith.constant 0 : index
    %1 = vector.load %arg1[%c0_1, %c0_2] : memref<512x8xbf16, #tpu.memory_space<vmem>>, vector<512x8xbf16>
    %cst = arith.constant dense<0.000000e+00> : vector<256x8xf32>
    %2 = tpu.matmul %0, %1, %cst {dimension_numbers = #tpu.dot_dimension_numbers<[1], [0], [0], [1], [0, 0, 1, 1], [], []>} : vector<256x512xbf16>, vector<512x8xbf16>, vector<256x8xf32> -> vector<256x8xf32>
    %c0_3 = arith.constant 0 : index
    %c0_4 = arith.constant 0 : index
    %3 = vector.load %arg3[%c0_3, %c0_4] : memref<256x1xf32, #tpu.memory_space<vmem>>, vector<256x1xf32>
    %4 = vector.broadcast %3 : vector<256x1xf32> to vector<256x8xf32>
    %5 = arith.addf %2, %4 : vector<256x8xf32>
    %cst_5 = arith.constant 0.00999999977 : f32
    %6 = vector.broadcast %cst_5 : f32 to vector<256x8xf32>
    %7 = arith.mulf %6, %5 : vector<256x8xf32>
    %8 = arith.maximumf %5, %7 : vector<256x8xf32>
    %c0_6 = arith.constant 0 : index
    %c0_7 = arith.constant 0 : index
    %9 = vector.load %arg4[%c0_6, %c0_7] : memref<16x256xf32, #tpu.memory_space<vmem>>, vector<16x256xf32>
    %cst_8 = arith.constant dense<0.000000e+00> : vector<16x8xf32>
    %10 = tpu.matmul %9, %8, %cst_8 {dimension_numbers = #tpu.dot_dimension_numbers<[1], [0], [0], [1], [0, 0, 1, 1], [], []>} : vector<16x256xf32>, vector<256x8xf32>, vector<16x8xf32> -> vector<16x8xf32>
    %c0_9 = arith.constant 0 : index
    %c0_10 = arith.constant 0 : index
    %11 = vector.load %arg5[%c0_9, %c0_10] : memref<64x16xf32, #tpu.memory_space<vmem>>, vector<64x16xf32>
    %cst_11 = arith.constant dense<0.000000e+00> : vector<64x8xf32>
    %12 = tpu.matmul %11, %10, %cst_11 {dimension_numbers = #tpu.dot_dimension_numbers<[1], [0], [0], [1], [0, 0, 1, 1], [], []>} : vector<64x16xf32>, vector<16x8xf32>, vector<64x8xf32> -> vector<64x8xf32>
    %c0_12 = arith.constant 0 : index
    %c0_13 = arith.constant 0 : index
    %13 = vector.load %arg6[%c0_12, %c0_13] : memref<64x1xf32, #tpu.memory_space<vmem>>, vector<64x1xf32>
    %14 = vector.broadcast %13 : vector<64x1xf32> to vector<64x8xf32>
    %15 = arith.addf %12, %14 : vector<64x8xf32>
    %cst_14 = arith.constant 0.00999999977 : f32
    %16 = vector.broadcast %cst_14 : f32 to vector<64x8xf32>
    %17 = arith.mulf %16, %15 : vector<64x8xf32>
    %18 = arith.maximumf %15, %17 : vector<64x8xf32>
    %c0_15 = arith.constant 0 : index
    %c0_16 = arith.constant 0 : index
    %19 = vector.load %arg7[%c0_15, %c0_16] : memref<32x64xf32, #tpu.memory_space<vmem>>, vector<32x64xf32>
    %cst_17 = arith.constant dense<0.000000e+00> : vector<32x8xf32>
    %20 = tpu.matmul %19, %18, %cst_17 {dimension_numbers = #tpu.dot_dimension_numbers<[1], [0], [0], [1], [0, 0, 1, 1], [], []>} : vector<32x64xf32>, vector<64x8xf32>, vector<32x8xf32> -> vector<32x8xf32>
    %c0_18 = arith.constant 0 : index
    %c0_19 = arith.constant 0 : index
    %21 = vector.load %arg8[%c0_18, %c0_19] : memref<32x1xf32, #tpu.memory_space<vmem>>, vector<32x1xf32>
    %22 = vector.broadcast %21 : vector<32x1xf32> to vector<32x8xf32>
    %23 = arith.addf %20, %22 : vector<32x8xf32>
    %cst_20 = arith.constant 0.00999999977 : f32
    %24 = vector.broadcast %cst_20 : f32 to vector<32x8xf32>
    %25 = arith.mulf %24, %23 : vector<32x8xf32>
    %26 = arith.maximumf %23, %25 : vector<32x8xf32>
    %c0_21 = arith.constant 0 : index
    %c0_22 = arith.constant 0 : index
    %27 = vector.load %arg9[%c0_21, %c0_22] : memref<32x1xf32, #tpu.memory_space<vmem>>, vector<32x1xf32>
    %28 = vector.broadcast %27 : vector<32x1xf32> to vector<32x8xf32>
    %29 = arith.mulf %26, %28 : vector<32x8xf32>
    %cst_23 = arith.constant dense<0.000000e+00> : vector<8xf32>
    %30 = vector.multi_reduction <add>, %29, %cst_23 [0] : vector<32x8xf32> to vector<8xf32>
    %31 = vector.shape_cast %30 : vector<8xf32> to vector<1x8xf32>
    %c0_24 = arith.constant 0 : index
    %c0_25 = arith.constant 0 : index
    %32 = vector.load %arg10[%c0_24, %c0_25] : memref<1x1xf32, #tpu.memory_space<vmem>>, vector<1x1xf32>
    %33 = vector.broadcast %32 : vector<1x1xf32> to vector<1x8xf32>
    %34 = arith.addf %31, %33 : vector<1x8xf32>
    %c0_26 = arith.constant 0 : index
    %c0_27 = arith.constant 0 : index
    %35 = vector.load %arg11[%c0_26, %c0_27] : memref<1x8xf32, #tpu.memory_space<vmem>>, vector<1x8xf32>
    tpu.vector_store %arg11[%c0_26, %c0_27], %34 {strides = array<i32>} : memref<1x8xf32, #tpu.memory_space<vmem>>, vector<1x8xf32>,
    return
  }
  func.func @transform_0(%arg0: i32) -> (i32, i32) {
    %c0_i32 = arith.constant 0 : i32
    %c0_i32_0 = arith.constant 0 : i32
    return %c0_i32, %arg0 : i32, i32
  }
  func.func @transform_1(%arg0: i32) -> (i32, i32) {
    %c0_i32 = arith.constant 0 : i32
    %c0_i32_0 = arith.constant 0 : i32
    %c0_i32_1 = arith.constant 0 : i32
    return %c0_i32, %c0_i32_0 : i32, i32
  }
  func.func @transform_2(%arg0: i32) -> (i32, i32) {
    %c0_i32 = arith.constant 0 : i32
    %c0_i32_0 = arith.constant 0 : i32
    %c0_i32_1 = arith.constant 0 : i32
    return %c0_i32, %c0_i32_0 : i32, i32
  }
  func.func @transform_3(%arg0: i32) -> (i32, i32) {
    %c0_i32 = arith.constant 0 : i32
    %c0_i32_0 = arith.constant 0 : i32
    %c0_i32_1 = arith.constant 0 : i32
    return %c0_i32, %c0_i32_0 : i32, i32
  }
  func.func @transform_4(%arg0: i32) -> (i32, i32) {
    %c0_i32 = arith.constant 0 : i32
    %c0_i32_0 = arith.constant 0 : i32
    %c0_i32_1 = arith.constant 0 : i32
    return %c0_i32, %c0_i32_0 : i32, i32
  }
  func.func @transform_5(%arg0: i32) -> (i32, i32) {
    %c0_i32 = arith.constant 0 : i32
    %c0_i32_0 = arith.constant 0 : i32
    %c0_i32_1 = arith.constant 0 : i32
    return %c0_i32, %c0_i32_0 : i32, i32
  }
  func.func @transform_6(%arg0: i32) -> (i32, i32) {
    %c0_i32 = arith.constant 0 : i32
    %c0_i32_0 = arith.constant 0 : i32
    %c0_i32_1 = arith.constant 0 : i32
    return %c0_i32, %c0_i32_0 : i32, i32
  }
  func.func @transform_7(%arg0: i32) -> (i32, i32) {
    %c0_i32 = arith.constant 0 : i32
    %c0_i32_0 = arith.constant 0 : i32
    %c0_i32_1 = arith.constant 0 : i32
    return %c0_i32, %c0_i32_0 : i32, i32
  }
  func.func @transform_8(%arg0: i32) -> (i32, i32) {
    %c0_i32 = arith.constant 0 : i32
    %c0_i32_0 = arith.constant 0 : i32
    %c0_i32_1 = arith.constant 0 : i32
    return %c0_i32, %c0_i32_0 : i32, i32
  }
  func.func @transform_9(%arg0: i32) -> (i32, i32) {
    %c0_i32 = arith.constant 0 : i32
    %c0_i32_0 = arith.constant 0 : i32
    %c0_i32_1 = arith.constant 0 : i32
    return %c0_i32, %c0_i32_0 : i32, i32
  }
  func.func @transform_10(%arg0: i32) -> (i32, i32) {
    %c0_i32 = arith.constant 0 : i32
    %c0_i32_0 = arith.constant 0 : i32
    return %c0_i32, %arg0 : i32, i32
  }
}

</mosaic_0001>

<llo_original>
// kernel: tpu_custom_call.1
$region0: #{tpu_custom_call.1}
  #allocation0 [shape = 'u32[]', space=smem, size = 0x4, offset = 0x4, fixed_abs, tag = 'smem constant byte address 0x4 - core index']
  #allocation1 [shape = 'u32[144,128]{1,0:T(1,128)}', space=vmem, size = 0x12000, scoped, tag = 'internal scratch']
  #allocation2 [shape = 'f32[1,1]{1,0:T(1,128)S(1)}', space=vmem, size = 0x200, scoped, tag = 'scoped memory for tpu_custom_call.1']
  %s0 = inlined_call_operand.vmem [shape: bf16[512,8], index: 0, kind: input, shape index: {}]
  %s1 = inlined_call_operand.vmem [shape: bf16[256,512], index: 1, kind: input, shape index: {}]
  %s2 = inlined_call_operand.vmem [shape: f32[256,1], index: 2, kind: input, shape index: {}]
  %s3 = inlined_call_operand.vmem [shape: f32[16,256], index: 3, kind: input, shape index: {}]
  %s4 = inlined_call_operand.vmem [shape: f32[64,16], index: 4, kind: input, shape index: {}]
  %s5 = inlined_call_operand.vmem [shape: f32[64,1], index: 5, kind: input, shape index: {}]
  %s6 = inlined_call_operand.vmem [shape: f32[32,64], index: 6, kind: input, shape index: {}]
  %s7 = inlined_call_operand.vmem [shape: f32[32,1], index: 7, kind: input, shape index: {}]
  %s8 = inlined_call_operand.vmem [shape: f32[32,1], index: 8, kind: input, shape index: {}]
  %s9 = inlined_call_operand.<no memory space> [shape: f32[1,1], index: 9, kind: input, shape index: {}]
  %s10 = inlined_call_operand.hbm [shape: f32[1,8], index: 10, kind: output, shape index: {}]
  %s11 = sld [smem:[#allocation0]]
  $region50: #{tpu_custom_call.1} parent=0
    _
  %s13 = ssub.s32 1, %s11
  %s14 = scalar_select 0, %s13, %s11
  %v15 = vstv %s9
  %16 = vst [vmem:[#allocation2] sm:$0x1] %v15
  $region1: #{tpu_custom_call.1} parent=0
    #allocation3 [shape = 'u8[512]{0}', space=vmem, size = 0x400, scoped, tag = 'output window, operand 0, single buffered']
    #allocation4 [shape = 's32[1]{0}', space=sflag, size = 0x4, scoped, tag = 'scoped memory for tpu_custom_call.1']
    %17 = vsyncpa [#allocation4], 0
    // Predicated region
    $region2: #{tpu_custom_call.1} parent=1 // pred_check
      _
    $region3: #{tpu_custom_call.1} parent=1 // pred_check_branch
      %19 = sbr.rel (0) target = $region5
    $region4: #{tpu_custom_call.1} parent=1 // pred_region
      _
    $region5: #{tpu_custom_call.1} parent=1 // pred_fallthru
      _
    // Predicated region
    $region6: #{tpu_custom_call.1} parent=1 // pred_check
      _
    $region7: #{tpu_custom_call.1} parent=1 // pred_check_branch
      %21 = sbr.rel (0) target = $region9
    $region8: #{tpu_custom_call.1} parent=1 // pred_region
      _
    $region9: #{tpu_custom_call.1} parent=1 // pred_fallthru
      _
    // Predicated region
    $region10: #{tpu_custom_call.1} parent=1 // pred_check
      _
    $region11: #{tpu_custom_call.1} parent=1 // pred_check_branch
      %23 = sbr.rel (0) target = $region13
    $region12: #{tpu_custom_call.1} parent=1 // pred_region
      _
    $region13: #{tpu_custom_call.1} parent=1 // pred_fallthru
      _
    // Predicated region
    $region14: #{tpu_custom_call.1} parent=1 // pred_check
      _
    $region15: #{tpu_custom_call.1} parent=1 // pred_check_branch
      %25 = sbr.rel (0) target = $region17
    $region16: #{tpu_custom_call.1} parent=1 // pred_region
      _
    $region17: #{tpu_custom_call.1} parent=1 // pred_fallthru
      _
    // Predicated region
    $region18: #{tpu_custom_call.1} parent=1 // pred_check
      _
    $region19: #{tpu_custom_call.1} parent=1 // pred_check_branch
      %27 = sbr.rel (0) target = $region21
    $region20: #{tpu_custom_call.1} parent=1 // pred_region
      _
    $region21: #{tpu_custom_call.1} parent=1 // pred_fallthru
      _
    // Predicated region
    $region22: #{tpu_custom_call.1} parent=1 // pred_check
      _
    $region23: #{tpu_custom_call.1} parent=1 // pred_check_branch
      %29 = sbr.rel (0) target = $region25
    $region24: #{tpu_custom_call.1} parent=1 // pred_region
      _
    $region25: #{tpu_custom_call.1} parent=1 // pred_fallthru
      _
    // Predicated region
    $region26: #{tpu_custom_call.1} parent=1 // pred_check
      _
    $region27: #{tpu_custom_call.1} parent=1 // pred_check_branch
      %31 = sbr.rel (0) target = $region29
    $region28: #{tpu_custom_call.1} parent=1 // pred_region
      _
    $region29: #{tpu_custom_call.1} parent=1 // pred_fallthru
      _
    // Predicated region
    $region30: #{tpu_custom_call.1} parent=1 // pred_check
      _
    $region31: #{tpu_custom_call.1} parent=1 // pred_check_branch
      %33 = sbr.rel (0) target = $region33
    $region32: #{tpu_custom_call.1} parent=1 // pred_region
      _
    $region33: #{tpu_custom_call.1} parent=1 // pred_fallthru
      _
    // Predicated region
    $region34: #{tpu_custom_call.1} parent=1 // pred_check
      _
    $region35: #{tpu_custom_call.1} parent=1 // pred_check_branch
      %35 = sbr.rel (0) target = $region37
    $region36: #{tpu_custom_call.1} parent=1 // pred_region
      _
    $region37: #{tpu_custom_call.1} parent=1 // pred_fallthru
      _
    // Predicated region
    $region38: #{tpu_custom_call.1} parent=1 // pred_check
      _
    $region39: #{tpu_custom_call.1} parent=1 // pred_check_branch
      %37 = sbr.rel (0) target = $region41
    $region40: #{tpu_custom_call.1} parent=1 // pred_region
      _
    $region41: #{tpu_custom_call.1} parent=1 // pred_fallthru
      _
    %v39 = vld [vmem:[%s1] sm:$0xff]
    %v40 = vld [vmem:[%s1 + $0x8] sm:$0xff]
    %v41 = vld [vmem:[%s1 + $0x10] sm:$0xff]
    %v42 = vld [vmem:[%s1 + $0x18] sm:$0xff]
    %v43 = vld [vmem:[%s1 + $0x20] sm:$0xff]
    %v44 = vld [vmem:[%s1 + $0x28] sm:$0xff]
    %v45 = vld [vmem:[%s1 + $0x30] sm:$0xff]
    %v46 = vld [vmem:[%s1 + $0x38] sm:$0xff]
    %v47 = vld [vmem:[%s1 + $0x40] sm:$0xff]
    %v48 = vld [vmem:[%s1 + $0x48] sm:$0xff]
    %v49 = vld [vmem:[%s1 + $0x50] sm:$0xff]
    %v50 = vld [vmem:[%s1 + $0x58] sm:$0xff]
    %v51 = vld [vmem:[%s1 + $0x60] sm:$0xff]
    %v52 = vld [vmem:[%s1 + $0x68] sm:$0xff]
    %v53 = vld [vmem:[%s1 + $0x70] sm:$0xff]
    %v54 = vld [vmem:[%s1 + $0x78] sm:$0xff]
    %v55 = vld [vmem:[%s1 + $0x80] sm:$0xff]
    %v56 = vld [vmem:[%s1 + $0x88] sm:$0xff]
    %v57 = vld [vmem:[%s1 + $0x90] sm:$0xff]
    %v58 = vld [vmem:[%s1 + $0x98] sm:$0xff]
    %v59 = vld [vmem:[%s1 + $0xa0] sm:$0xff]
    %v60 = vld [vmem:[%s1 + $0xa8] sm:$0xff]
    %v61 = vld [vmem:[%s1 + $0xb0] sm:$0xff]
    %v62 = vld [vmem:[%s1 + $0xb8] sm:$0xff]
    %v63 = vld [vmem:[%s1 + $0xc0] sm:$0xff]
    %v64 = vld [vmem:[%s1 + $0xc8] sm:$0xff]
    %v65 = vld [vmem:[%s1 + $0xd0] sm:$0xff]
    %v66 = vld [vmem:[%s1 + $0xd8] sm:$0xff]
    %v67 = vld [vmem:[%s1 + $0xe0] sm:$0xff]
    %v68 = vld [vmem:[%s1 + $0xe8] sm:$0xff]
    %v69 = vld [vmem:[%s1 + $0xf0] sm:$0xff]
    %v70 = vld [vmem:[%s1 + $0xf8] sm:$0xff]
    %v71 = vld [vmem:[%s1 + $0x100] sm:$0xff]
    %v72 = vld [vmem:[%s1 + $0x108] sm:$0xff]
    %v73 = vld [vmem:[%s1 + $0x110] sm:$0xff]
    %v74 = vld [vmem:[%s1 + $0x118] sm:$0xff]
    %v75 = vld [vmem:[%s1 + $0x120] sm:$0xff]
    %v76 = vld [vmem:[%s1 + $0x128] sm:$0xff]
    %v77 = vld [vmem:[%s1 + $0x130] sm:$0xff]
    %v78 = vld [vmem:[%s1 + $0x138] sm:$0xff]
    %v79 = vld [vmem:[%s1 + $0x140] sm:$0xff]
    %v80 = vld [vmem:[%s1 + $0x148] sm:$0xff]
    %v81 = vld [vmem:[%s1 + $0x150] sm:$0xff]
    %v82 = vld [vmem:[%s1 + $0x158] sm:$0xff]
    %v83 = vld [vmem:[%s1 + $0x160] sm:$0xff]
    %v84 = vld [vmem:[%s1 + $0x168] sm:$0xff]
    %v85 = vld [vmem:[%s1 + $0x170] sm:$0xff]
    %v86 = vld [vmem:[%s1 + $0x178] sm:$0xff]
    %v87 = vld [vmem:[%s1 + $0x180] sm:$0xff]
    %v88 = vld [vmem:[%s1 + $0x188] sm:$0xff]
    %v89 = vld [vmem:[%s1 + $0x190] sm:$0xff]
    %v90 = vld [vmem:[%s1 + $0x198] sm:$0xff]
    %v91 = vld [vmem:[%s1 + $0x1a0] sm:$0xff]
    %v92 = vld [vmem:[%s1 + $0x1a8] sm:$0xff]
    %v93 = vld [vmem:[%s1 + $0x1b0] sm:$0xff]
    %v94 = vld [vmem:[%s1 + $0x1b8] sm:$0xff]
    %v95 = vld [vmem:[%s1 + $0x1c0] sm:$0xff]
    %v96 = vld [vmem:[%s1 + $0x1c8] sm:$0xff]
    %v97 = vld [vmem:[%s1 + $0x1d0] sm:$0xff]
    %v98 = vld [vmem:[%s1 + $0x1d8] sm:$0xff]
    %v99 = vld [vmem:[%s1 + $0x1e0] sm:$0xff]
    %v100 = vld [vmem:[%s1 + $0x1e8] sm:$0xff]
    %v101 = vld [vmem:[%s1 + $0x1f0] sm:$0xff]
    %v102 = vld [vmem:[%s1 + $0x1f8] sm:$0xff]
    %v103 = vld [vmem:[%s0] sm:$0xf]
    %v104 = vld [vmem:[%s0 + $0x4] sm:$0xf]
    %v105 = vld [vmem:[%s0 + $0x8] sm:$0xf]
    %v106 = vld [vmem:[%s0 + $0xc] sm:$0xf]
    %v107 = vld [vmem:[%s0 + $0x10] sm:$0xf]
    %v108 = vld [vmem:[%s0 + $0x14] sm:$0xf]
    %v109 = vld [vmem:[%s0 + $0x18] sm:$0xf]
    %v110 = vld [vmem:[%s0 + $0x1c] sm:$0xf]
    %v111 = vld [vmem:[%s0 + $0x20] sm:$0xf]
    %v112 = vld [vmem:[%s0 + $0x24] sm:$0xf]
    %v113 = vld [vmem:[%s0 + $0x28] sm:$0xf]
    %v114 = vld [vmem:[%s0 + $0x2c] sm:$0xf]
    %v115 = vld [vmem:[%s0 + $0x30] sm:$0xf]
    %v116 = vld [vmem:[%s0 + $0x34] sm:$0xf]
    %v117 = vld [vmem:[%s0 + $0x38] sm:$0xf]
    %v118 = vld [vmem:[%s0 + $0x3c] sm:$0xf]
    %v119 = vld [vmem:[%s0 + $0x40] sm:$0xf]
    %v120 = vld [vmem:[%s0 + $0x44] sm:$0xf]
    %v121 = vld [vmem:[%s0 + $0x48] sm:$0xf]
    %v122 = vld [vmem:[%s0 + $0x4c] sm:$0xf]
    %v123 = vld [vmem:[%s0 + $0x50] sm:$0xf]
    %v124 = vld [vmem:[%s0 + $0x54] sm:$0xf]
    %v125 = vld [vmem:[%s0 + $0x58] sm:$0xf]
    %v126 = vld [vmem:[%s0 + $0x5c] sm:$0xf]
    %v127 = vld [vmem:[%s0 + $0x60] sm:$0xf]
    %v128 = vld [vmem:[%s0 + $0x64] sm:$0xf]
    %v129 = vld [vmem:[%s0 + $0x68] sm:$0xf]
    %v130 = vld [vmem:[%s0 + $0x6c] sm:$0xf]
    %v131 = vld [vmem:[%s0 + $0x70] sm:$0xf]
    %v132 = vld [vmem:[%s0 + $0x74] sm:$0xf]
    %v133 = vld [vmem:[%s0 + $0x78] sm:$0xf]
    %v134 = vld [vmem:[%s0 + $0x7c] sm:$0xf]
    %v135 = vld [vmem:[%s0 + $0x80] sm:$0xf]
    %v136 = vld [vmem:[%s0 + $0x84] sm:$0xf]
    %v137 = vld [vmem:[%s0 + $0x88] sm:$0xf]
    %v138 = vld [vmem:[%s0 + $0x8c] sm:$0xf]
    %v139 = vld [vmem:[%s0 + $0x90] sm:$0xf]
    %v140 = vld [vmem:[%s0 + $0x94] sm:$0xf]
    %v141 = vld [vmem:[%s0 + $0x98] sm:$0xf]
    %v142 = vld [vmem:[%s0 + $0x9c] sm:$0xf]
    %v143 = vld [vmem:[%s0 + $0xa0] sm:$0xf]
    %v144 = vld [vmem:[%s0 + $0xa4] sm:$0xf]
    %v145 = vld [vmem:[%s0 + $0xa8] sm:$0xf]
    %v146 = vld [vmem:[%s0 + $0xac] sm:$0xf]
    %v147 = vld [vmem:[%s0 + $0xb0] sm:$0xf]
    %v148 = vld [vmem:[%s0 + $0xb4] sm:$0xf]
    %v149 = vld [vmem:[%s0 + $0xb8] sm:$0xf]
    %v150 = vld [vmem:[%s0 + $0xbc] sm:$0xf]
    %v151 = vld [vmem:[%s0 + $0xc0] sm:$0xf]
    %v152 = vld [vmem:[%s0 + $0xc4] sm:$0xf]
    %v153 = vld [vmem:[%s0 + $0xc8] sm:$0xf]
    %v154 = vld [vmem:[%s0 + $0xcc] sm:$0xf]
    %v155 = vld [vmem:[%s0 + $0xd0] sm:$0xf]
    %v156 = vld [vmem:[%s0 + $0xd4] sm:$0xf]
    %v157 = vld [vmem:[%s0 + $0xd8] sm:$0xf]
    %v158 = vld [vmem:[%s0 + $0xdc] sm:$0xf]
    %v159 = vld [vmem:[%s0 + $0xe0] sm:$0xf]
    %v160 = vld [vmem:[%s0 + $0xe4] sm:$0xf]
    %v161 = vld [vmem:[%s0 + $0xe8] sm:$0xf]
    %v162 = vld [vmem:[%s0 + $0xec] sm:$0xf]
    %v163 = vld [vmem:[%s0 + $0xf0] sm:$0xf]
    %v164 = vld [vmem:[%s0 + $0xf4] sm:$0xf]
    %v165 = vld [vmem:[%s0 + $0xf8] sm:$0xf]
    %v166 = vld [vmem:[%s0 + $0xfc] sm:$0xf]
    %v167 = vld [vmem:[%s2] sm:$0xff]
    %v168 = vld [vmem:[%s2 + $0x8] sm:$0xff]
    %v169 = vld [vmem:[%s2 + $0x10] sm:$0xff]
    %v170 = vld [vmem:[%s2 + $0x18] sm:$0xff]
    %v171 = vld [vmem:[%s2 + $0x20] sm:$0xff]
    %v172 = vld [vmem:[%s2 + $0x28] sm:$0xff]
    %v173 = vld [vmem:[%s2 + $0x30] sm:$0xff]
    %v174 = vld [vmem:[%s2 + $0x38] sm:$0xff]
    %v175 = vld [vmem:[%s2 + $0x40] sm:$0xff]
    %v176 = vld [vmem:[%s2 + $0x48] sm:$0xff]
    %v177 = vld [vmem:[%s2 + $0x50] sm:$0xff]
    %v178 = vld [vmem:[%s2 + $0x58] sm:$0xff]
    %v179 = vld [vmem:[%s2 + $0x60] sm:$0xff]
    %v180 = vld [vmem:[%s2 + $0x68] sm:$0xff]
    %v181 = vld [vmem:[%s2 + $0x70] sm:$0xff]
    %v182 = vld [vmem:[%s2 + $0x78] sm:$0xff]
    %v183 = vld [vmem:[%s2 + $0x80] sm:$0xff]
    %v184 = vld [vmem:[%s2 + $0x88] sm:$0xff]
    %v185 = vld [vmem:[%s2 + $0x90] sm:$0xff]
    %v186 = vld [vmem:[%s2 + $0x98] sm:$0xff]
    %v187 = vld [vmem:[%s2 + $0xa0] sm:$0xff]
    %v188 = vld [vmem:[%s2 + $0xa8] sm:$0xff]
    %v189 = vld [vmem:[%s2 + $0xb0] sm:$0xff]
    %v190 = vld [vmem:[%s2 + $0xb8] sm:$0xff]
    %v191 = vld [vmem:[%s2 + $0xc0] sm:$0xff]
    %v192 = vld [vmem:[%s2 + $0xc8] sm:$0xff]
    %v193 = vld [vmem:[%s2 + $0xd0] sm:$0xff]
    %v194 = vld [vmem:[%s2 + $0xd8] sm:$0xff]
    %v195 = vld [vmem:[%s2 + $0xe0] sm:$0xff]
    %v196 = vld [vmem:[%s2 + $0xe8] sm:$0xff]
    %v197 = vld [vmem:[%s2 + $0xf0] sm:$0xff]
    %v198 = vld [vmem:[%s2 + $0xf8] sm:$0xff]
    %200 = vset.pattern.permute.xlu0 0
    %201 = vperm.xlu0 %200, %v167
    %v202 = vpop.permute.xlu0 %201
    %205 = vset.pattern.permute.xlu0 0
    %206 = vperm.xlu0 %205, %v168
    %v207 = vpop.permute.xlu0 %206
    %210 = vset.pattern.permute.xlu0 0
    %211 = vperm.xlu0 %210, %v169
    %v212 = vpop.permute.xlu0 %211
    %215 = vset.pattern.permute.xlu0 0
    %216 = vperm.xlu0 %215, %v170
    %v217 = vpop.permute.xlu0 %216
    %220 = vset.pattern.permute.xlu0 0
    %221 = vperm.xlu0 %220, %v171
    %v222 = vpop.permute.xlu0 %221
    %225 = vset.pattern.permute.xlu0 0
    %226 = vperm.xlu0 %225, %v172
    %v227 = vpop.permute.xlu0 %226
    %230 = vset.pattern.permute.xlu0 0
    %231 = vperm.xlu0 %230, %v173
    %v232 = vpop.permute.xlu0 %231
    %235 = vset.pattern.permute.xlu0 0
    %236 = vperm.xlu0 %235, %v174
    %v237 = vpop.permute.xlu0 %236
    %240 = vset.pattern.permute.xlu0 0
    %241 = vperm.xlu0 %240, %v175
    %v242 = vpop.permute.xlu0 %241
    %245 = vset.pattern.permute.xlu0 0
    %246 = vperm.xlu0 %245, %v176
    %v247 = vpop.permute.xlu0 %246
    %250 = vset.pattern.permute.xlu0 0
    %251 = vperm.xlu0 %250, %v177
    %v252 = vpop.permute.xlu0 %251
    %255 = vset.pattern.permute.xlu0 0
    %256 = vperm.xlu0 %255, %v178
    %v257 = vpop.permute.xlu0 %256
    %260 = vset.pattern.permute.xlu0 0
    %261 = vperm.xlu0 %260, %v179
    %v262 = vpop.permute.xlu0 %261
    %265 = vset.pattern.permute.xlu0 0
    %266 = vperm.xlu0 %265, %v180
    %v267 = vpop.permute.xlu0 %266
    %270 = vset.pattern.permute.xlu0 0
    %271 = vperm.xlu0 %270, %v181
    %v272 = vpop.permute.xlu0 %271
    %275 = vset.pattern.permute.xlu0 0
    %276 = vperm.xlu0 %275, %v182
    %v277 = vpop.permute.xlu0 %276
    %280 = vset.pattern.permute.xlu0 0
    %281 = vperm.xlu0 %280, %v183
    %v282 = vpop.permute.xlu0 %281
    %285 = vset.pattern.permute.xlu0 0
    %286 = vperm.xlu0 %285, %v184
    %v287 = vpop.permute.xlu0 %286
    %290 = vset.pattern.permute.xlu0 0
    %291 = vperm.xlu0 %290, %v185
    %v292 = vpop.permute.xlu0 %291
    %295 = vset.pattern.permute.xlu0 0
    %296 = vperm.xlu0 %295, %v186
    %v297 = vpop.permute.xlu0 %296
    %300 = vset.pattern.permute.xlu0 0
    %301 = vperm.xlu0 %300, %v187
    %v302 = vpop.permute.xlu0 %301
    %305 = vset.pattern.permute.xlu0 0
    %306 = vperm.xlu0 %305, %v188
    %v307 = vpop.permute.xlu0 %306
    %310 = vset.pattern.permute.xlu0 0
    %311 = vperm.xlu0 %310, %v189
    %v312 = vpop.permute.xlu0 %311
    %315 = vset.pattern.permute.xlu0 0
    %316 = vperm.xlu0 %315, %v190
    %v317 = vpop.permute.xlu0 %316
    %320 = vset.pattern.permute.xlu0 0
    %321 = vperm.xlu0 %320, %v191
    %v322 = vpop.permute.xlu0 %321
    %325 = vset.pattern.permute.xlu0 0
    %326 = vperm.xlu0 %325, %v192
    %v327 = vpop.permute.xlu0 %326
    %330 = vset.pattern.permute.xlu0 0
    %331 = vperm.xlu0 %330, %v193
    %v332 = vpop.permute.xlu0 %331
    %335 = vset.pattern.permute.xlu0 0
    %336 = vperm.xlu0 %335, %v194
    %v337 = vpop.permute.xlu0 %336
    %340 = vset.pattern.permute.xlu0 0
    %341 = vperm.xlu0 %340, %v195
    %v342 = vpop.permute.xlu0 %341
    %345 = vset.pattern.permute.xlu0 0
    %346 = vperm.xlu0 %345, %v196
    %v347 = vpop.permute.xlu0 %346
    %350 = vset.pattern.permute.xlu0 0
    %351 = vperm.xlu0 %350, %v197
    %v352 = vpop.permute.xlu0 %351
    %355 = vset.pattern.permute.xlu0 0
    %356 = vperm.xlu0 %355, %v198
    %v357 = vpop.permute.xlu0 %356
    %v423 = vunpack.c.l.b16 %v39
    %v424 = vunpack.c.h.b16 %v39
    %v425 = vunpack.c.l.b16 %v40
    %v426 = vunpack.c.h.b16 %v40
    %v427 = vunpack.c.l.b16 %v41
    %v428 = vunpack.c.h.b16 %v41
    %v429 = vunpack.c.l.b16 %v42
    %v430 = vunpack.c.h.b16 %v42
    %v431 = vunpack.c.l.b16 %v43
    %v432 = vunpack.c.h.b16 %v43
    %v433 = vunpack.c.l.b16 %v44
    %v434 = vunpack.c.h.b16 %v44
    %v435 = vunpack.c.l.b16 %v45
    %v436 = vunpack.c.h.b16 %v45
    %v437 = vunpack.c.l.b16 %v46
    %v438 = vunpack.c.h.b16 %v46
    %v439 = vunpack.c.l.b16 %v47
    %v440 = vunpack.c.h.b16 %v47
    %v441 = vunpack.c.l.b16 %v48
    %v442 = vunpack.c.h.b16 %v48
    %v443 = vunpack.c.l.b16 %v49
    %v444 = vunpack.c.h.b16 %v49
    %v445 = vunpack.c.l.b16 %v50
    %v446 = vunpack.c.h.b16 %v50
    %v447 = vunpack.c.l.b16 %v51
    %v448 = vunpack.c.h.b16 %v51
    %v449 = vunpack.c.l.b16 %v52
    %v450 = vunpack.c.h.b16 %v52
    %v451 = vunpack.c.l.b16 %v53
    %v452 = vunpack.c.h.b16 %v53
    %v453 = vunpack.c.l.b16 %v54
    %v454 = vunpack.c.h.b16 %v54
    %v455 = vunpack.c.l.b16 %v55
    %v456 = vunpack.c.h.b16 %v55
    %v457 = vunpack.c.l.b16 %v56
    %v458 = vunpack.c.h.b16 %v56
    %v459 = vunpack.c.l.b16 %v57
    %v460 = vunpack.c.h.b16 %v57
    %v461 = vunpack.c.l.b16 %v58
    %v462 = vunpack.c.h.b16 %v58
    %v463 = vunpack.c.l.b16 %v59
    %v464 = vunpack.c.h.b16 %v59
    %v465 = vunpack.c.l.b16 %v60
    %v466 = vunpack.c.h.b16 %v60
    %v467 = vunpack.c.l.b16 %v61
    %v468 = vunpack.c.h.b16 %v61
    %v469 = vunpack.c.l.b16 %v62
    %v470 = vunpack.c.h.b16 %v62
    %v471 = vunpack.c.l.b16 %v63
    %v472 = vunpack.c.h.b16 %v63
    %v473 = vunpack.c.l.b16 %v64
    %v474 = vunpack.c.h.b16 %v64
    %v475 = vunpack.c.l.b16 %v65
    %v476 = vunpack.c.h.b16 %v65
    %v477 = vunpack.c.l.b16 %v66
    %v478 = vunpack.c.h.b16 %v66
    %v479 = vunpack.c.l.b16 %v67
    %v480 = vunpack.c.h.b16 %v67
    %v481 = vunpack.c.l.b16 %v68
    %v482 = vunpack.c.h.b16 %v68
    %v483 = vunpack.c.l.b16 %v69
    %v484 = vunpack.c.h.b16 %v69
    %v485 = vunpack.c.l.b16 %v70
    %v486 = vunpack.c.h.b16 %v70
    %v487 = vunpack.c.l.b16 %v71
    %v488 = vunpack.c.h.b16 %v71
    %v489 = vunpack.c.l.b16 %v72
    %v490 = vunpack.c.h.b16 %v72
    %v491 = vunpack.c.l.b16 %v73
    %v492 = vunpack.c.h.b16 %v73
    %v493 = vunpack.c.l.b16 %v74
    %v494 = vunpack.c.h.b16 %v74
    %v495 = vunpack.c.l.b16 %v75
    %v496 = vunpack.c.h.b16 %v75
    %v497 = vunpack.c.l.b16 %v76
    %v498 = vunpack.c.h.b16 %v76
    %v499 = vunpack.c.l.b16 %v77
    %v500 = vunpack.c.h.b16 %v77
    %v501 = vunpack.c.l.b16 %v78
    %v502 = vunpack.c.h.b16 %v78
    %v503 = vunpack.c.l.b16 %v79
    %v504 = vunpack.c.h.b16 %v79
    %v505 = vunpack.c.l.b16 %v80
    %v506 = vunpack.c.h.b16 %v80
    %v507 = vunpack.c.l.b16 %v81
    %v508 = vunpack.c.h.b16 %v81
    %v509 = vunpack.c.l.b16 %v82
    %v510 = vunpack.c.h.b16 %v82
    %v511 = vunpack.c.l.b16 %v83
    %v512 = vunpack.c.h.b16 %v83
    %v513 = vunpack.c.l.b16 %v84
    %v514 = vunpack.c.h.b16 %v84
    %v515 = vunpack.c.l.b16 %v85
    %v516 = vunpack.c.h.b16 %v85
    %v517 = vunpack.c.l.b16 %v86
    %v518 = vunpack.c.h.b16 %v86
    %v519 = vunpack.c.l.b16 %v87
    %v520 = vunpack.c.h.b16 %v87
    %v521 = vunpack.c.l.b16 %v88
    %v522 = vunpack.c.h.b16 %v88
    %v523 = vunpack.c.l.b16 %v89
    %v524 = vunpack.c.h.b16 %v89
    %v525 = vunpack.c.l.b16 %v90
    %v526 = vunpack.c.h.b16 %v90
    %v527 = vunpack.c.l.b16 %v91
    %v528 = vunpack.c.h.b16 %v91
    %v529 = vunpack.c.l.b16 %v92
    %v530 = vunpack.c.h.b16 %v92
    %v531 = vunpack.c.l.b16 %v93
    %v532 = vunpack.c.h.b16 %v93
    %v533 = vunpack.c.l.b16 %v94
    %v534 = vunpack.c.h.b16 %v94
    %v535 = vunpack.c.l.b16 %v95
    %v536 = vunpack.c.h.b16 %v95
    %v537 = vunpack.c.l.b16 %v96
    %v538 = vunpack.c.h.b16 %v96
    %v539 = vunpack.c.l.b16 %v97
    %v540 = vunpack.c.h.b16 %v97
    %v541 = vunpack.c.l.b16 %v98
    %v542 = vunpack.c.h.b16 %v98
    %v543 = vunpack.c.l.b16 %v99
    %v544 = vunpack.c.h.b16 %v99
    %v545 = vunpack.c.l.b16 %v100
    %v546 = vunpack.c.h.b16 %v100
    %v547 = vunpack.c.l.b16 %v101
    %v548 = vunpack.c.h.b16 %v101
    %v549 = vunpack.c.l.b16 %v102
    %v550 = vunpack.c.h.b16 %v102
    %v551 = vpack.c.b16 %v427, %v423
    %v552 = vpack.c.b16 %v428, %v424
    %v553 = vpack.c.b16 %v429, %v425
    %v554 = vpack.c.b16 %v430, %v426
    %v555 = vpack.c.b16 %v435, %v431
    %v556 = vpack.c.b16 %v436, %v432
    %v557 = vpack.c.b16 %v437, %v433
    %v558 = vpack.c.b16 %v438, %v434
    %v559 = vpack.c.b16 %v443, %v439
    %v560 = vpack.c.b16 %v444, %v440
    %v561 = vpack.c.b16 %v445, %v441
    %v562 = vpack.c.b16 %v446, %v442
    %v563 = vpack.c.b16 %v451, %v447
    %v564 = vpack.c.b16 %v452, %v448
    %v565 = vpack.c.b16 %v453, %v449
    %v566 = vpack.c.b16 %v454, %v450
    %v567 = vpack.c.b16 %v459, %v455
    %v568 = vpack.c.b16 %v460, %v456
    %v569 = vpack.c.b16 %v461, %v457
    %v570 = vpack.c.b16 %v462, %v458
    %v571 = vpack.c.b16 %v467, %v463
    %v572 = vpack.c.b16 %v468, %v464
    %v573 = vpack.c.b16 %v469, %v465
    %v574 = vpack.c.b16 %v470, %v466
    %v575 = vpack.c.b16 %v475, %v471
    %v576 = vpack.c.b16 %v476, %v472
    %v577 = vpack.c.b16 %v477, %v473
    %v578 = vpack.c.b16 %v478, %v474
    %v579 = vpack.c.b16 %v483, %v479
    %v580 = vpack.c.b16 %v484, %v480
    %v581 = vpack.c.b16 %v485, %v481
    %v582 = vpack.c.b16 %v486, %v482
    %v583 = vpack.c.b16 %v491, %v487
    %v584 = vpack.c.b16 %v492, %v488
    %v585 = vpack.c.b16 %v493, %v489
    %v586 = vpack.c.b16 %v494, %v490
    %v587 = vpack.c.b16 %v499, %v495
    %v588 = vpack.c.b16 %v500, %v496
    %v589 = vpack.c.b16 %v501, %v497
    %v590 = vpack.c.b16 %v502, %v498
    %v591 = vpack.c.b16 %v507, %v503
    %v592 = vpack.c.b16 %v508, %v504
    %v593 = vpack.c.b16 %v509, %v505
    %v594 = vpack.c.b16 %v510, %v506
    %v595 = vpack.c.b16 %v515, %v511
    %v596 = vpack.c.b16 %v516, %v512
    %v597 = vpack.c.b16 %v517, %v513
    %v598 = vpack.c.b16 %v518, %v514
    %v599 = vpack.c.b16 %v523, %v519
    %v600 = vpack.c.b16 %v524, %v520
    %v601 = vpack.c.b16 %v525, %v521
    %v602 = vpack.c.b16 %v526, %v522
    %v603 = vpack.c.b16 %v531, %v527
    %v604 = vpack.c.b16 %v532, %v528
    %v605 = vpack.c.b16 %v533, %v529
    %v606 = vpack.c.b16 %v534, %v530
    %v607 = vpack.c.b16 %v539, %v535
    %v608 = vpack.c.b16 %v540, %v536
    %v609 = vpack.c.b16 %v541, %v537
    %v610 = vpack.c.b16 %v542, %v538
    %v611 = vpack.c.b16 %v547, %v543
    %v612 = vpack.c.b16 %v548, %v544
    %v613 = vpack.c.b16 %v549, %v545
    %v614 = vpack.c.b16 %v550, %v546
    %v743 = vunpack.c.l.b16 %v103
    %v744 = vunpack.c.l.b16 %v104
    %v745 = vunpack.c.l.b16 %v105
    %v746 = vunpack.c.l.b16 %v106
    %v747 = vunpack.c.l.b16 %v107
    %v748 = vunpack.c.l.b16 %v108
    %v749 = vunpack.c.l.b16 %v109
    %v750 = vunpack.c.l.b16 %v110
    %v751 = vunpack.c.l.b16 %v111
    %v752 = vunpack.c.l.b16 %v112
    %v753 = vunpack.c.l.b16 %v113
    %v754 = vunpack.c.l.b16 %v114
    %v755 = vunpack.c.l.b16 %v115
    %v756 = vunpack.c.l.b16 %v116
    %v757 = vunpack.c.l.b16 %v117
    %v758 = vunpack.c.l.b16 %v118
    %v759 = vunpack.c.l.b16 %v119
    %v760 = vunpack.c.l.b16 %v120
    %v761 = vunpack.c.l.b16 %v121
    %v762 = vunpack.c.l.b16 %v122
    %v763 = vunpack.c.l.b16 %v123
    %v764 = vunpack.c.l.b16 %v124
    %v765 = vunpack.c.l.b16 %v125
    %v766 = vunpack.c.l.b16 %v126
    %v767 = vunpack.c.l.b16 %v127
    %v768 = vunpack.c.l.b16 %v128
    %v769 = vunpack.c.l.b16 %v129
    %v770 = vunpack.c.l.b16 %v130
    %v771 = vunpack.c.l.b16 %v131
    %v772 = vunpack.c.l.b16 %v132
    %v773 = vunpack.c.l.b16 %v133
    %v774 = vunpack.c.l.b16 %v134
    %v775 = vunpack.c.l.b16 %v135
    %v776 = vunpack.c.l.b16 %v136
    %v777 = vunpack.c.l.b16 %v137
    %v778 = vunpack.c.l.b16 %v138
    %v779 = vunpack.c.l.b16 %v139
    %v780 = vunpack.c.l.b16 %v140
    %v781 = vunpack.c.l.b16 %v141
    %v782 = vunpack.c.l.b16 %v142
    %v783 = vunpack.c.l.b16 %v143
    %v784 = vunpack.c.l.b16 %v144
    %v785 = vunpack.c.l.b16 %v145
    %v786 = vunpack.c.l.b16 %v146
    %v787 = vunpack.c.l.b16 %v147
    %v788 = vunpack.c.l.b16 %v148
    %v789 = vunpack.c.l.b16 %v149
    %v790 = vunpack.c.l.b16 %v150
    %v791 = vunpack.c.l.b16 %v151
    %v792 = vunpack.c.l.b16 %v152
    %v793 = vunpack.c.l.b16 %v153
    %v794 = vunpack.c.l.b16 %v154
    %v795 = vunpack.c.l.b16 %v155
    %v796 = vunpack.c.l.b16 %v156
    %v797 = vunpack.c.l.b16 %v157
    %v798 = vunpack.c.l.b16 %v158
    %v799 = vunpack.c.l.b16 %v159
    %v800 = vunpack.c.l.b16 %v160
    %v801 = vunpack.c.l.b16 %v161
    %v802 = vunpack.c.l.b16 %v162
    %v803 = vunpack.c.l.b16 %v163
    %v804 = vunpack.c.l.b16 %v164
    %v805 = vunpack.c.l.b16 %v165
    %v806 = vunpack.c.l.b16 %v166
    %v807 = vpack.c.b16 %v744, %v743
    %v808 = vpack.c.b16 %v746, %v745
    %v809 = vpack.c.b16 %v748, %v747
    %v810 = vpack.c.b16 %v750, %v749
    %v811 = vpack.c.b16 %v752, %v751
    %v812 = vpack.c.b16 %v754, %v753
    %v813 = vpack.c.b16 %v756, %v755
    %v814 = vpack.c.b16 %v758, %v757
    %v815 = vpack.c.b16 %v760, %v759
    %v816 = vpack.c.b16 %v762, %v761
    %v817 = vpack.c.b16 %v764, %v763
    %v818 = vpack.c.b16 %v766, %v765
    %v819 = vpack.c.b16 %v768, %v767
    %v820 = vpack.c.b16 %v770, %v769
    %v821 = vpack.c.b16 %v772, %v771
    %v822 = vpack.c.b16 %v774, %v773
    %v823 = vpack.c.b16 %v776, %v775
    %v824 = vpack.c.b16 %v778, %v777
    %v825 = vpack.c.b16 %v780, %v779
    %v826 = vpack.c.b16 %v782, %v781
    %v827 = vpack.c.b16 %v784, %v783
    %v828 = vpack.c.b16 %v786, %v785
    %v829 = vpack.c.b16 %v788, %v787
    %v830 = vpack.c.b16 %v790, %v789
    %v831 = vpack.c.b16 %v792, %v791
    %v832 = vpack.c.b16 %v794, %v793
    %v833 = vpack.c.b16 %v796, %v795
    %v834 = vpack.c.b16 %v798, %v797
    %v835 = vpack.c.b16 %v800, %v799
    %v836 = vpack.c.b16 %v802, %v801
    %v837 = vpack.c.b16 %v804, %v803
    %v838 = vpack.c.b16 %v806, %v805
    %871 = vmatprep.subr.bf16.mxu0 0
    %872 = vmatpush1.bf16.msra.mxu0 %v814
    %873 = vmatprep.subr.bf16.mxu0 0
    %874 = vmatpush1.bf16.msra.mxu0 %v813
    %875 = vmatprep.subr.bf16.mxu0 0
    %876 = vmatpush1.bf16.msra.mxu0 %v812
    %877 = vmatprep.subr.bf16.mxu0 0
    %878 = vmatpush1.bf16.msra.mxu0 %v811
    %879 = vmatprep.subr.bf16.mxu0 0
    %880 = vmatpush1.bf16.msra.mxu0 %v810
    %881 = vmatprep.subr.bf16.mxu0 0
    %882 = vmatpush1.bf16.msra.mxu0 %v809
    %883 = vmatprep.subr.bf16.mxu0 0
    %884 = vmatpush1.bf16.msra.mxu0 %v808
    %885 = vmatprep.subr.bf16.mxu0 0
    %886 = vmatpush1.bf16.msra.mxu0 %v807
    %887 = vmatprep.subr.bf16.mxu0 0
    %888 = vmatpush2.bf16.msra.mxu0 %v822
    %889 = vmatprep.subr.bf16.mxu0 0
    %890 = vmatpush2.bf16.msra.mxu0 %v821
    %891 = vmatprep.subr.bf16.mxu0 0
    %892 = vmatpush2.bf16.msra.mxu0 %v820
    %893 = vmatprep.subr.bf16.mxu0 0
    %894 = vmatpush2.bf16.msra.mxu0 %v819
    %895 = vmatprep.subr.bf16.mxu0 0
    %896 = vmatpush2.bf16.msra.mxu0 %v818
    %897 = vmatprep.subr.bf16.mxu0 0
    %898 = vmatpush2.bf16.msra.mxu0 %v817
    %899 = vmatprep.subr.bf16.mxu0 0
    %900 = vmatpush2.bf16.msra.mxu0 %v816
    %901 = vmatprep.subr.bf16.mxu0 0
    %902 = vmatpush2.bf16.msra.mxu0 %v815
    %903 = vmatprep.mubr.bf16.mxu0 %v552
    %904 = vmatmul.mubr.bf16.gmra.mxu0 %v551
    %v905 = vpop.f32.mrf.mxu0
    %v906 = vadd.f32 %v202, %v905
    %v907 = vpop.f32.mrf.mxu0
    %v908 = vpop.f32.mrf.mxu0
    %v909 = vadd.f32 %v207, %v908
    %v910 = vpop.f32.mrf.mxu0
    %911 = vmatprep.mubr.bf16.mxu0 %v556
    %912 = vmatmul.mubr.bf16.gmra.mxu0 %v555
    %v913 = vpop.f32.mrf.mxu0
    %v914 = vadd.f32 %v212, %v913
    %v915 = vpop.f32.mrf.mxu0
    %v916 = vpop.f32.mrf.mxu0
    %v917 = vadd.f32 %v217, %v916
    %v918 = vpop.f32.mrf.mxu0
    %919 = vmatprep.mubr.bf16.mxu0 %v560
    %920 = vmatmul.mubr.bf16.gmra.mxu0 %v559
    %v921 = vpop.f32.mrf.mxu0
    %v922 = vadd.f32 %v222, %v921
    %v923 = vpop.f32.mrf.mxu0
    %v924 = vpop.f32.mrf.mxu0
    %v925 = vadd.f32 %v227, %v924
    %v926 = vpop.f32.mrf.mxu0
    %927 = vmatprep.mubr.bf16.mxu0 %v564
    %928 = vmatmul.mubr.bf16.gmra.mxu0 %v563
    %v929 = vpop.f32.mrf.mxu0
    %v930 = vadd.f32 %v232, %v929
    %v931 = vpop.f32.mrf.mxu0
    %v932 = vpop.f32.mrf.mxu0
    %v933 = vadd.f32 %v237, %v932
    %v934 = vpop.f32.mrf.mxu0
    %935 = vmatprep.mubr.bf16.mxu0 %v568
    %936 = vmatmul.mubr.bf16.gmra.mxu0 %v567
    %v937 = vpop.f32.mrf.mxu0
    %v938 = vadd.f32 %v242, %v937
    %v939 = vpop.f32.mrf.mxu0
    %v940 = vpop.f32.mrf.mxu0
    %v941 = vadd.f32 %v247, %v940
    %v942 = vpop.f32.mrf.mxu0
    %943 = vmatprep.mubr.bf16.mxu0 %v572
    %944 = vmatmul.mubr.bf16.gmra.mxu0 %v571
    %v945 = vpop.f32.mrf.mxu0
    %v946 = vadd.f32 %v252, %v945
    %v947 = vpop.f32.mrf.mxu0
    %v948 = vpop.f32.mrf.mxu0
    %v949 = vadd.f32 %v257, %v948
    %v950 = vpop.f32.mrf.mxu0
    %951 = vmatprep.mubr.bf16.mxu0 %v576
    %952 = vmatmul.mubr.bf16.gmra.mxu0 %v575
    %v953 = vpop.f32.mrf.mxu0
    %v954 = vadd.f32 %v262, %v953
    %v955 = vpop.f32.mrf.mxu0
    %v956 = vpop.f32.mrf.mxu0
    %v957 = vadd.f32 %v267, %v956
    %v958 = vpop.f32.mrf.mxu0
    %959 = vmatprep.mubr.bf16.mxu0 %v580
    %960 = vmatmul.mubr.bf16.gmra.mxu0 %v579
    %v961 = vpop.f32.mrf.mxu0
    %v962 = vadd.f32 %v272, %v961
    %v963 = vpop.f32.mrf.mxu0
    %v964 = vpop.f32.mrf.mxu0
    %v965 = vadd.f32 %v277, %v964
    %v966 = vpop.f32.mrf.mxu0
    %967 = vmatprep.mubr.bf16.mxu0 %v584
    %968 = vmatmul.mubr.bf16.gmra.mxu0 %v583
    %v969 = vpop.f32.mrf.mxu0
    %v970 = vadd.f32 %v282, %v969
    %v971 = vpop.f32.mrf.mxu0
    %v972 = vpop.f32.mrf.mxu0
    %v973 = vadd.f32 %v287, %v972
    %v974 = vpop.f32.mrf.mxu0
    %975 = vmatprep.mubr.bf16.mxu0 %v588
    %976 = vmatmul.mubr.bf16.gmra.mxu0 %v587
    %v977 = vpop.f32.mrf.mxu0
    %v978 = vadd.f32 %v292, %v977
    %v979 = vpop.f32.mrf.mxu0
    %v980 = vpop.f32.mrf.mxu0
    %v981 = vadd.f32 %v297, %v980
    %v982 = vpop.f32.mrf.mxu0
    %983 = vmatprep.mubr.bf16.mxu0 %v592
    %984 = vmatmul.mubr.bf16.gmra.mxu0 %v591
    %v985 = vpop.f32.mrf.mxu0
    %v986 = vadd.f32 %v302, %v985
    %v987 = vpop.f32.mrf.mxu0
    %v988 = vpop.f32.mrf.mxu0
    %v989 = vadd.f32 %v307, %v988
    %v990 = vpop.f32.mrf.mxu0
    %991 = vmatprep.mubr.bf16.mxu0 %v596
    %992 = vmatmul.mubr.bf16.gmra.mxu0 %v595
    %v993 = vpop.f32.mrf.mxu0
    %v994 = vadd.f32 %v312, %v993
    %v995 = vpop.f32.mrf.mxu0
    %v996 = vpop.f32.mrf.mxu0
    %v997 = vadd.f32 %v317, %v996
    %v998 = vpop.f32.mrf.mxu0
    %999 = vmatprep.mubr.bf16.mxu0 %v600
    %1000 = vmatmul.mubr.bf16.gmra.mxu0 %v599
    %v1001 = vpop.f32.mrf.mxu0
    %v1002 = vadd.f32 %v322, %v1001
    %v1003 = vpop.f32.mrf.mxu0
    %v1004 = vpop.f32.mrf.mxu0
    %v1005 = vadd.f32 %v327, %v1004
    %v1006 = vpop.f32.mrf.mxu0
    %1007 = vmatprep.mubr.bf16.mxu0 %v604
    %1008 = vmatmul.mubr.bf16.gmra.mxu0 %v603
    %v1009 = vpop.f32.mrf.mxu0
    %v1010 = vadd.f32 %v332, %v1009
    %v1011 = vpop.f32.mrf.mxu0
    %v1012 = vpop.f32.mrf.mxu0
    %v1013 = vadd.f32 %v337, %v1012
    %v1014 = vpop.f32.mrf.mxu0
    %1015 = vmatprep.mubr.bf16.mxu0 %v608
    %1016 = vmatmul.mubr.bf16.gmra.mxu0 %v607
    %v1017 = vpop.f32.mrf.mxu0
    %v1018 = vadd.f32 %v342, %v1017
    %v1019 = vpop.f32.mrf.mxu0
    %v1020 = vpop.f32.mrf.mxu0
    %v1021 = vadd.f32 %v347, %v1020
    %v1022 = vpop.f32.mrf.mxu0
    %1023 = vmatprep.mubr.bf16.mxu0 %v612
    %1024 = vmatmul.mubr.bf16.gmra.mxu0 %v611
    %v1025 = vpop.f32.mrf.mxu0
    %v1026 = vadd.f32 %v352, %v1025
    %v1027 = vpop.f32.mrf.mxu0
    %v1028 = vpop.f32.mrf.mxu0
    %v1029 = vadd.f32 %v357, %v1028
    %v1030 = vpop.f32.mrf.mxu0
    %1031 = vdwg.mxu0
    %1032 = vmatprep.subr.bf16.mxu0 0
    %1033 = vmatpush1.bf16.msra.mxu0 %v830
    %1034 = vmatprep.subr.bf16.mxu0 0
    %1035 = vmatpush1.bf16.msra.mxu0 %v829
    %1036 = vmatprep.subr.bf16.mxu0 0
    %1037 = vmatpush1.bf16.msra.mxu0 %v828
    %1038 = vmatprep.subr.bf16.mxu0 0
    %1039 = vmatpush1.bf16.msra.mxu0 %v827
    %1040 = vmatprep.subr.bf16.mxu0 0
    %1041 = vmatpush1.bf16.msra.mxu0 %v826
    %1042 = vmatprep.subr.bf16.mxu0 0
    %1043 = vmatpush1.bf16.msra.mxu0 %v825
    %1044 = vmatprep.subr.bf16.mxu0 0
    %1045 = vmatpush1.bf16.msra.mxu0 %v824
    %1046 = vmatprep.subr.bf16.mxu0 0
    %1047 = vmatpush1.bf16.msra.mxu0 %v823
    %1048 = vmatprep.subr.bf16.mxu0 0
    %1049 = vmatpush2.bf16.msra.mxu0 %v838
    %1050 = vmatprep.subr.bf16.mxu0 0
    %1051 = vmatpush2.bf16.msra.mxu0 %v837
    %1052 = vmatprep.subr.bf16.mxu0 0
    %1053 = vmatpush2.bf16.msra.mxu0 %v836
    %1054 = vmatprep.subr.bf16.mxu0 0
    %1055 = vmatpush2.bf16.msra.mxu0 %v835
    %1056 = vmatprep.subr.bf16.mxu0 0
    %1057 = vmatpush2.bf16.msra.mxu0 %v834
    %1058 = vmatprep.subr.bf16.mxu0 0
    %1059 = vmatpush2.bf16.msra.mxu0 %v833
    %1060 = vmatprep.subr.bf16.mxu0 0
    %1061 = vmatpush2.bf16.msra.mxu0 %v832
    %1062 = vmatprep.subr.bf16.mxu0 0
    %1063 = vmatpush2.bf16.msra.mxu0 %v831
    %1064 = vmatprep.mubr.bf16.mxu0 %v554
    %1065 = vmatmul.mubr.bf16.gmra.mxu0 %v553
    %v1066 = vpop.f32.mrf.mxu0
    %v1067 = vadd.f32 %v906, %v1066
    %v1068 = vpop.f32.mrf.mxu0
    %v1069 = vpop.f32.mrf.mxu0
    %v1070 = vadd.f32 %v909, %v1069
    %v1071 = vpop.f32.mrf.mxu0
    %1072 = vmatprep.mubr.bf16.mxu0 %v558
    %1073 = vmatmul.mubr.bf16.gmra.mxu0 %v557
    %v1074 = vpop.f32.mrf.mxu0
    %v1075 = vadd.f32 %v914, %v1074
    %v1076 = vpop.f32.mrf.mxu0
    %v1077 = vpop.f32.mrf.mxu0
    %v1078 = vadd.f32 %v917, %v1077
    %v1079 = vpop.f32.mrf.mxu0
    %1080 = vmatprep.mubr.bf16.mxu0 %v562
    %1081 = vmatmul.mubr.bf16.gmra.mxu0 %v561
    %v1082 = vpop.f32.mrf.mxu0
    %v1083 = vadd.f32 %v922, %v1082
    %v1084 = vpop.f32.mrf.mxu0
    %v1085 = vpop.f32.mrf.mxu0
    %v1086 = vadd.f32 %v925, %v1085
    %v1087 = vpop.f32.mrf.mxu0
    %1088 = vmatprep.mubr.bf16.mxu0 %v566
    %1089 = vmatmul.mubr.bf16.gmra.mxu0 %v565
    %v1090 = vpop.f32.mrf.mxu0
    %v1091 = vadd.f32 %v930, %v1090
    %v1092 = vpop.f32.mrf.mxu0
    %v1093 = vpop.f32.mrf.mxu0
    %v1094 = vadd.f32 %v933, %v1093
    %v1095 = vpop.f32.mrf.mxu0
    %1096 = vmatprep.mubr.bf16.mxu0 %v570
    %1097 = vmatmul.mubr.bf16.gmra.mxu0 %v569
    %v1098 = vpop.f32.mrf.mxu0
    %v1099 = vadd.f32 %v938, %v1098
    %v1100 = vpop.f32.mrf.mxu0
    %v1101 = vpop.f32.mrf.mxu0
    %v1102 = vadd.f32 %v941, %v1101
    %v1103 = vpop.f32.mrf.mxu0
    %1104 = vmatprep.mubr.bf16.mxu0 %v574
    %1105 = vmatmul.mubr.bf16.gmra.mxu0 %v573
    %v1106 = vpop.f32.mrf.mxu0
    %v1107 = vadd.f32 %v946, %v1106
    %v1108 = vpop.f32.mrf.mxu0
    %v1109 = vpop.f32.mrf.mxu0
    %v1110 = vadd.f32 %v949, %v1109
    %v1111 = vpop.f32.mrf.mxu0
    %1112 = vmatprep.mubr.bf16.mxu0 %v578
    %1113 = vmatmul.mubr.bf16.gmra.mxu0 %v577
    %v1114 = vpop.f32.mrf.mxu0
    %v1115 = vadd.f32 %v954, %v1114
    %v1116 = vpop.f32.mrf.mxu0
    %v1117 = vpop.f32.mrf.mxu0
    %v1118 = vadd.f32 %v957, %v1117
    %v1119 = vpop.f32.mrf.mxu0
    %1120 = vmatprep.mubr.bf16.mxu0 %v582
    %1121 = vmatmul.mubr.bf16.gmra.mxu0 %v581
    %v1122 = vpop.f32.mrf.mxu0
    %v1123 = vadd.f32 %v962, %v1122
    %v1124 = vpop.f32.mrf.mxu0
    %v1125 = vpop.f32.mrf.mxu0
    %v1126 = vadd.f32 %v965, %v1125
    %v1127 = vpop.f32.mrf.mxu0
    %1128 = vmatprep.mubr.bf16.mxu0 %v586
    %1129 = vmatmul.mubr.bf16.gmra.mxu0 %v585
    %v1130 = vpop.f32.mrf.mxu0
    %v1131 = vadd.f32 %v970, %v1130
    %v1132 = vpop.f32.mrf.mxu0
    %v1133 = vpop.f32.mrf.mxu0
    %v1134 = vadd.f32 %v973, %v1133
    %v1135 = vpop.f32.mrf.mxu0
    %1136 = vmatprep.mubr.bf16.mxu0 %v590
    %1137 = vmatmul.mubr.bf16.gmra.mxu0 %v589
    %v1138 = vpop.f32.mrf.mxu0
    %v1139 = vadd.f32 %v978, %v1138
    %v1140 = vpop.f32.mrf.mxu0
    %v1141 = vpop.f32.mrf.mxu0
    %v1142 = vadd.f32 %v981, %v1141
    %v1143 = vpop.f32.mrf.mxu0
    %1144 = vmatprep.mubr.bf16.mxu0 %v594
    %1145 = vmatmul.mubr.bf16.gmra.mxu0 %v593
    %v1146 = vpop.f32.mrf.mxu0
    %v1147 = vadd.f32 %v986, %v1146
    %v1148 = vpop.f32.mrf.mxu0
    %v1149 = vpop.f32.mrf.mxu0
    %v1150 = vadd.f32 %v989, %v1149
    %v1151 = vpop.f32.mrf.mxu0
    %1152 = vmatprep.mubr.bf16.mxu0 %v598
    %1153 = vmatmul.mubr.bf16.gmra.mxu0 %v597
    %v1154 = vpop.f32.mrf.mxu0
    %v1155 = vadd.f32 %v994, %v1154
    %v1156 = vpop.f32.mrf.mxu0
    %v1157 = vpop.f32.mrf.mxu0
    %v1158 = vadd.f32 %v997, %v1157
    %v1159 = vpop.f32.mrf.mxu0
    %1160 = vmatprep.mubr.bf16.mxu0 %v602
    %1161 = vmatmul.mubr.bf16.gmra.mxu0 %v601
    %v1162 = vpop.f32.mrf.mxu0
    %v1163 = vadd.f32 %v1002, %v1162
    %v1164 = vpop.f32.mrf.mxu0
    %v1165 = vpop.f32.mrf.mxu0
    %v1166 = vadd.f32 %v1005, %v1165
    %v1167 = vpop.f32.mrf.mxu0
    %1168 = vmatprep.mubr.bf16.mxu0 %v606
    %1169 = vmatmul.mubr.bf16.gmra.mxu0 %v605
    %v1170 = vpop.f32.mrf.mxu0
    %v1171 = vadd.f32 %v1010, %v1170
    %v1172 = vpop.f32.mrf.mxu0
    %v1173 = vpop.f32.mrf.mxu0
    %v1174 = vadd.f32 %v1013, %v1173
    %v1175 = vpop.f32.mrf.mxu0
    %1176 = vmatprep.mubr.bf16.mxu0 %v610
    %1177 = vmatmul.mubr.bf16.gmra.mxu0 %v609
    %v1178 = vpop.f32.mrf.mxu0
    %v1179 = vadd.f32 %v1018, %v1178
    %v1180 = vpop.f32.mrf.mxu0
    %v1181 = vpop.f32.mrf.mxu0
    %v1182 = vadd.f32 %v1021, %v1181
    %v1183 = vpop.f32.mrf.mxu0
    %1184 = vmatprep.mubr.bf16.mxu0 %v614
    %1185 = vmatmul.mubr.bf16.gmra.mxu0 %v613
    %v1186 = vpop.f32.mrf.mxu0
    %v1187 = vadd.f32 %v1026, %v1186
    %v1188 = vpop.f32.mrf.mxu0
    %v1189 = vpop.f32.mrf.mxu0
    %v1190 = vadd.f32 %v1029, %v1189
    %v1191 = vpop.f32.mrf.mxu0
    %1192 = vdwg.mxu0
    %v1193 = vmul.f32 %v1067, 0.01
    %v1194 = vmul.f32 %v1070, 0.01
    %v1195 = vmul.f32 %v1075, 0.01
    %v1196 = vmul.f32 %v1078, 0.01
    %v1197 = vmul.f32 %v1083, 0.01
    %v1198 = vmul.f32 %v1086, 0.01
    %v1199 = vmul.f32 %v1091, 0.01
    %v1200 = vmul.f32 %v1094, 0.01
    %v1201 = vmul.f32 %v1099, 0.01
    %v1202 = vmul.f32 %v1102, 0.01
    %v1203 = vmul.f32 %v1107, 0.01
    %v1204 = vmul.f32 %v1110, 0.01
    %v1205 = vmul.f32 %v1115, 0.01
    %v1206 = vmul.f32 %v1118, 0.01
    %v1207 = vmul.f32 %v1123, 0.01
    %v1208 = vmul.f32 %v1126, 0.01
    %v1209 = vmul.f32 %v1131, 0.01
    %v1210 = vmul.f32 %v1134, 0.01
    %v1211 = vmul.f32 %v1139, 0.01
    %v1212 = vmul.f32 %v1142, 0.01
    %v1213 = vmul.f32 %v1147, 0.01
    %v1214 = vmul.f32 %v1150, 0.01
    %v1215 = vmul.f32 %v1155, 0.01
    %v1216 = vmul.f32 %v1158, 0.01
    %v1217 = vmul.f32 %v1163, 0.01
    %v1218 = vmul.f32 %v1166, 0.01
    %v1219 = vmul.f32 %v1171, 0.01
    %v1220 = vmul.f32 %v1174, 0.01
    %v1221 = vmul.f32 %v1179, 0.01
    %v1222 = vmul.f32 %v1182, 0.01
    %v1223 = vmul.f32 %v1187, 0.01
    %v1224 = vmul.f32 %v1190, 0.01
    %v1225 = vmax.f32 %v1067, %v1193
    %v1226 = vmax.f32 %v1070, %v1194
    %v1227 = vmax.f32 %v1075, %v1195
    %v1228 = vmax.f32 %v1078, %v1196
    %v1229 = vmax.f32 %v1083, %v1197
    %v1230 = vmax.f32 %v1086, %v1198
    %v1231 = vmax.f32 %v1091, %v1199
    %v1232 = vmax.f32 %v1094, %v1200
    %v1233 = vmax.f32 %v1099, %v1201
    %v1234 = vmax.f32 %v1102, %v1202
    %v1235 = vmax.f32 %v1107, %v1203
    %v1236 = vmax.f32 %v1110, %v1204
    %v1237 = vmax.f32 %v1115, %v1205
    %v1238 = vmax.f32 %v1118, %v1206
    %v1239 = vmax.f32 %v1123, %v1207
    %v1240 = vmax.f32 %v1126, %v1208
    %v1241 = vmax.f32 %v1131, %v1209
    %v1242 = vmax.f32 %v1134, %v1210
    %v1243 = vmax.f32 %v1139, %v1211
    %v1244 = vmax.f32 %v1142, %v1212
    %v1245 = vmax.f32 %v1147, %v1213
    %v1246 = vmax.f32 %v1150, %v1214
    %v1247 = vmax.f32 %v1155, %v1215
    %v1248 = vmax.f32 %v1158, %v1216
    %v1249 = vmax.f32 %v1163, %v1217
    %v1250 = vmax.f32 %v1166, %v1218
    %v1251 = vmax.f32 %v1171, %v1219
    %v1252 = vmax.f32 %v1174, %v1220
    %v1253 = vmax.f32 %v1179, %v1221
    %v1254 = vmax.f32 %v1182, %v1222
    %v1255 = vmax.f32 %v1187, %v1223
    %v1256 = vmax.f32 %v1190, %v1224
    %v1257 = vld [vmem:[%s3] sm:$0xff]
    %v1258 = vld [vmem:[%s3 + $0x8] sm:$0xff]
    %v1259 = vld [vmem:[%s3 + $0x10] sm:$0xff]
    %v1260 = vld [vmem:[%s3 + $0x18] sm:$0xff]
    %1261 = vmatprep.subr.mxu0 0.0
    %1262 = vmatpush1.msra.mxu0 %v1240
    %1263 = vmatprep.subr.mxu0 0.0
    %1264 = vmatpush1.msra.mxu0 %v1239
    %1265 = vmatprep.subr.mxu0 0.0
    %1266 = vmatpush1.msra.mxu0 %v1238
    %1267 = vmatprep.subr.mxu0 0.0
    %1268 = vmatpush1.msra.mxu0 %v1237
    %1269 = vmatprep.subr.mxu0 0.0
    %1270 = vmatpush1.msra.mxu0 %v1236
    %1271 = vmatprep.subr.mxu0 0.0
    %1272 = vmatpush1.msra.mxu0 %v1235
    %1273 = vmatprep.subr.mxu0 0.0
    %1274 = vmatpush1.msra.mxu0 %v1234
    %1275 = vmatprep.subr.mxu0 0.0
    %1276 = vmatpush1.msra.mxu0 %v1233
    %1277 = vmatprep.subr.mxu0 0.0
    %1278 = vmatpush1.msra.mxu0 %v1232
    %1279 = vmatprep.subr.mxu0 0.0
    %1280 = vmatpush1.msra.mxu0 %v1231
    %1281 = vmatprep.subr.mxu0 0.0
    %1282 = vmatpush1.msra.mxu0 %v1230
    %1283 = vmatprep.subr.mxu0 0.0
    %1284 = vmatpush1.msra.mxu0 %v1229
    %1285 = vmatprep.subr.mxu0 0.0
    %1286 = vmatpush1.msra.mxu0 %v1228
    %1287 = vmatprep.subr.mxu0 0.0
    %1288 = vmatpush1.msra.mxu0 %v1227
    %1289 = vmatprep.subr.mxu0 0.0
    %1290 = vmatpush1.msra.mxu0 %v1226
    %1291 = vmatprep.subr.mxu0 0.0
    %1292 = vmatpush1.msra.mxu0 %v1225
    %1293 = vmatprep.subr.mxu0 0.0
    %1294 = vmatpush2.msra.mxu0 %v1256
    %1295 = vmatprep.subr.mxu0 0.0
    %1296 = vmatpush2.msra.mxu0 %v1255
    %1297 = vmatprep.subr.mxu0 0.0
    %1298 = vmatpush2.msra.mxu0 %v1254
    %1299 = vmatprep.subr.mxu0 0.0
    %1300 = vmatpush2.msra.mxu0 %v1253
    %1301 = vmatprep.subr.mxu0 0.0
    %1302 = vmatpush2.msra.mxu0 %v1252
    %1303 = vmatprep.subr.mxu0 0.0
    %1304 = vmatpush2.msra.mxu0 %v1251
    %1305 = vmatprep.subr.mxu0 0.0
    %1306 = vmatpush2.msra.mxu0 %v1250
    %1307 = vmatprep.subr.mxu0 0.0
    %1308 = vmatpush2.msra.mxu0 %v1249
    %1309 = vmatprep.subr.mxu0 0.0
    %1310 = vmatpush2.msra.mxu0 %v1248
    %1311 = vmatprep.subr.mxu0 0.0
    %1312 = vmatpush2.msra.mxu0 %v1247
    %1313 = vmatprep.subr.mxu0 0.0
    %1314 = vmatpush2.msra.mxu0 %v1246
    %1315 = vmatprep.subr.mxu0 0.0
    %1316 = vmatpush2.msra.mxu0 %v1245
    %1317 = vmatprep.subr.mxu0 0.0
    %1318 = vmatpush2.msra.mxu0 %v1244
    %1319 = vmatprep.subr.mxu0 0.0
    %1320 = vmatpush2.msra.mxu0 %v1243
    %1321 = vmatprep.subr.mxu0 0.0
    %1322 = vmatpush2.msra.mxu0 %v1242
    %1323 = vmatprep.subr.mxu0 0.0
    %1324 = vmatpush2.msra.mxu0 %v1241
    %1325 = vmatprep.mubr.f32.mxu0 %v1258
    %1326 = vmatmul.mubr.f32.gmra.mxu0 %v1257
    %v1327 = vpop.f32.mrf.mxu0
    %v1328 = vadd.f32 0.0, %v1327
    %v1329 = vpop.f32.mrf.mxu0
    %1330 = vmatprep.mubr.f32.mxu0 %v1260
    %1331 = vmatmul.mubr.f32.gmra.mxu0 %v1259
    %v1332 = vpop.f32.mrf.mxu0
    %v1333 = vadd.f32 0.0, %v1332
    %v1334 = vpop.f32.mrf.mxu0
    %1335 = vdwg.mxu0
    %v1336 = vld [vmem:[%s4] sm:$0xff]
    %v1337 = vld [vmem:[%s4 + $0x8] sm:$0xff]
    %v1338 = vld [vmem:[%s4 + $0x10] sm:$0xff]
    %v1339 = vld [vmem:[%s4 + $0x18] sm:$0xff]
    %v1340 = vld [vmem:[%s4 + $0x20] sm:$0xff]
    %v1341 = vld [vmem:[%s4 + $0x28] sm:$0xff]
    %v1342 = vld [vmem:[%s4 + $0x30] sm:$0xff]
    %v1343 = vld [vmem:[%s4 + $0x38] sm:$0xff]
    %v1344 = vld [vmem:[%s5] sm:$0xff]
    %v1345 = vld [vmem:[%s5 + $0x8] sm:$0xff]
    %v1346 = vld [vmem:[%s5 + $0x10] sm:$0xff]
    %v1347 = vld [vmem:[%s5 + $0x18] sm:$0xff]
    %v1348 = vld [vmem:[%s5 + $0x20] sm:$0xff]
    %v1349 = vld [vmem:[%s5 + $0x28] sm:$0xff]
    %v1350 = vld [vmem:[%s5 + $0x30] sm:$0xff]
    %v1351 = vld [vmem:[%s5 + $0x38] sm:$0xff]
    %1353 = vset.pattern.permute.xlu0 0
    %1354 = vperm.xlu0 %1353, %v1344
    %v1355 = vpop.permute.xlu0 %1354
    %1358 = vset.pattern.permute.xlu0 0
    %1359 = vperm.xlu0 %1358, %v1345
    %v1360 = vpop.permute.xlu0 %1359
    %1363 = vset.pattern.permute.xlu0 0
    %1364 = vperm.xlu0 %1363, %v1346
    %v1365 = vpop.permute.xlu0 %1364
    %1368 = vset.pattern.permute.xlu0 0
    %1369 = vperm.xlu0 %1368, %v1347
    %v1370 = vpop.permute.xlu0 %1369
    %1373 = vset.pattern.permute.xlu0 0
    %1374 = vperm.xlu0 %1373, %v1348
    %v1375 = vpop.permute.xlu0 %1374
    %1378 = vset.pattern.permute.xlu0 0
    %1379 = vperm.xlu0 %1378, %v1349
    %v1380 = vpop.permute.xlu0 %1379
    %1383 = vset.pattern.permute.xlu0 0
    %1384 = vperm.xlu0 %1383, %v1350
    %v1385 = vpop.permute.xlu0 %1384
    %1388 = vset.pattern.permute.xlu0 0
    %1389 = vperm.xlu0 %1388, %v1351
    %v1390 = vpop.permute.xlu0 %1389
    %vm1392 = vcmask 130048
    %v1394 = vsel %vm1392, %v1336, 0
    %v1397 = vsel %vm1392, %v1337, 0
    %v1400 = vsel %vm1392, %v1338, 0
    %v1403 = vsel %vm1392, %v1339, 0
    %v1406 = vsel %vm1392, %v1340, 0
    %v1409 = vsel %vm1392, %v1341, 0
    %v1412 = vsel %vm1392, %v1342, 0
    %v1415 = vsel %vm1392, %v1343, 0
    %1417 = vmatprep.subr.mxu0 0.0
    %1418 = vmatpush1.msra.mxu0 0.0
    %1419 = vmatprep.subr.mxu0 0.0
    %1420 = vmatpush1.msra.mxu0 0.0
    %1421 = vmatprep.subr.mxu0 0.0
    %1422 = vmatpush1.msra.mxu0 0.0
    %1423 = vmatprep.subr.mxu0 0.0
    %1424 = vmatpush1.msra.mxu0 0.0
    %1425 = vmatprep.subr.mxu0 0.0
    %1426 = vmatpush1.msra.mxu0 0.0
    %1427 = vmatprep.subr.mxu0 0.0
    %1428 = vmatpush1.msra.mxu0 0.0
    %1429 = vmatprep.subr.mxu0 0.0
    %1430 = vmatpush1.msra.mxu0 0.0
    %1431 = vmatprep.subr.mxu0 0.0
    %1432 = vmatpush1.msra.mxu0 0.0
    %1433 = vmatprep.subr.mxu0 0.0
    %1434 = vmatpush1.msra.mxu0 0.0
    %1435 = vmatprep.subr.mxu0 0.0
    %1436 = vmatpush1.msra.mxu0 0.0
    %1437 = vmatprep.subr.mxu0 0.0
    %1438 = vmatpush1.msra.mxu0 0.0
    %1439 = vmatprep.subr.mxu0 0.0
    %1440 = vmatpush1.msra.mxu0 0.0
    %1441 = vmatprep.subr.mxu0 0.0
    %1442 = vmatpush1.msra.mxu0 0.0
    %1443 = vmatprep.subr.mxu0 0.0
    %1444 = vmatpush1.msra.mxu0 0.0
    %1445 = vmatprep.subr.mxu0 0.0
    %1446 = vmatpush1.msra.mxu0 %v1333
    %1447 = vmatprep.subr.mxu0 0.0
    %1448 = vmatpush1.msra.mxu0 %v1328
    %1449 = vmatprep.subr.mxu0 0.0
    %1450 = vmatpush2.msra.mxu0 0.0
    %1451 = vmatprep.subr.mxu0 0.0
    %1452 = vmatpush2.msra.mxu0 0.0
    %1453 = vmatprep.subr.mxu0 0.0
    %1454 = vmatpush2.msra.mxu0 0.0
    %1455 = vmatprep.subr.mxu0 0.0
    %1456 = vmatpush2.msra.mxu0 0.0
    %1457 = vmatprep.subr.mxu0 0.0
    %1458 = vmatpush2.msra.mxu0 0.0
    %1459 = vmatprep.subr.mxu0 0.0
    %1460 = vmatpush2.msra.mxu0 0.0
    %1461 = vmatprep.subr.mxu0 0.0
    %1462 = vmatpush2.msra.mxu0 0.0
    %1463 = vmatprep.subr.mxu0 0.0
    %1464 = vmatpush2.msra.mxu0 0.0
    %1465 = vmatprep.subr.mxu0 0.0
    %1466 = vmatpush2.msra.mxu0 0.0
    %1467 = vmatprep.subr.mxu0 0.0
    %1468 = vmatpush2.msra.mxu0 0.0
    %1469 = vmatprep.subr.mxu0 0.0
    %1470 = vmatpush2.msra.mxu0 0.0
    %1471 = vmatprep.subr.mxu0 0.0
    %1472 = vmatpush2.msra.mxu0 0.0
    %1473 = vmatprep.subr.mxu0 0.0
    %1474 = vmatpush2.msra.mxu0 0.0
    %1475 = vmatprep.subr.mxu0 0.0
    %1476 = vmatpush2.msra.mxu0 0.0
    %1477 = vmatprep.subr.mxu0 0.0
    %1478 = vmatpush2.msra.mxu0 0.0
    %1479 = vmatprep.subr.mxu0 0.0
    %1480 = vmatpush2.msra.mxu0 0.0
    %1481 = vmatprep.mubr.f32.mxu0 0.0
    %1482 = vmatmul.mubr.f32.gmra.mxu0 %v1394
    %v1483 = vpop.f32.mrf.mxu0
    %v1484 = vadd.f32 %v1355, %v1483
    %v1485 = vpop.f32.mrf.mxu0
    %1486 = vmatprep.mubr.f32.mxu0 0.0
    %1487 = vmatmul.mubr.f32.gmra.mxu0 %v1397
    %v1488 = vpop.f32.mrf.mxu0
    %v1489 = vadd.f32 %v1360, %v1488
    %v1490 = vpop.f32.mrf.mxu0
    %1491 = vmatprep.mubr.f32.mxu0 0.0
    %1492 = vmatmul.mubr.f32.gmra.mxu0 %v1400
    %v1493 = vpop.f32.mrf.mxu0
    %v1494 = vadd.f32 %v1365, %v1493
    %v1495 = vpop.f32.mrf.mxu0
    %1496 = vmatprep.mubr.f32.mxu0 0.0
    %1497 = vmatmul.mubr.f32.gmra.mxu0 %v1403
    %v1498 = vpop.f32.mrf.mxu0
    %v1499 = vadd.f32 %v1370, %v1498
    %v1500 = vpop.f32.mrf.mxu0
    %1501 = vmatprep.mubr.f32.mxu0 0.0
    %1502 = vmatmul.mubr.f32.gmra.mxu0 %v1406
    %v1503 = vpop.f32.mrf.mxu0
    %v1504 = vadd.f32 %v1375, %v1503
    %v1505 = vpop.f32.mrf.mxu0
    %1506 = vmatprep.mubr.f32.mxu0 0.0
    %1507 = vmatmul.mubr.f32.gmra.mxu0 %v1409
    %v1508 = vpop.f32.mrf.mxu0
    %v1509 = vadd.f32 %v1380, %v1508
    %v1510 = vpop.f32.mrf.mxu0
    %1511 = vmatprep.mubr.f32.mxu0 0.0
    %1512 = vmatmul.mubr.f32.gmra.mxu0 %v1412
    %v1513 = vpop.f32.mrf.mxu0
    %v1514 = vadd.f32 %v1385, %v1513
    %v1515 = vpop.f32.mrf.mxu0
    %1516 = vmatprep.mubr.f32.mxu0 0.0
    %1517 = vmatmul.mubr.f32.gmra.mxu0 %v1415
    %v1518 = vpop.f32.mrf.mxu0
    %v1519 = vadd.f32 %v1390, %v1518
    %v1520 = vpop.f32.mrf.mxu0
    %1521 = vdwg.mxu0
    %v1522 = vmul.f32 %v1484, 0.01
    %v1523 = vmul.f32 %v1489, 0.01
    %v1524 = vmul.f32 %v1494, 0.01
    %v1525 = vmul.f32 %v1499, 0.01
    %v1526 = vmul.f32 %v1504, 0.01
    %v1527 = vmul.f32 %v1509, 0.01
    %v1528 = vmul.f32 %v1514, 0.01
    %v1529 = vmul.f32 %v1519, 0.01
    %v1530 = vmax.f32 %v1484, %v1522
    %v1531 = vmax.f32 %v1489, %v1523
    %v1532 = vmax.f32 %v1494, %v1524
    %v1533 = vmax.f32 %v1499, %v1525
    %v1534 = vmax.f32 %v1504, %v1526
    %v1535 = vmax.f32 %v1509, %v1527
    %v1536 = vmax.f32 %v1514, %v1528
    %v1537 = vmax.f32 %v1519, %v1529
    %v1538 = vld [vmem:[%s6] sm:$0xff]
    %v1539 = vld [vmem:[%s6 + $0x8] sm:$0xff]
    %v1540 = vld [vmem:[%s6 + $0x10] sm:$0xff]
    %v1541 = vld [vmem:[%s6 + $0x18] sm:$0xff]
    %v1542 = vld [vmem:[%s7] sm:$0xff]
    %v1543 = vld [vmem:[%s7 + $0x8] sm:$0xff]
    %v1544 = vld [vmem:[%s7 + $0x10] sm:$0xff]
    %v1545 = vld [vmem:[%s7 + $0x18] sm:$0xff]
    %1547 = vset.pattern.permute.xlu0 0
    %1548 = vperm.xlu0 %1547, %v1542
    %v1549 = vpop.permute.xlu0 %1548
    %1552 = vset.pattern.permute.xlu0 0
    %1553 = vperm.xlu0 %1552, %v1543
    %v1554 = vpop.permute.xlu0 %1553
    %1557 = vset.pattern.permute.xlu0 0
    %1558 = vperm.xlu0 %1557, %v1544
    %v1559 = vpop.permute.xlu0 %1558
    %1562 = vset.pattern.permute.xlu0 0
    %1563 = vperm.xlu0 %1562, %v1545
    %v1564 = vpop.permute.xlu0 %1563
    %vm1566 = vcmask 523264
    %v1568 = vsel %vm1566, %v1538, 0
    %v1571 = vsel %vm1566, %v1539, 0
    %v1574 = vsel %vm1566, %v1540, 0
    %v1577 = vsel %vm1566, %v1541, 0
    %1579 = vmatprep.subr.mxu0 0.0
    %1580 = vmatpush1.msra.mxu0 0.0
    %1581 = vmatprep.subr.mxu0 0.0
    %1582 = vmatpush1.msra.mxu0 0.0
    %1583 = vmatprep.subr.mxu0 0.0
    %1584 = vmatpush1.msra.mxu0 0.0
    %1585 = vmatprep.subr.mxu0 0.0
    %1586 = vmatpush1.msra.mxu0 0.0
    %1587 = vmatprep.subr.mxu0 0.0
    %1588 = vmatpush1.msra.mxu0 0.0
    %1589 = vmatprep.subr.mxu0 0.0
    %1590 = vmatpush1.msra.mxu0 0.0
    %1591 = vmatprep.subr.mxu0 0.0
    %1592 = vmatpush1.msra.mxu0 0.0
    %1593 = vmatprep.subr.mxu0 0.0
    %1594 = vmatpush1.msra.mxu0 0.0
    %1595 = vmatprep.subr.mxu0 0.0
    %1596 = vmatpush1.msra.mxu0 %v1537
    %1597 = vmatprep.subr.mxu0 0.0
    %1598 = vmatpush1.msra.mxu0 %v1536
    %1599 = vmatprep.subr.mxu0 0.0
    %1600 = vmatpush1.msra.mxu0 %v1535
    %1601 = vmatprep.subr.mxu0 0.0
    %1602 = vmatpush1.msra.mxu0 %v1534
    %1603 = vmatprep.subr.mxu0 0.0
    %1604 = vmatpush1.msra.mxu0 %v1533
    %1605 = vmatprep.subr.mxu0 0.0
    %1606 = vmatpush1.msra.mxu0 %v1532
    %1607 = vmatprep.subr.mxu0 0.0
    %1608 = vmatpush1.msra.mxu0 %v1531
    %1609 = vmatprep.subr.mxu0 0.0
    %1610 = vmatpush1.msra.mxu0 %v1530
    %1611 = vmatprep.subr.mxu0 0.0
    %1612 = vmatpush2.msra.mxu0 0.0
    %1613 = vmatprep.subr.mxu0 0.0
    %1614 = vmatpush2.msra.mxu0 0.0
    %1615 = vmatprep.subr.mxu0 0.0
    %1616 = vmatpush2.msra.mxu0 0.0
    %1617 = vmatprep.subr.mxu0 0.0
    %1618 = vmatpush2.msra.mxu0 0.0
    %1619 = vmatprep.subr.mxu0 0.0
    %1620 = vmatpush2.msra.mxu0 0.0
    %1621 = vmatprep.subr.mxu0 0.0
    %1622 = vmatpush2.msra.mxu0 0.0
    %1623 = vmatprep.subr.mxu0 0.0
    %1624 = vmatpush2.msra.mxu0 0.0
    %1625 = vmatprep.subr.mxu0 0.0
    %1626 = vmatpush2.msra.mxu0 0.0
    %1627 = vmatprep.subr.mxu0 0.0
    %1628 = vmatpush2.msra.mxu0 0.0
    %1629 = vmatprep.subr.mxu0 0.0
    %1630 = vmatpush2.msra.mxu0 0.0
    %1631 = vmatprep.subr.mxu0 0.0
    %1632 = vmatpush2.msra.mxu0 0.0
    %1633 = vmatprep.subr.mxu0 0.0
    %1634 = vmatpush2.msra.mxu0 0.0
    %1635 = vmatprep.subr.mxu0 0.0
    %1636 = vmatpush2.msra.mxu0 0.0
    %1637 = vmatprep.subr.mxu0 0.0
    %1638 = vmatpush2.msra.mxu0 0.0
    %1639 = vmatprep.subr.mxu0 0.0
    %1640 = vmatpush2.msra.mxu0 0.0
    %1641 = vmatprep.subr.mxu0 0.0
    %1642 = vmatpush2.msra.mxu0 0.0
    %1643 = vmatprep.mubr.f32.mxu0 0.0
    %1644 = vmatmul.mubr.f32.gmra.mxu0 %v1568
    %v1645 = vpop.f32.mrf.mxu0
    %v1646 = vadd.f32 %v1549, %v1645
    %v1647 = vpop.f32.mrf.mxu0
    %1648 = vmatprep.mubr.f32.mxu0 0.0
    %1649 = vmatmul.mubr.f32.gmra.mxu0 %v1571
    %v1650 = vpop.f32.mrf.mxu0
    %v1651 = vadd.f32 %v1554, %v1650
    %v1652 = vpop.f32.mrf.mxu0
    %1653 = vmatprep.mubr.f32.mxu0 0.0
    %1654 = vmatmul.mubr.f32.gmra.mxu0 %v1574
    %v1655 = vpop.f32.mrf.mxu0
    %v1656 = vadd.f32 %v1559, %v1655
    %v1657 = vpop.f32.mrf.mxu0
    %1658 = vmatprep.mubr.f32.mxu0 0.0
    %1659 = vmatmul.mubr.f32.gmra.mxu0 %v1577
    %v1660 = vpop.f32.mrf.mxu0
    %v1661 = vadd.f32 %v1564, %v1660
    %v1662 = vpop.f32.mrf.mxu0
    %1663 = vdwg.mxu0
    %v1664 = vmul.f32 %v1646, 0.01
    %v1665 = vmul.f32 %v1651, 0.01
    %v1666 = vmul.f32 %v1656, 0.01
    %v1667 = vmul.f32 %v1661, 0.01
    %v1668 = vmax.f32 %v1646, %v1664
    %v1669 = vmax.f32 %v1651, %v1665
    %v1670 = vmax.f32 %v1656, %v1666
    %v1671 = vmax.f32 %v1661, %v1667
    %v1672 = vld [vmem:[%s8] sm:$0xff]
    %v1673 = vld [vmem:[%s8 + $0x8] sm:$0xff]
    %v1674 = vld [vmem:[%s8 + $0x10] sm:$0xff]
    %v1675 = vld [vmem:[%s8 + $0x18] sm:$0xff]
    %1677 = vset.pattern.permute.xlu0 0
    %1678 = vperm.xlu0 %1677, %v1672
    %v1679 = vpop.permute.xlu0 %1678
    %1682 = vset.pattern.permute.xlu0 0
    %1683 = vperm.xlu0 %1682, %v1673
    %v1684 = vpop.permute.xlu0 %1683
    %1687 = vset.pattern.permute.xlu0 0
    %1688 = vperm.xlu0 %1687, %v1674
    %v1689 = vpop.permute.xlu0 %1688
    %1692 = vset.pattern.permute.xlu0 0
    %1693 = vperm.xlu0 %1692, %v1675
    %v1694 = vpop.permute.xlu0 %1693
    %v1696 = vmul.f32 %v1668, %v1679
    %v1697 = vmul.f32 %v1669, %v1684
    %v1698 = vmul.f32 %v1670, %v1689
    %v1699 = vmul.f32 %v1671, %v1694
    %vm1700 = vcmask 64512
    %v1701 = vsel %vm1700, %v1696, 0.0
    %v1702 = vsel %vm1700, %v1697, 0.0
    %v1703 = vadd.f32 %v1701, %v1702
    %v1704 = vsel %vm1700, %v1698, 0.0
    %v1705 = vadd.f32 %v1703, %v1704
    %v1706 = vsel %vm1700, %v1699, 0.0
    %v1707 = vadd.f32 %v1705, %v1706
    %v1708 = vrot.slane %v1707, 4
    %v1709 = vadd.f32 %v1707, %v1708
    %v1710 = vrot.slane %v1709, 2
    %v1711 = vadd.f32 %v1709, %v1710
    %v1712 = vrot.slane %v1711, 1
    %v1713 = vadd.f32 %v1711, %v1712
    %v1714 = vld [vmem:[#allocation2] sm:$0x1]
    %1716 = vset.pattern.permute.xlu0 0
    %1717 = vperm.xlu0 %1716, %v1714
    %v1718 = vpop.permute.xlu0 %1717
    %v1720 = vlaneseq
    %v1721 = vshrl.u32 %v1720, 7
    %v1722 = vsub.s32 0, %v1721
    %v1723 = vrot.slane %v1718, %v1722
    %v1724 = vadd.f32 %v1713, %v1723
    %vm1725 = vcmask 57344
    %1726 = vst.msk [vmem:[#allocation3] sm:$0x1] %vm1725, %v1724
    // Predicated region
    $region42: #{tpu_custom_call.1} parent=1 // pred_check
      _
    $region43: #{tpu_custom_call.1} parent=1 // pred_check_branch
      %1728 = sbr.rel (0) target = $region45
    $region44: #{tpu_custom_call.1} parent=1 // pred_region
      %s1730 = ssub.s32 16, 16
      %1731 = vsyncadd [#allocation4], %s1730
      %s1733 = sshll.u32 [#allocation3], 4
      %s1734 = int_to_ptr.vmem [resolvable:$true] %s1733
      %1736 = dma.vmem_to_hbm [thread:$0]  %s1734, 16, %s10, [#allocation4]
    $region45: #{tpu_custom_call.1} parent=1 // pred_fallthru
      _
    // Predicated region
    $region46: #{tpu_custom_call.1} parent=1 // pred_check
      _
    $region47: #{tpu_custom_call.1} parent=1 // pred_check_branch
      %1738 = sbr.rel (0) target = $region49
    $region48: #{tpu_custom_call.1} parent=1 // pred_region
      %1739 = dma.done [#allocation4], 16
    $region49: #{tpu_custom_call.1} parent=1 // pred_fallthru
      _
    %1740 = vsyncpa [#allocation4], 1

// kernel: tpu_custom_call.1
$region0: #{tpu_custom_call.1}
  #allocation0 [shape = 'u32[]', space=smem, size = 0x4, offset = 0x4, fixed_abs, tag = 'smem constant byte address 0x4 - core index']
  #allocation1 [shape = 'u32[144,128]{1,0:T(1,128)}', space=vmem, size = 0x12000, scoped, tag = 'internal scratch']
  #allocation2 [shape = 'f32[1,1]{1,0:T(1,128)S(1)}', space=vmem, size = 0x200, scoped, tag = 'scoped memory for tpu_custom_call.1']
  %s0 = inlined_call_operand.vmem [shape: bf16[512,8], index: 0, kind: input, shape index: {}]
  %s1 = inlined_call_operand.vmem [shape: bf16[256,512], index: 1, kind: input, shape index: {}]
  %s2 = inlined_call_operand.vmem [shape: f32[256,1], index: 2, kind: input, shape index: {}]
  %s3 = inlined_call_operand.vmem [shape: f32[16,256], index: 3, kind: input, shape index: {}]
  %s4 = inlined_call_operand.vmem [shape: f32[64,16], index: 4, kind: input, shape index: {}]
  %s5 = inlined_call_operand.vmem [shape: f32[64,1], index: 5, kind: input, shape index: {}]
  %s6 = inlined_call_operand.vmem [shape: f32[32,64], index: 6, kind: input, shape index: {}]
  %s7 = inlined_call_operand.vmem [shape: f32[32,1], index: 7, kind: input, shape index: {}]
  %s8 = inlined_call_operand.vmem [shape: f32[32,1], index: 8, kind: input, shape index: {}]
  %s9 = inlined_call_operand.<no memory space> [shape: f32[1,1], index: 9, kind: input, shape index: {}]
  %s10 = inlined_call_operand.hbm [shape: f32[1,8], index: 10, kind: output, shape index: {}]
  %s11 = sld [smem:[#allocation0]]
  $region50: #{tpu_custom_call.1} parent=0
    _
  %s13 = ssub.s32 1, %s11
  %s14 = scalar_select 0, %s13, %s11
  %v15 = vstv %s9
  %16 = vst [vmem:[#allocation2] sm:$0x1] %v15
  $region1: #{tpu_custom_call.1} parent=0
    #allocation3 [shape = 'u8[512]{0}', space=vmem, size = 0x400, scoped, tag = 'output window, operand 0, single buffered']
    #allocation4 [shape = 's32[1]{0}', space=sflag, size = 0x4, scoped, tag = 'scoped memory for tpu_custom_call.1']
    %17 = vsyncpa [#allocation4], 0
    // Predicated region
    $region2: #{tpu_custom_call.1} parent=1 // pred_check
      _
    $region3: #{tpu_custom_call.1} parent=1 // pred_check_branch
      %19 = sbr.rel (0) target = $region5
    $region4: #{tpu_custom_call.1} parent=1 // pred_region
      _
    $region5: #{tpu_custom_call.1} parent=1 // pred_fallthru
      _
    // Predicated region
    $region6: #{tpu_custom_call.1} parent=1 // pred_check
      _
    $region7: #{tpu_custom_call.1} parent=1 // pred_check_branch
      %21 = sbr.rel (0) target = $region9
    $region8: #{tpu_custom_call.1} parent=1 // pred_region
      _
    $region9: #{tpu_custom_call.1} parent=1 // pred_fallthru
      _
    // Predicated region
    $region10: #{tpu_custom_call.1} parent=1 // pred_check
      _
    $region11: #{tpu_custom_call.1} parent=1 // pred_check_branch
      %23 = sbr.rel (0) target = $region13
    $region12: #{tpu_custom_call.1} parent=1 // pred_region
      _
    $region13: #{tpu_custom_call.1} parent=1 // pred_fallthru
      _
    // Predicated region
    $region14: #{tpu_custom_call.1} parent=1 // pred_check
      _
    $region15: #{tpu_custom_call.1} parent=1 // pred_check_branch
      %25 = sbr.rel (0) target = $region17
    $region16: #{tpu_custom_call.1} parent=1 // pred_region
      _
    $region17: #{tpu_custom_call.1} parent=1 // pred_fallthru
      _
    // Predicated region
    $region18: #{tpu_custom_call.1} parent=1 // pred_check
      _
    $region19: #{tpu_custom_call.1} parent=1 // pred_check_branch
      %27 = sbr.rel (0) target = $region21
    $region20: #{tpu_custom_call.1} parent=1 // pred_region
      _
    $region21: #{tpu_custom_call.1} parent=1 // pred_fallthru
      _
    // Predicated region
    $region22: #{tpu_custom_call.1} parent=1 // pred_check
      _
    $region23: #{tpu_custom_call.1} parent=1 // pred_check_branch
      %29 = sbr.rel (0) target = $region25
    $region24: #{tpu_custom_call.1} parent=1 // pred_region
      _
    $region25: #{tpu_custom_call.1} parent=1 // pred_fallthru
      _
    // Predicated region
    $region26: #{tpu_custom_call.1} parent=1 // pred_check
      _
    $region27: #{tpu_custom_call.1} parent=1 // pred_check_branch
      %31 = sbr.rel (0) target = $region29
    $region28: #{tpu_custom_call.1} parent=1 // pred_region
      _
    $region29: #{tpu_custom_call.1} parent=1 // pred_fallthru
      _
    // Predicated region
    $region30: #{tpu_custom_call.1} parent=1 // pred_check
      _
    $region31: #{tpu_custom_call.1} parent=1 // pred_check_branch
      %33 = sbr.rel (0) target = $region33
    $region32: #{tpu_custom_call.1} parent=1 // pred_region
      _
    $region33: #{tpu_custom_call.1} parent=1 // pred_fallthru
      _
    // Predicated region
    $region34: #{tpu_custom_call.1} parent=1 // pred_check
      _
    $region35: #{tpu_custom_call.1} parent=1 // pred_check_branch
      %35 = sbr.rel (0) target = $region37
    $region36: #{tpu_custom_call.1} parent=1 // pred_region
      _
    $region37: #{tpu_custom_call.1} parent=1 // pred_fallthru
      _
    // Predicated region
    $region38: #{tpu_custom_call.1} parent=1 // pred_check
      _
    $region39: #{tpu_custom_call.1} parent=1 // pred_check_branch
      %37 = sbr.rel (0) target = $region41
    $region40: #{tpu_custom_call.1} parent=1 // pred_region
      _
    $region41: #{tpu_custom_call.1} parent=1 // pred_fallthru
      _
    %v39 = vld [vmem:[%s1] sm:$0xff]
    %v40 = vld [vmem:[%s1 + $0x8] sm:$0xff]
    %v41 = vld [vmem:[%s1 + $0x10] sm:$0xff]
    %v42 = vld [vmem:[%s1 + $0x18] sm:$0xff]
    %v43 = vld [vmem:[%s1 + $0x20] sm:$0xff]
    %v44 = vld [vmem:[%s1 + $0x28] sm:$0xff]
    %v45 = vld [vmem:[%s1 + $0x30] sm:$0xff]
    %v46 = vld [vmem:[%s1 + $0x38] sm:$0xff]
    %v47 = vld [vmem:[%s1 + $0x40] sm:$0xff]
    %v48 = vld [vmem:[%s1 + $0x48] sm:$0xff]
    %v49 = vld [vmem:[%s1 + $0x50] sm:$0xff]
    %v50 = vld [vmem:[%s1 + $0x58] sm:$0xff]
    %v51 = vld [vmem:[%s1 + $0x60] sm:$0xff]
    %v52 = vld [vmem:[%s1 + $0x68] sm:$0xff]
    %v53 = vld [vmem:[%s1 + $0x70] sm:$0xff]
    %v54 = vld [vmem:[%s1 + $0x78] sm:$0xff]
    %v55 = vld [vmem:[%s1 + $0x80] sm:$0xff]
    %v56 = vld [vmem:[%s1 + $0x88] sm:$0xff]
    %v57 = vld [vmem:[%s1 + $0x90] sm:$0xff]
    %v58 = vld [vmem:[%s1 + $0x98] sm:$0xff]
    %v59 = vld [vmem:[%s1 + $0xa0] sm:$0xff]
    %v60 = vld [vmem:[%s1 + $0xa8] sm:$0xff]
    %v61 = vld [vmem:[%s1 + $0xb0] sm:$0xff]
    %v62 = vld [vmem:[%s1 + $0xb8] sm:$0xff]
    %v63 = vld [vmem:[%s1 + $0xc0] sm:$0xff]
    %v64 = vld [vmem:[%s1 + $0xc8] sm:$0xff]
    %v65 = vld [vmem:[%s1 + $0xd0] sm:$0xff]
    %v66 = vld [vmem:[%s1 + $0xd8] sm:$0xff]
    %v67 = vld [vmem:[%s1 + $0xe0] sm:$0xff]
    %v68 = vld [vmem:[%s1 + $0xe8] sm:$0xff]
    %v69 = vld [vmem:[%s1 + $0xf0] sm:$0xff]
    %v70 = vld [vmem:[%s1 + $0xf8] sm:$0xff]
    %v71 = vld [vmem:[%s1 + $0x100] sm:$0xff]
    %v72 = vld [vmem:[%s1 + $0x108] sm:$0xff]
    %v73 = vld [vmem:[%s1 + $0x110] sm:$0xff]
    %v74 = vld [vmem:[%s1 + $0x118] sm:$0xff]
    %v75 = vld [vmem:[%s1 + $0x120] sm:$0xff]
    %v76 = vld [vmem:[%s1 + $0x128] sm:$0xff]
    %v77 = vld [vmem:[%s1 + $0x130] sm:$0xff]
    %v78 = vld [vmem:[%s1 + $0x138] sm:$0xff]
    %v79 = vld [vmem:[%s1 + $0x140] sm:$0xff]
    %v80 = vld [vmem:[%s1 + $0x148] sm:$0xff]
    %v81 = vld [vmem:[%s1 + $0x150] sm:$0xff]
    %v82 = vld [vmem:[%s1 + $0x158] sm:$0xff]
    %v83 = vld [vmem:[%s1 + $0x160] sm:$0xff]
    %v84 = vld [vmem:[%s1 + $0x168] sm:$0xff]
    %v85 = vld [vmem:[%s1 + $0x170] sm:$0xff]
    %v86 = vld [vmem:[%s1 + $0x178] sm:$0xff]
    %v87 = vld [vmem:[%s1 + $0x180] sm:$0xff]
    %v88 = vld [vmem:[%s1 + $0x188] sm:$0xff]
    %v89 = vld [vmem:[%s1 + $0x190] sm:$0xff]
    %v90 = vld [vmem:[%s1 + $0x198] sm:$0xff]
    %v91 = vld [vmem:[%s1 + $0x1a0] sm:$0xff]
    %v92 = vld [vmem:[%s1 + $0x1a8] sm:$0xff]
    %v93 = vld [vmem:[%s1 + $0x1b0] sm:$0xff]
    %v94 = vld [vmem:[%s1 + $0x1b8] sm:$0xff]
    %v95 = vld [vmem:[%s1 + $0x1c0] sm:$0xff]
    %v96 = vld [vmem:[%s1 + $0x1c8] sm:$0xff]
    %v97 = vld [vmem:[%s1 + $0x1d0] sm:$0xff]
    %v98 = vld [vmem:[%s1 + $0x1d8] sm:$0xff]
    %v99 = vld [vmem:[%s1 + $0x1e0] sm:$0xff]
    %v100 = vld [vmem:[%s1 + $0x1e8] sm:$0xff]
    %v101 = vld [vmem:[%s1 + $0x1f0] sm:$0xff]
    %v102 = vld [vmem:[%s1 + $0x1f8] sm:$0xff]
    %v103 = vld [vmem:[%s0] sm:$0xf]
    %v104 = vld [vmem:[%s0 + $0x4] sm:$0xf]
    %v105 = vld [vmem:[%s0 + $0x8] sm:$0xf]
    %v106 = vld [vmem:[%s0 + $0xc] sm:$0xf]
    %v107 = vld [vmem:[%s0 + $0x10] sm:$0xf]
    %v108 = vld [vmem:[%s0 + $0x14] sm:$0xf]
    %v109 = vld [vmem:[%s0 + $0x18] sm:$0xf]
    %v110 = vld [vmem:[%s0 + $0x1c] sm:$0xf]
    %v111 = vld [vmem:[%s0 + $0x20] sm:$0xf]
    %v112 = vld [vmem:[%s0 + $0x24] sm:$0xf]
    %v113 = vld [vmem:[%s0 + $0x28] sm:$0xf]
    %v114 = vld [vmem:[%s0 + $0x2c] sm:$0xf]
    %v115 = vld [vmem:[%s0 + $0x30] sm:$0xf]
    %v116 = vld [vmem:[%s0 + $0x34] sm:$0xf]
    %v117 = vld [vmem:[%s0 + $0x38] sm:$0xf]
    %v118 = vld [vmem:[%s0 + $0x3c] sm:$0xf]
    %v119 = vld [vmem:[%s0 + $0x40] sm:$0xf]
    %v120 = vld [vmem:[%s0 + $0x44] sm:$0xf]
    %v121 = vld [vmem:[%s0 + $0x48] sm:$0xf]
    %v122 = vld [vmem:[%s0 + $0x4c] sm:$0xf]
    %v123 = vld [vmem:[%s0 + $0x50] sm:$0xf]
    %v124 = vld [vmem:[%s0 + $0x54] sm:$0xf]
    %v125 = vld [vmem:[%s0 + $0x58] sm:$0xf]
    %v126 = vld [vmem:[%s0 + $0x5c] sm:$0xf]
    %v127 = vld [vmem:[%s0 + $0x60] sm:$0xf]
    %v128 = vld [vmem:[%s0 + $0x64] sm:$0xf]
    %v129 = vld [vmem:[%s0 + $0x68] sm:$0xf]
    %v130 = vld [vmem:[%s0 + $0x6c] sm:$0xf]
    %v131 = vld [vmem:[%s0 + $0x70] sm:$0xf]
    %v132 = vld [vmem:[%s0 + $0x74] sm:$0xf]
    %v133 = vld [vmem:[%s0 + $0x78] sm:$0xf]
    %v134 = vld [vmem:[%s0 + $0x7c] sm:$0xf]
    %v135 = vld [vmem:[%s0 + $0x80] sm:$0xf]
    %v136 = vld [vmem:[%s0 + $0x84] sm:$0xf]
    %v137 = vld [vmem:[%s0 + $0x88] sm:$0xf]
    %v138 = vld [vmem:[%s0 + $0x8c] sm:$0xf]
    %v139 = vld [vmem:[%s0 + $0x90] sm:$0xf]
    %v140 = vld [vmem:[%s0 + $0x94] sm:$0xf]
    %v141 = vld [vmem:[%s0 + $0x98] sm:$0xf]
    %v142 = vld [vmem:[%s0 + $0x9c] sm:$0xf]
    %v143 = vld [vmem:[%s0 + $0xa0] sm:$0xf]
    %v144 = vld [vmem:[%s0 + $0xa4] sm:$0xf]
    %v145 = vld [vmem:[%s0 + $0xa8] sm:$0xf]
    %v146 = vld [vmem:[%s0 + $0xac] sm:$0xf]
    %v147 = vld [vmem:[%s0 + $0xb0] sm:$0xf]
    %v148 = vld [vmem:[%s0 + $0xb4] sm:$0xf]
    %v149 = vld [vmem:[%s0 + $0xb8] sm:$0xf]
    %v150 = vld [vmem:[%s0 + $0xbc] sm:$0xf]
    %v151 = vld [vmem:[%s0 + $0xc0] sm:$0xf]
    %v152 = vld [vmem:[%s0 + $0xc4] sm:$0xf]
    %v153 = vld [vmem:[%s0 + $0xc8] sm:$0xf]
    %v154 = vld [vmem:[%s0 + $0xcc] sm:$0xf]
    %v155 = vld [vmem:[%s0 + $0xd0] sm:$0xf]
    %v156 = vld [vmem:[%s0 + $0xd4] sm:$0xf]
    %v157 = vld [vmem:[%s0 + $0xd8] sm:$0xf]
    %v158 = vld [vmem:[%s0 + $0xdc] sm:$0xf]
    %v159 = vld [vmem:[%s0 + $0xe0] sm:$0xf]
    %v160 = vld [vmem:[%s0 + $0xe4] sm:$0xf]
    %v161 = vld [vmem:[%s0 + $0xe8] sm:$0xf]
    %v162 = vld [vmem:[%s0 + $0xec] sm:$0xf]
    %v163 = vld [vmem:[%s0 + $0xf0] sm:$0xf]
    %v164 = vld [vmem:[%s0 + $0xf4] sm:$0xf]
    %v165 = vld [vmem:[%s0 + $0xf8] sm:$0xf]
    %v166 = vld [vmem:[%s0 + $0xfc] sm:$0xf]
    %v167 = vld [vmem:[%s2] sm:$0xff]
    %v168 = vld [vmem:[%s2 + $0x8] sm:$0xff]
    %v169 = vld [vmem:[%s2 + $0x10] sm:$0xff]
    %v170 = vld [vmem:[%s2 + $0x18] sm:$0xff]
    %v171 = vld [vmem:[%s2 + $0x20] sm:$0xff]
    %v172 = vld [vmem:[%s2 + $0x28] sm:$0xff]
    %v173 = vld [vmem:[%s2 + $0x30] sm:$0xff]
    %v174 = vld [vmem:[%s2 + $0x38] sm:$0xff]
    %v175 = vld [vmem:[%s2 + $0x40] sm:$0xff]
    %v176 = vld [vmem:[%s2 + $0x48] sm:$0xff]
    %v177 = vld [vmem:[%s2 + $0x50] sm:$0xff]
    %v178 = vld [vmem:[%s2 + $0x58] sm:$0xff]
    %v179 = vld [vmem:[%s2 + $0x60] sm:$0xff]
    %v180 = vld [vmem:[%s2 + $0x68] sm:$0xff]
    %v181 = vld [vmem:[%s2 + $0x70] sm:$0xff]
    %v182 = vld [vmem:[%s2 + $0x78] sm:$0xff]
    %v183 = vld [vmem:[%s2 + $0x80] sm:$0xff]
    %v184 = vld [vmem:[%s2 + $0x88] sm:$0xff]
    %v185 = vld [vmem:[%s2 + $0x90] sm:$0xff]
    %v186 = vld [vmem:[%s2 + $0x98] sm:$0xff]
    %v187 = vld [vmem:[%s2 + $0xa0] sm:$0xff]
    %v188 = vld [vmem:[%s2 + $0xa8] sm:$0xff]
    %v189 = vld [vmem:[%s2 + $0xb0] sm:$0xff]
    %v190 = vld [vmem:[%s2 + $0xb8] sm:$0xff]
    %v191 = vld [vmem:[%s2 + $0xc0] sm:$0xff]
    %v192 = vld [vmem:[%s2 + $0xc8] sm:$0xff]
    %v193 = vld [vmem:[%s2 + $0xd0] sm:$0xff]
    %v194 = vld [vmem:[%s2 + $0xd8] sm:$0xff]
    %v195 = vld [vmem:[%s2 + $0xe0] sm:$0xff]
    %v196 = vld [vmem:[%s2 + $0xe8] sm:$0xff]
    %v197 = vld [vmem:[%s2 + $0xf0] sm:$0xff]
    %v198 = vld [vmem:[%s2 + $0xf8] sm:$0xff]
    %200 = vset.pattern.permute.xlu0 0
    %201 = vperm.xlu0 %200, %v167
    %v202 = vpop.permute.xlu0 %201
    %205 = vset.pattern.permute.xlu0 0
    %206 = vperm.xlu0 %205, %v168
    %v207 = vpop.permute.xlu0 %206
    %210 = vset.pattern.permute.xlu0 0
    %211 = vperm.xlu0 %210, %v169
    %v212 = vpop.permute.xlu0 %211
    %215 = vset.pattern.permute.xlu0 0
    %216 = vperm.xlu0 %215, %v170
    %v217 = vpop.permute.xlu0 %216
    %220 = vset.pattern.permute.xlu0 0
    %221 = vperm.xlu0 %220, %v171
    %v222 = vpop.permute.xlu0 %221
    %225 = vset.pattern.permute.xlu0 0
    %226 = vperm.xlu0 %225, %v172
    %v227 = vpop.permute.xlu0 %226
    %230 = vset.pattern.permute.xlu0 0
    %231 = vperm.xlu0 %230, %v173
    %v232 = vpop.permute.xlu0 %231
    %235 = vset.pattern.permute.xlu0 0
    %236 = vperm.xlu0 %235, %v174
    %v237 = vpop.permute.xlu0 %236
    %240 = vset.pattern.permute.xlu0 0
    %241 = vperm.xlu0 %240, %v175
    %v242 = vpop.permute.xlu0 %241
    %245 = vset.pattern.permute.xlu0 0
    %246 = vperm.xlu0 %245, %v176
    %v247 = vpop.permute.xlu0 %246
    %250 = vset.pattern.permute.xlu0 0
    %251 = vperm.xlu0 %250, %v177
    %v252 = vpop.permute.xlu0 %251
    %255 = vset.pattern.permute.xlu0 0
    %256 = vperm.xlu0 %255, %v178
    %v257 = vpop.permute.xlu0 %256
    %260 = vset.pattern.permute.xlu0 0
    %261 = vperm.xlu0 %260, %v179
    %v262 = vpop.permute.xlu0 %261
    %265 = vset.pattern.permute.xlu0 0
    %266 = vperm.xlu0 %265, %v180
    %v267 = vpop.permute.xlu0 %266
    %270 = vset.pattern.permute.xlu0 0
    %271 = vperm.xlu0 %270, %v181
    %v272 = vpop.permute.xlu0 %271
    %275 = vset.pattern.permute.xlu0 0
    %276 = vperm.xlu0 %275, %v182
    %v277 = vpop.permute.xlu0 %276
    %280 = vset.pattern.permute.xlu0 0
    %281 = vperm.xlu0 %280, %v183
    %v282 = vpop.permute.xlu0 %281
    %285 = vset.pattern.permute.xlu0 0
    %286 = vperm.xlu0 %285, %v184
    %v287 = vpop.permute.xlu0 %286
    %290 = vset.pattern.permute.xlu0 0
    %291 = vperm.xlu0 %290, %v185
    %v292 = vpop.permute.xlu0 %291
    %295 = vset.pattern.permute.xlu0 0
    %296 = vperm.xlu0 %295, %v186
    %v297 = vpop.permute.xlu0 %296
    %300 = vset.pattern.permute.xlu0 0
    %301 = vperm.xlu0 %300, %v187
    %v302 = vpop.permute.xlu0 %301
    %305 = vset.pattern.permute.xlu0 0
    %306 = vperm.xlu0 %305, %v188
    %v307 = vpop.permute.xlu0 %306
    %310 = vset.pattern.permute.xlu0 0
    %311 = vperm.xlu0 %310, %v189
    %v312 = vpop.permute.xlu0 %311
    %315 = vset.pattern.permute.xlu0 0
    %316 = vperm.xlu0 %315, %v190
    %v317 = vpop.permute.xlu0 %316
    %320 = vset.pattern.permute.xlu0 0
    %321 = vperm.xlu0 %320, %v191
    %v322 = vpop.permute.xlu0 %321
    %325 = vset.pattern.permute.xlu0 0
    %326 = vperm.xlu0 %325, %v192
    %v327 = vpop.permute.xlu0 %326
    %330 = vset.pattern.permute.xlu0 0
    %331 = vperm.xlu0 %330, %v193
    %v332 = vpop.permute.xlu0 %331
    %335 = vset.pattern.permute.xlu0 0
    %336 = vperm.xlu0 %335, %v194
    %v337 = vpop.permute.xlu0 %336
    %340 = vset.pattern.permute.xlu0 0
    %341 = vperm.xlu0 %340, %v195
    %v342 = vpop.permute.xlu0 %341
    %345 = vset.pattern.permute.xlu0 0
    %346 = vperm.xlu0 %345, %v196
    %v347 = vpop.permute.xlu0 %346
    %350 = vset.pattern.permute.xlu0 0
    %351 = vperm.xlu0 %350, %v197
    %v352 = vpop.permute.xlu0 %351
    %355 = vset.pattern.permute.xlu0 0
    %356 = vperm.xlu0 %355, %v198
    %v357 = vpop.permute.xlu0 %356
    %v423 = vunpack.c.l.b16 %v39
    %v424 = vunpack.c.h.b16 %v39
    %v425 = vunpack.c.l.b16 %v40
    %v426 = vunpack.c.h.b16 %v40
    %v427 = vunpack.c.l.b16 %v41
    %v428 = vunpack.c.h.b16 %v41
    %v429 = vunpack.c.l.b16 %v42
    %v430 = vunpack.c.h.b16 %v42
    %v431 = vunpack.c.l.b16 %v43
    %v432 = vunpack.c.h.b16 %v43
    %v433 = vunpack.c.l.b16 %v44
    %v434 = vunpack.c.h.b16 %v44
    %v435 = vunpack.c.l.b16 %v45
    %v436 = vunpack.c.h.b16 %v45
    %v437 = vunpack.c.l.b16 %v46
    %v438 = vunpack.c.h.b16 %v46
    %v439 = vunpack.c.l.b16 %v47
    %v440 = vunpack.c.h.b16 %v47
    %v441 = vunpack.c.l.b16 %v48
    %v442 = vunpack.c.h.b16 %v48
    %v443 = vunpack.c.l.b16 %v49
    %v444 = vunpack.c.h.b16 %v49
    %v445 = vunpack.c.l.b16 %v50
    %v446 = vunpack.c.h.b16 %v50
    %v447 = vunpack.c.l.b16 %v51
    %v448 = vunpack.c.h.b16 %v51
    %v449 = vunpack.c.l.b16 %v52
    %v450 = vunpack.c.h.b16 %v52
    %v451 = vunpack.c.l.b16 %v53
    %v452 = vunpack.c.h.b16 %v53
    %v453 = vunpack.c.l.b16 %v54
    %v454 = vunpack.c.h.b16 %v54
    %v455 = vunpack.c.l.b16 %v55
    %v456 = vunpack.c.h.b16 %v55
    %v457 = vunpack.c.l.b16 %v56
    %v458 = vunpack.c.h.b16 %v56
    %v459 = vunpack.c.l.b16 %v57
    %v460 = vunpack.c.h.b16 %v57
    %v461 = vunpack.c.l.b16 %v58
    %v462 = vunpack.c.h.b16 %v58
    %v463 = vunpack.c.l.b16 %v59
    %v464 = vunpack.c.h.b16 %v59
    %v465 = vunpack.c.l.b16 %v60
    %v466 = vunpack.c.h.b16 %v60
    %v467 = vunpack.c.l.b16 %v61
    %v468 = vunpack.c.h.b16 %v61
    %v469 = vunpack.c.l.b16 %v62
    %v470 = vunpack.c.h.b16 %v62
    %v471 = vunpack.c.l.b16 %v63
    %v472 = vunpack.c.h.b16 %v63
    %v473 = vunpack.c.l.b16 %v64
    %v474 = vunpack.c.h.b16 %v64
    %v475 = vunpack.c.l.b16 %v65
    %v476 = vunpack.c.h.b16 %v65
    %v477 = vunpack.c.l.b16 %v66
    %v478 = vunpack.c.h.b16 %v66
    %v479 = vunpack.c.l.b16 %v67
    %v480 = vunpack.c.h.b16 %v67
    %v481 = vunpack.c.l.b16 %v68
    %v482 = vunpack.c.h.b16 %v68
    %v483 = vunpack.c.l.b16 %v69
    %v484 = vunpack.c.h.b16 %v69
    %v485 = vunpack.c.l.b16 %v70
    %v486 = vunpack.c.h.b16 %v70
    %v487 = vunpack.c.l.b16 %v71
    %v488 = vunpack.c.h.b16 %v71
    %v489 = vunpack.c.l.b16 %v72
    %v490 = vunpack.c.h.b16 %v72
    %v491 = vunpack.c.l.b16 %v73
    %v492 = vunpack.c.h.b16 %v73
    %v493 = vunpack.c.l.b16 %v74
    %v494 = vunpack.c.h.b16 %v74
    %v495 = vunpack.c.l.b16 %v75
    %v496 = vunpack.c.h.b16 %v75
    %v497 = vunpack.c.l.b16 %v76
    %v498 = vunpack.c.h.b16 %v76
    %v499 = vunpack.c.l.b16 %v77
    %v500 = vunpack.c.h.b16 %v77
    %v501 = vunpack.c.l.b16 %v78
    %v502 = vunpack.c.h.b16 %v78
    %v503 = vunpack.c.l.b16 %v79
    %v504 = vunpack.c.h.b16 %v79
    %v505 = vunpack.c.l.b16 %v80
    %v506 = vunpack.c.h.b16 %v80
    %v507 = vunpack.c.l.b16 %v81
    %v508 = vunpack.c.h.b16 %v81
    %v509 = vunpack.c.l.b16 %v82
    %v510 = vunpack.c.h.b16 %v82
    %v511 = vunpack.c.l.b16 %v83
    %v512 = vunpack.c.h.b16 %v83
    %v513 = vunpack.c.l.b16 %v84
    %v514 = vunpack.c.h.b16 %v84
    %v515 = vunpack.c.l.b16 %v85
    %v516 = vunpack.c.h.b16 %v85
    %v517 = vunpack.c.l.b16 %v86
    %v518 = vunpack.c.h.b16 %v86
    %v519 = vunpack.c.l.b16 %v87
    %v520 = vunpack.c.h.b16 %v87
    %v521 = vunpack.c.l.b16 %v88
    %v522 = vunpack.c.h.b16 %v88
    %v523 = vunpack.c.l.b16 %v89
    %v524 = vunpack.c.h.b16 %v89
    %v525 = vunpack.c.l.b16 %v90
    %v526 = vunpack.c.h.b16 %v90
    %v527 = vunpack.c.l.b16 %v91
    %v528 = vunpack.c.h.b16 %v91
    %v529 = vunpack.c.l.b16 %v92
    %v530 = vunpack.c.h.b16 %v92
    %v531 = vunpack.c.l.b16 %v93
    %v532 = vunpack.c.h.b16 %v93
    %v533 = vunpack.c.l.b16 %v94
    %v534 = vunpack.c.h.b16 %v94
    %v535 = vunpack.c.l.b16 %v95
    %v536 = vunpack.c.h.b16 %v95
    %v537 = vunpack.c.l.b16 %v96
    %v538 = vunpack.c.h.b16 %v96
    %v539 = vunpack.c.l.b16 %v97
    %v540 = vunpack.c.h.b16 %v97
    %v541 = vunpack.c.l.b16 %v98
    %v542 = vunpack.c.h.b16 %v98
    %v543 = vunpack.c.l.b16 %v99
    %v544 = vunpack.c.h.b16 %v99
    %v545 = vunpack.c.l.b16 %v100
    %v546 = vunpack.c.h.b16 %v100
    %v547 = vunpack.c.l.b16 %v101
    %v548 = vunpack.c.h.b16 %v101
    %v549 = vunpack.c.l.b16 %v102
    %v550 = vunpack.c.h.b16 %v102
    %v551 = vpack.c.b16 %v427, %v423
    %v552 = vpack.c.b16 %v428, %v424
    %v553 = vpack.c.b16 %v429, %v425
    %v554 = vpack.c.b16 %v430, %v426
    %v555 = vpack.c.b16 %v435, %v431
    %v556 = vpack.c.b16 %v436, %v432
    %v557 = vpack.c.b16 %v437, %v433
    %v558 = vpack.c.b16 %v438, %v434
    %v559 = vpack.c.b16 %v443, %v439
    %v560 = vpack.c.b16 %v444, %v440
    %v561 = vpack.c.b16 %v445, %v441
    %v562 = vpack.c.b16 %v446, %v442
    %v563 = vpack.c.b16 %v451, %v447
    %v564 = vpack.c.b16 %v452, %v448
    %v565 = vpack.c.b16 %v453, %v449
    %v566 = vpack.c.b16 %v454, %v450
    %v567 = vpack.c.b16 %v459, %v455
    %v568 = vpack.c.b16 %v460, %v456
    %v569 = vpack.c.b16 %v461, %v457
    %v570 = vpack.c.b16 %v462, %v458
    %v571 = vpack.c.b16 %v467, %v463
    %v572 = vpack.c.b16 %v468, %v464
    %v573 = vpack.c.b16 %v469, %v465
    %v574 = vpack.c.b16 %v470, %v466
    %v575 = vpack.c.b16 %v475, %v471
    %v576 = vpack.c.b16 %v476, %v472
    %v577 = vpack.c.b16 %v477, %v473
    %v578 = vpack.c.b16 %v478, %v474
    %v579 = vpack.c.b16 %v483, %v479
    %v580 = vpack.c.b16 %v484, %v480
    %v581 = vpack.c.b16 %v485, %v481
    %v582 = vpack.c.b16 %v486, %v482
    %v583 = vpack.c.b16 %v491, %v487
    %v584 = vpack.c.b16 %v492, %v488
    %v585 = vpack.c.b16 %v493, %v489
    %v586 = vpack.c.b16 %v494, %v490
    %v587 = vpack.c.b16 %v499, %v495
    %v588 = vpack.c.b16 %v500, %v496
    %v589 = vpack.c.b16 %v501, %v497
    %v590 = vpack.c.b16 %v502, %v498
    %v591 = vpack.c.b16 %v507, %v503
    %v592 = vpack.c.b16 %v508, %v504
    %v593 = vpack.c.b16 %v509, %v505
    %v594 = vpack.c.b16 %v510, %v506
    %v595 = vpack.c.b16 %v515, %v511
    %v596 = vpack.c.b16 %v516, %v512
    %v597 = vpack.c.b16 %v517, %v513
    %v598 = vpack.c.b16 %v518, %v514
    %v599 = vpack.c.b16 %v523, %v519
    %v600 = vpack.c.b16 %v524, %v520
    %v601 = vpack.c.b16 %v525, %v521
    %v602 = vpack.c.b16 %v526, %v522
    %v603 = vpack.c.b16 %v531, %v527
    %v604 = vpack.c.b16 %v532, %v528
    %v605 = vpack.c.b16 %v533, %v529
    %v606 = vpack.c.b16 %v534, %v530
    %v607 = vpack.c.b16 %v539, %v535
    %v608 = vpack.c.b16 %v540, %v536
    %v609 = vpack.c.b16 %v541, %v537
    %v610 = vpack.c.b16 %v542, %v538
    %v611 = vpack.c.b16 %v547, %v543
    %v612 = vpack.c.b16 %v548, %v544
    %v613 = vpack.c.b16 %v549, %v545
    %v614 = vpack.c.b16 %v550, %v546
    %v743 = vunpack.c.l.b16 %v103
    %v744 = vunpack.c.l.b16 %v104
    %v745 = vunpack.c.l.b16 %v105
    %v746 = vunpack.c.l.b16 %v106
    %v747 = vunpack.c.l.b16 %v107
    %v748 = vunpack.c.l.b16 %v108
    %v749 = vunpack.c.l.b16 %v109
    %v750 = vunpack.c.l.b16 %v110
    %v751 = vunpack.c.l.b16 %v111
    %v752 = vunpack.c.l.b16 %v112
    %v753 = vunpack.c.l.b16 %v113
    %v754 = vunpack.c.l.b16 %v114
    %v755 = vunpack.c.l.b16 %v115
    %v756 = vunpack.c.l.b16 %v116
    %v757 = vunpack.c.l.b16 %v117
    %v758 = vunpack.c.l.b16 %v118
    %v759 = vunpack.c.l.b16 %v119
    %v760 = vunpack.c.l.b16 %v120
    %v761 = vunpack.c.l.b16 %v121
    %v762 = vunpack.c.l.b16 %v122
    %v763 = vunpack.c.l.b16 %v123
    %v764 = vunpack.c.l.b16 %v124
    %v765 = vunpack.c.l.b16 %v125
    %v766 = vunpack.c.l.b16 %v126
    %v767 = vunpack.c.l.b16 %v127
    %v768 = vunpack.c.l.b16 %v128
    %v769 = vunpack.c.l.b16 %v129
    %v770 = vunpack.c.l.b16 %v130
    %v771 = vunpack.c.l.b16 %v131
    %v772 = vunpack.c.l.b16 %v132
    %v773 = vunpack.c.l.b16 %v133
    %v774 = vunpack.c.l.b16 %v134
    %v775 = vunpack.c.l.b16 %v135
    %v776 = vunpack.c.l.b16 %v136
    %v777 = vunpack.c.l.b16 %v137
    %v778 = vunpack.c.l.b16 %v138
    %v779 = vunpack.c.l.b16 %v139
    %v780 = vunpack.c.l.b16 %v140
    %v781 = vunpack.c.l.b16 %v141
    %v782 = vunpack.c.l.b16 %v142
    %v783 = vunpack.c.l.b16 %v143
    %v784 = vunpack.c.l.b16 %v144
    %v785 = vunpack.c.l.b16 %v145
    %v786 = vunpack.c.l.b16 %v146
    %v787 = vunpack.c.l.b16 %v147
    %v788 = vunpack.c.l.b16 %v148
    %v789 = vunpack.c.l.b16 %v149
    %v790 = vunpack.c.l.b16 %v150
    %v791 = vunpack.c.l.b16 %v151
    %v792 = vunpack.c.l.b16 %v152
    %v793 = vunpack.c.l.b16 %v153
    %v794 = vunpack.c.l.b16 %v154
    %v795 = vunpack.c.l.b16 %v155
    %v796 = vunpack.c.l.b16 %v156
    %v797 = vunpack.c.l.b16 %v157
    %v798 = vunpack.c.l.b16 %v158
    %v799 = vunpack.c.l.b16 %v159
    %v800 = vunpack.c.l.b16 %v160
    %v801 = vunpack.c.l.b16 %v161
    %v802 = vunpack.c.l.b16 %v162
    %v803 = vunpack.c.l.b16 %v163
    %v804 = vunpack.c.l.b16 %v164
    %v805 = vunpack.c.l.b16 %v165
    %v806 = vunpack.c.l.b16 %v166
    %v807 = vpack.c.b16 %v744, %v743
    %v808 = vpack.c.b16 %v746, %v745
    %v809 = vpack.c.b16 %v748, %v747
    %v810 = vpack.c.b16 %v750, %v749
    %v811 = vpack.c.b16 %v752, %v751
    %v812 = vpack.c.b16 %v754, %v753
    %v813 = vpack.c.b16 %v756, %v755
    %v814 = vpack.c.b16 %v758, %v757
    %v815 = vpack.c.b16 %v760, %v759
    %v816 = vpack.c.b16 %v762, %v761
    %v817 = vpack.c.b16 %v764, %v763
    %v818 = vpack.c.b16 %v766, %v765
    %v819 = vpack.c.b16 %v768, %v767
    %v820 = vpack.c.b16 %v770, %v769
    %v821 = vpack.c.b16 %v772, %v771
    %v822 = vpack.c.b16 %v774, %v773
    %v823 = vpack.c.b16 %v776, %v775
    %v824 = vpack.c.b16 %v778, %v777
    %v825 = vpack.c.b16 %v780, %v779
    %v826 = vpack.c.b16 %v782, %v781
    %v827 = vpack.c.b16 %v784, %v783
    %v828 = vpack.c.b16 %v786, %v785
    %v829 = vpack.c.b16 %v788, %v787
    %v830 = vpack.c.b16 %v790, %v789
    %v831 = vpack.c.b16 %v792, %v791
    %v832 = vpack.c.b16 %v794, %v793
    %v833 = vpack.c.b16 %v796, %v795
    %v834 = vpack.c.b16 %v798, %v797
    %v835 = vpack.c.b16 %v800, %v799
    %v836 = vpack.c.b16 %v802, %v801
    %v837 = vpack.c.b16 %v804, %v803
    %v838 = vpack.c.b16 %v806, %v805
    %871 = vmatprep.subr.bf16.mxu0 0
    %872 = vmatpush1.bf16.msra.mxu0 %v814
    %873 = vmatprep.subr.bf16.mxu0 0
    %874 = vmatpush1.bf16.msra.mxu0 %v813
    %875 = vmatprep.subr.bf16.mxu0 0
    %876 = vmatpush1.bf16.msra.mxu0 %v812
    %877 = vmatprep.subr.bf16.mxu0 0
    %878 = vmatpush1.bf16.msra.mxu0 %v811
    %879 = vmatprep.subr.bf16.mxu0 0
    %880 = vmatpush1.bf16.msra.mxu0 %v810
    %881 = vmatprep.subr.bf16.mxu0 0
    %882 = vmatpush1.bf16.msra.mxu0 %v809
    %883 = vmatprep.subr.bf16.mxu0 0
    %884 = vmatpush1.bf16.msra.mxu0 %v808
    %885 = vmatprep.subr.bf16.mxu0 0
    %886 = vmatpush1.bf16.msra.mxu0 %v807
    %887 = vmatprep.subr.bf16.mxu0 0
    %888 = vmatpush2.bf16.msra.mxu0 %v822
    %889 = vmatprep.subr.bf16.mxu0 0
    %890 = vmatpush2.bf16.msra.mxu0 %v821
    %891 = vmatprep.subr.bf16.mxu0 0
    %892 = vmatpush2.bf16.msra.mxu0 %v820
    %893 = vmatprep.subr.bf16.mxu0 0
    %894 = vmatpush2.bf16.msra.mxu0 %v819
    %895 = vmatprep.subr.bf16.mxu0 0
    %896 = vmatpush2.bf16.msra.mxu0 %v818
    %897 = vmatprep.subr.bf16.mxu0 0
    %898 = vmatpush2.bf16.msra.mxu0 %v817
    %899 = vmatprep.subr.bf16.mxu0 0
    %900 = vmatpush2.bf16.msra.mxu0 %v816
    %901 = vmatprep.subr.bf16.mxu0 0
    %902 = vmatpush2.bf16.msra.mxu0 %v815
    %903 = vmatprep.mubr.bf16.mxu0 %v552
    %904 = vmatmul.mubr.bf16.gmra.mxu0 %v551
    %v905 = vpop.f32.mrf.mxu0
    %v906 = vadd.f32 %v202, %v905
    %v907 = vpop.f32.mrf.mxu0
    %v908 = vpop.f32.mrf.mxu0
    %v909 = vadd.f32 %v207, %v908
    %v910 = vpop.f32.mrf.mxu0
    %911 = vmatprep.mubr.bf16.mxu0 %v556
    %912 = vmatmul.mubr.bf16.gmra.mxu0 %v555
    %v913 = vpop.f32.mrf.mxu0
    %v914 = vadd.f32 %v212, %v913
    %v915 = vpop.f32.mrf.mxu0
    %v916 = vpop.f32.mrf.mxu0
    %v917 = vadd.f32 %v217, %v916
    %v918 = vpop.f32.mrf.mxu0
    %919 = vmatprep.mubr.bf16.mxu0 %v560
    %920 = vmatmul.mubr.bf16.gmra.mxu0 %v559
    %v921 = vpop.f32.mrf.mxu0
    %v922 = vadd.f32 %v222, %v921
    %v923 = vpop.f32.mrf.mxu0
    %v924 = vpop.f32.mrf.mxu0
    %v925 = vadd.f32 %v227, %v924
    %v926 = vpop.f32.mrf.mxu0
    %927 = vmatprep.mubr.bf16.mxu0 %v564
    %928 = vmatmul.mubr.bf16.gmra.mxu0 %v563
    %v929 = vpop.f32.mrf.mxu0
    %v930 = vadd.f32 %v232, %v929
    %v931 = vpop.f32.mrf.mxu0
    %v932 = vpop.f32.mrf.mxu0
    %v933 = vadd.f32 %v237, %v932
    %v934 = vpop.f32.mrf.mxu0
    %935 = vmatprep.mubr.bf16.mxu0 %v568
    %936 = vmatmul.mubr.bf16.gmra.mxu0 %v567
    %v937 = vpop.f32.mrf.mxu0
    %v938 = vadd.f32 %v242, %v937
    %v939 = vpop.f32.mrf.mxu0
    %v940 = vpop.f32.mrf.mxu0
    %v941 = vadd.f32 %v247, %v940
    %v942 = vpop.f32.mrf.mxu0
    %943 = vmatprep.mubr.bf16.mxu0 %v572
    %944 = vmatmul.mubr.bf16.gmra.mxu0 %v571
    %v945 = vpop.f32.mrf.mxu0
    %v946 = vadd.f32 %v252, %v945
    %v947 = vpop.f32.mrf.mxu0
    %v948 = vpop.f32.mrf.mxu0
    %v949 = vadd.f32 %v257, %v948
    %v950 = vpop.f32.mrf.mxu0
    %951 = vmatprep.mubr.bf16.mxu0 %v576
    %952 = vmatmul.mubr.bf16.gmra.mxu0 %v575
    %v953 = vpop.f32.mrf.mxu0
    %v954 = vadd.f32 %v262, %v953
    %v955 = vpop.f32.mrf.mxu0
    %v956 = vpop.f32.mrf.mxu0
    %v957 = vadd.f32 %v267, %v956
    %v958 = vpop.f32.mrf.mxu0
    %959 = vmatprep.mubr.bf16.mxu0 %v580
    %960 = vmatmul.mubr.bf16.gmra.mxu0 %v579
    %v961 = vpop.f32.mrf.mxu0
    %v962 = vadd.f32 %v272, %v961
    %v963 = vpop.f32.mrf.mxu0
    %v964 = vpop.f32.mrf.mxu0
    %v965 = vadd.f32 %v277, %v964
    %v966 = vpop.f32.mrf.mxu0
    %967 = vmatprep.mubr.bf16.mxu0 %v584
    %968 = vmatmul.mubr.bf16.gmra.mxu0 %v583
    %v969 = vpop.f32.mrf.mxu0
    %v970 = vadd.f32 %v282, %v969
    %v971 = vpop.f32.mrf.mxu0
    %v972 = vpop.f32.mrf.mxu0
    %v973 = vadd.f32 %v287, %v972
    %v974 = vpop.f32.mrf.mxu0
    %975 = vmatprep.mubr.bf16.mxu0 %v588
    %976 = vmatmul.mubr.bf16.gmra.mxu0 %v587
    %v977 = vpop.f32.mrf.mxu0
    %v978 = vadd.f32 %v292, %v977
    %v979 = vpop.f32.mrf.mxu0
    %v980 = vpop.f32.mrf.mxu0
    %v981 = vadd.f32 %v297, %v980
    %v982 = vpop.f32.mrf.mxu0
    %983 = vmatprep.mubr.bf16.mxu0 %v592
    %984 = vmatmul.mubr.bf16.gmra.mxu0 %v591
    %v985 = vpop.f32.mrf.mxu0
    %v986 = vadd.f32 %v302, %v985
    %v987 = vpop.f32.mrf.mxu0
    %v988 = vpop.f32.mrf.mxu0
    %v989 = vadd.f32 %v307, %v988
    %v990 = vpop.f32.mrf.mxu0
    %991 = vmatprep.mubr.bf16.mxu0 %v596
    %992 = vmatmul.mubr.bf16.gmra.mxu0 %v595
    %v993 = vpop.f32.mrf.mxu0
    %v994 = vadd.f32 %v312, %v993
    %v995 = vpop.f32.mrf.mxu0
    %v996 = vpop.f32.mrf.mxu0
    %v997 = vadd.f32 %v317, %v996
    %v998 = vpop.f32.mrf.mxu0
    %999 = vmatprep.mubr.bf16.mxu0 %v600
    %1000 = vmatmul.mubr.bf16.gmra.mxu0 %v599
    %v1001 = vpop.f32.mrf.mxu0
    %v1002 = vadd.f32 %v322, %v1001
    %v1003 = vpop.f32.mrf.mxu0
    %v1004 = vpop.f32.mrf.mxu0
    %v1005 = vadd.f32 %v327, %v1004
    %v1006 = vpop.f32.mrf.mxu0
    %1007 = vmatprep.mubr.bf16.mxu0 %v604
    %1008 = vmatmul.mubr.bf16.gmra.mxu0 %v603
    %v1009 = vpop.f32.mrf.mxu0
    %v1010 = vadd.f32 %v332, %v1009
    %v1011 = vpop.f32.mrf.mxu0
    %v1012 = vpop.f32.mrf.mxu0
    %v1013 = vadd.f32 %v337, %v1012
    %v1014 = vpop.f32.mrf.mxu0
    %1015 = vmatprep.mubr.bf16.mxu0 %v608
    %1016 = vmatmul.mubr.bf16.gmra.mxu0 %v607
    %v1017 = vpop.f32.mrf.mxu0
    %v1018 = vadd.f32 %v342, %v1017
    %v1019 = vpop.f32.mrf.mxu0
    %v1020 = vpop.f32.mrf.mxu0
    %v1021 = vadd.f32 %v347, %v1020
    %v1022 = vpop.f32.mrf.mxu0
    %1023 = vmatprep.mubr.bf16.mxu0 %v612
    %1024 = vmatmul.mubr.bf16.gmra.mxu0 %v611
    %v1025 = vpop.f32.mrf.mxu0
    %v1026 = vadd.f32 %v352, %v1025
    %v1027 = vpop.f32.mrf.mxu0
    %v1028 = vpop.f32.mrf.mxu0
    %v1029 = vadd.f32 %v357, %v1028
    %v1030 = vpop.f32.mrf.mxu0
    %1031 = vdwg.mxu0
    %1032 = vmatprep.subr.bf16.mxu0 0
    %1033 = vmatpush1.bf16.msra.mxu0 %v830
    %1034 = vmatprep.subr.bf16.mxu0 0
    %1035 = vmatpush1.bf16.msra.mxu0 %v829
    %1036 = vmatprep.subr.bf16.mxu0 0
    %1037 = vmatpush1.bf16.msra.mxu0 %v828
    %1038 = vmatprep.subr.bf16.mxu0 0
    %1039 = vmatpush1.bf16.msra.mxu0 %v827
    %1040 = vmatprep.subr.bf16.mxu0 0
    %1041 = vmatpush1.bf16.msra.mxu0 %v826
    %1042 = vmatprep.subr.bf16.mxu0 0
    %1043 = vmatpush1.bf16.msra.mxu0 %v825
    %1044 = vmatprep.subr.bf16.mxu0 0
    %1045 = vmatpush1.bf16.msra.mxu0 %v824
    %1046 = vmatprep.subr.bf16.mxu0 0
    %1047 = vmatpush1.bf16.msra.mxu0 %v823
    %1048 = vmatprep.subr.bf16.mxu0 0
    %1049 = vmatpush2.bf16.msra.mxu0 %v838
    %1050 = vmatprep.subr.bf16.mxu0 0
    %1051 = vmatpush2.bf16.msra.mxu0 %v837
    %1052 = vmatprep.subr.bf16.mxu0 0
    %1053 = vmatpush2.bf16.msra.mxu0 %v836
    %1054 = vmatprep.subr.bf16.mxu0 0
    %1055 = vmatpush2.bf16.msra.mxu0 %v835
    %1056 = vmatprep.subr.bf16.mxu0 0
    %1057 = vmatpush2.bf16.msra.mxu0 %v834
    %1058 = vmatprep.subr.bf16.mxu0 0
    %1059 = vmatpush2.bf16.msra.mxu0 %v833
    %1060 = vmatprep.subr.bf16.mxu0 0
    %1061 = vmatpush2.bf16.msra.mxu0 %v832
    %1062 = vmatprep.subr.bf16.mxu0 0
    %1063 = vmatpush2.bf16.msra.mxu0 %v831
    %1064 = vmatprep.mubr.bf16.mxu0 %v554
    %1065 = vmatmul.mubr.bf16.gmra.mxu0 %v553
    %v1066 = vpop.f32.mrf.mxu0
    %v1067 = vadd.f32 %v906, %v1066
    %v1068 = vpop.f32.mrf.mxu0
    %v1069 = vpop.f32.mrf.mxu0
    %v1070 = vadd.f32 %v909, %v1069
    %v1071 = vpop.f32.mrf.mxu0
    %1072 = vmatprep.mubr.bf16.mxu0 %v558
    %1073 = vmatmul.mubr.bf16.gmra.mxu0 %v557
    %v1074 = vpop.f32.mrf.mxu0
    %v1075 = vadd.f32 %v914, %v1074
    %v1076 = vpop.f32.mrf.mxu0
    %v1077 = vpop.f32.mrf.mxu0
    %v1078 = vadd.f32 %v917, %v1077
    %v1079 = vpop.f32.mrf.mxu0
    %1080 = vmatprep.mubr.bf16.mxu0 %v562
    %1081 = vmatmul.mubr.bf16.gmra.mxu0 %v561
    %v1082 = vpop.f32.mrf.mxu0
    %v1083 = vadd.f32 %v922, %v1082
    %v1084 = vpop.f32.mrf.mxu0
    %v1085 = vpop.f32.mrf.mxu0
    %v1086 = vadd.f32 %v925, %v1085
    %v1087 = vpop.f32.mrf.mxu0
    %1088 = vmatprep.mubr.bf16.mxu0 %v566
    %1089 = vmatmul.mubr.bf16.gmra.mxu0 %v565
    %v1090 = vpop.f32.mrf.mxu0
    %v1091 = vadd.f32 %v930, %v1090
    %v1092 = vpop.f32.mrf.mxu0
    %v1093 = vpop.f32.mrf.mxu0
    %v1094 = vadd.f32 %v933, %v1093
    %v1095 = vpop.f32.mrf.mxu0
    %1096 = vmatprep.mubr.bf16.mxu0 %v570
    %1097 = vmatmul.mubr.bf16.gmra.mxu0 %v569
    %v1098 = vpop.f32.mrf.mxu0
    %v1099 = vadd.f32 %v938, %v1098
    %v1100 = vpop.f32.mrf.mxu0
    %v1101 = vpop.f32.mrf.mxu0
    %v1102 = vadd.f32 %v941, %v1101
    %v1103 = vpop.f32.mrf.mxu0
    %1104 = vmatprep.mubr.bf16.mxu0 %v574
    %1105 = vmatmul.mubr.bf16.gmra.mxu0 %v573
    %v1106 = vpop.f32.mrf.mxu0
    %v1107 = vadd.f32 %v946, %v1106
    %v1108 = vpop.f32.mrf.mxu0
    %v1109 = vpop.f32.mrf.mxu0
    %v1110 = vadd.f32 %v949, %v1109
    %v1111 = vpop.f32.mrf.mxu0
    %1112 = vmatprep.mubr.bf16.mxu0 %v578
    %1113 = vmatmul.mubr.bf16.gmra.mxu0 %v577
    %v1114 = vpop.f32.mrf.mxu0
    %v1115 = vadd.f32 %v954, %v1114
    %v1116 = vpop.f32.mrf.mxu0
    %v1117 = vpop.f32.mrf.mxu0
    %v1118 = vadd.f32 %v957, %v1117
    %v1119 = vpop.f32.mrf.mxu0
    %1120 = vmatprep.mubr.bf16.mxu0 %v582
    %1121 = vmatmul.mubr.bf16.gmra.mxu0 %v581
    %v1122 = vpop.f32.mrf.mxu0
    %v1123 = vadd.f32 %v962, %v1122
    %v1124 = vpop.f32.mrf.mxu0
    %v1125 = vpop.f32.mrf.mxu0
    %v1126 = vadd.f32 %v965, %v1125
    %v1127 = vpop.f32.mrf.mxu0
    %1128 = vmatprep.mubr.bf16.mxu0 %v586
    %1129 = vmatmul.mubr.bf16.gmra.mxu0 %v585
    %v1130 = vpop.f32.mrf.mxu0
    %v1131 = vadd.f32 %v970, %v1130
    %v1132 = vpop.f32.mrf.mxu0
    %v1133 = vpop.f32.mrf.mxu0
    %v1134 = vadd.f32 %v973, %v1133
    %v1135 = vpop.f32.mrf.mxu0
    %1136 = vmatprep.mubr.bf16.mxu0 %v590
    %1137 = vmatmul.mubr.bf16.gmra.mxu0 %v589
    %v1138 = vpop.f32.mrf.mxu0
    %v1139 = vadd.f32 %v978, %v1138
    %v1140 = vpop.f32.mrf.mxu0
    %v1141 = vpop.f32.mrf.mxu0
    %v1142 = vadd.f32 %v981, %v1141
    %v1143 = vpop.f32.mrf.mxu0
    %1144 = vmatprep.mubr.bf16.mxu0 %v594
    %1145 = vmatmul.mubr.bf16.gmra.mxu0 %v593
    %v1146 = vpop.f32.mrf.mxu0
    %v1147 = vadd.f32 %v986, %v1146
    %v1148 = vpop.f32.mrf.mxu0
    %v1149 = vpop.f32.mrf.mxu0
    %v1150 = vadd.f32 %v989, %v1149
    %v1151 = vpop.f32.mrf.mxu0
    %1152 = vmatprep.mubr.bf16.mxu0 %v598
    %1153 = vmatmul.mubr.bf16.gmra.mxu0 %v597
    %v1154 = vpop.f32.mrf.mxu0
    %v1155 = vadd.f32 %v994, %v1154
    %v1156 = vpop.f32.mrf.mxu0
    %v1157 = vpop.f32.mrf.mxu0
    %v1158 = vadd.f32 %v997, %v1157
    %v1159 = vpop.f32.mrf.mxu0
    %1160 = vmatprep.mubr.bf16.mxu0 %v602
    %1161 = vmatmul.mubr.bf16.gmra.mxu0 %v601
    %v1162 = vpop.f32.mrf.mxu0
    %v1163 = vadd.f32 %v1002, %v1162
    %v1164 = vpop.f32.mrf.mxu0
    %v1165 = vpop.f32.mrf.mxu0
    %v1166 = vadd.f32 %v1005, %v1165
    %v1167 = vpop.f32.mrf.mxu0
    %1168 = vmatprep.mubr.bf16.mxu0 %v606
    %1169 = vmatmul.mubr.bf16.gmra.mxu0 %v605
    %v1170 = vpop.f32.mrf.mxu0
    %v1171 = vadd.f32 %v1010, %v1170
    %v1172 = vpop.f32.mrf.mxu0
    %v1173 = vpop.f32.mrf.mxu0
    %v1174 = vadd.f32 %v1013, %v1173
    %v1175 = vpop.f32.mrf.mxu0
    %1176 = vmatprep.mubr.bf16.mxu0 %v610
    %1177 = vmatmul.mubr.bf16.gmra.mxu0 %v609
    %v1178 = vpop.f32.mrf.mxu0
    %v1179 = vadd.f32 %v1018, %v1178
    %v1180 = vpop.f32.mrf.mxu0
    %v1181 = vpop.f32.mrf.mxu0
    %v1182 = vadd.f32 %v1021, %v1181
    %v1183 = vpop.f32.mrf.mxu0
    %1184 = vmatprep.mubr.bf16.mxu0 %v614
    %1185 = vmatmul.mubr.bf16.gmra.mxu0 %v613
    %v1186 = vpop.f32.mrf.mxu0
    %v1187 = vadd.f32 %v1026, %v1186
    %v1188 = vpop.f32.mrf.mxu0
    %v1189 = vpop.f32.mrf.mxu0
    %v1190 = vadd.f32 %v1029, %v1189
    %v1191 = vpop.f32.mrf.mxu0
    %1192 = vdwg.mxu0
    %v1193 = vmul.f32 %v1067, 0.01
    %v1194 = vmul.f32 %v1070, 0.01
    %v1195 = vmul.f32 %v1075, 0.01
    %v1196 = vmul.f32 %v1078, 0.01
    %v1197 = vmul.f32 %v1083, 0.01
    %v1198 = vmul.f32 %v1086, 0.01
    %v1199 = vmul.f32 %v1091, 0.01
    %v1200 = vmul.f32 %v1094, 0.01
    %v1201 = vmul.f32 %v1099, 0.01
    %v1202 = vmul.f32 %v1102, 0.01
    %v1203 = vmul.f32 %v1107, 0.01
    %v1204 = vmul.f32 %v1110, 0.01
    %v1205 = vmul.f32 %v1115, 0.01
    %v1206 = vmul.f32 %v1118, 0.01
    %v1207 = vmul.f32 %v1123, 0.01
    %v1208 = vmul.f32 %v1126, 0.01
    %v1209 = vmul.f32 %v1131, 0.01
    %v1210 = vmul.f32 %v1134, 0.01
    %v1211 = vmul.f32 %v1139, 0.01
    %v1212 = vmul.f32 %v1142, 0.01
    %v1213 = vmul.f32 %v1147, 0.01
    %v1214 = vmul.f32 %v1150, 0.01
    %v1215 = vmul.f32 %v1155, 0.01
    %v1216 = vmul.f32 %v1158, 0.01
    %v1217 = vmul.f32 %v1163, 0.01
    %v1218 = vmul.f32 %v1166, 0.01
    %v1219 = vmul.f32 %v1171, 0.01
    %v1220 = vmul.f32 %v1174, 0.01
    %v1221 = vmul.f32 %v1179, 0.01
    %v1222 = vmul.f32 %v1182, 0.01
    %v1223 = vmul.f32 %v1187, 0.01
    %v1224 = vmul.f32 %v1190, 0.01
    %v1225 = vmax.f32 %v1067, %v1193
    %v1226 = vmax.f32 %v1070, %v1194
    %v1227 = vmax.f32 %v1075, %v1195
    %v1228 = vmax.f32 %v1078, %v1196
    %v1229 = vmax.f32 %v1083, %v1197
    %v1230 = vmax.f32 %v1086, %v1198
    %v1231 = vmax.f32 %v1091, %v1199
    %v1232 = vmax.f32 %v1094, %v1200
    %v1233 = vmax.f32 %v1099, %v1201
    %v1234 = vmax.f32 %v1102, %v1202
    %v1235 = vmax.f32 %v1107, %v1203
    %v1236 = vmax.f32 %v1110, %v1204
    %v1237 = vmax.f32 %v1115, %v1205
    %v1238 = vmax.f32 %v1118, %v1206
    %v1239 = vmax.f32 %v1123, %v1207
    %v1240 = vmax.f32 %v1126, %v1208
    %v1241 = vmax.f32 %v1131, %v1209
    %v1242 = vmax.f32 %v1134, %v1210
    %v1243 = vmax.f32 %v1139, %v1211
    %v1244 = vmax.f32 %v1142, %v1212
    %v1245 = vmax.f32 %v1147, %v1213
    %v1246 = vmax.f32 %v1150, %v1214
    %v1247 = vmax.f32 %v1155, %v1215
    %v1248 = vmax.f32 %v1158, %v1216
    %v1249 = vmax.f32 %v1163, %v1217
    %v1250 = vmax.f32 %v1166, %v1218
    %v1251 = vmax.f32 %v1171, %v1219
    %v1252 = vmax.f32 %v1174, %v1220
    %v1253 = vmax.f32 %v1179, %v1221
    %v1254 = vmax.f32 %v1182, %v1222
    %v1255 = vmax.f32 %v1187, %v1223
    %v1256 = vmax.f32 %v1190, %v1224
    %v1257 = vld [vmem:[%s3] sm:$0xff]
    %v1258 = vld [vmem:[%s3 + $0x8] sm:$0xff]
    %v1259 = vld [vmem:[%s3 + $0x10] sm:$0xff]
    %v1260 = vld [vmem:[%s3 + $0x18] sm:$0xff]
    %1261 = vmatprep.subr.mxu0 0.0
    %1262 = vmatpush1.msra.mxu0 %v1240
    %1263 = vmatprep.subr.mxu0 0.0
    %1264 = vmatpush1.msra.mxu0 %v1239
    %1265 = vmatprep.subr.mxu0 0.0
    %1266 = vmatpush1.msra.mxu0 %v1238
    %1267 = vmatprep.subr.mxu0 0.0
    %1268 = vmatpush1.msra.mxu0 %v1237
    %1269 = vmatprep.subr.mxu0 0.0
    %1270 = vmatpush1.msra.mxu0 %v1236
    %1271 = vmatprep.subr.mxu0 0.0
    %1272 = vmatpush1.msra.mxu0 %v1235
    %1273 = vmatprep.subr.mxu0 0.0
    %1274 = vmatpush1.msra.mxu0 %v1234
    %1275 = vmatprep.subr.mxu0 0.0
    %1276 = vmatpush1.msra.mxu0 %v1233
    %1277 = vmatprep.subr.mxu0 0.0
    %1278 = vmatpush1.msra.mxu0 %v1232
    %1279 = vmatprep.subr.mxu0 0.0
    %1280 = vmatpush1.msra.mxu0 %v1231
    %1281 = vmatprep.subr.mxu0 0.0
    %1282 = vmatpush1.msra.mxu0 %v1230
    %1283 = vmatprep.subr.mxu0 0.0
    %1284 = vmatpush1.msra.mxu0 %v1229
    %1285 = vmatprep.subr.mxu0 0.0
    %1286 = vmatpush1.msra.mxu0 %v1228
    %1287 = vmatprep.subr.mxu0 0.0
    %1288 = vmatpush1.msra.mxu0 %v1227
    %1289 = vmatprep.subr.mxu0 0.0
    %1290 = vmatpush1.msra.mxu0 %v1226
    %1291 = vmatprep.subr.mxu0 0.0
    %1292 = vmatpush1.msra.mxu0 %v1225
    %1293 = vmatprep.subr.mxu0 0.0
    %1294 = vmatpush2.msra.mxu0 %v1256
    %1295 = vmatprep.subr.mxu0 0.0
    %1296 = vmatpush2.msra.mxu0 %v1255
    %1297 = vmatprep.subr.mxu0 0.0
    %1298 = vmatpush2.msra.mxu0 %v1254
    %1299 = vmatprep.subr.mxu0 0.0
    %1300 = vmatpush2.msra.mxu0 %v1253
    %1301 = vmatprep.subr.mxu0 0.0
    %1302 = vmatpush2.msra.mxu0 %v1252
    %1303 = vmatprep.subr.mxu0 0.0
    %1304 = vmatpush2.msra.mxu0 %v1251
    %1305 = vmatprep.subr.mxu0 0.0
    %1306 = vmatpush2.msra.mxu0 %v1250
    %1307 = vmatprep.subr.mxu0 0.0
    %1308 = vmatpush2.msra.mxu0 %v1249
    %1309 = vmatprep.subr.mxu0 0.0
    %1310 = vmatpush2.msra.mxu0 %v1248
    %1311 = vmatprep.subr.mxu0 0.0
    %1312 = vmatpush2.msra.mxu0 %v1247
    %1313 = vmatprep.subr.mxu0 0.0
    %1314 = vmatpush2.msra.mxu0 %v1246
    %1315 = vmatprep.subr.mxu0 0.0
    %1316 = vmatpush2.msra.mxu0 %v1245
    %1317 = vmatprep.subr.mxu0 0.0
    %1318 = vmatpush2.msra.mxu0 %v1244
    %1319 = vmatprep.subr.mxu0 0.0
    %1320 = vmatpush2.msra.mxu0 %v1243
    %1321 = vmatprep.subr.mxu0 0.0
    %1322 = vmatpush2.msra.mxu0 %v1242
    %1323 = vmatprep.subr.mxu0 0.0
    %1324 = vmatpush2.msra.mxu0 %v1241
    %1325 = vmatprep.mubr.f32.mxu0 %v1258
    %1326 = vmatmul.mubr.f32.gmra.mxu0 %v1257
    %v1327 = vpop.f32.mrf.mxu0
    %v1328 = vadd.f32 0.0, %v1327
    %v1329 = vpop.f32.mrf.mxu0
    %1330 = vmatprep.mubr.f32.mxu0 %v1260
    %1331 = vmatmul.mubr.f32.gmra.mxu0 %v1259
    %v1332 = vpop.f32.mrf.mxu0
    %v1333 = vadd.f32 0.0, %v1332
    %v1334 = vpop.f32.mrf.mxu0
    %1335 = vdwg.mxu0
    %v1336 = vld [vmem:[%s4] sm:$0xff]
    %v1337 = vld [vmem:[%s4 + $0x8] sm:$0xff]
    %v1338 = vld [vmem:[%s4 + $0x10] sm:$0xff]
    %v1339 = vld [vmem:[%s4 + $0x18] sm:$0xff]
    %v1340 = vld [vmem:[%s4 + $0x20] sm:$0xff]
    %v1341 = vld [vmem:[%s4 + $0x28] sm:$0xff]
    %v1342 = vld [vmem:[%s4 + $0x30] sm:$0xff]
    %v1343 = vld [vmem:[%s4 + $0x38] sm:$0xff]
    %v1344 = vld [vmem:[%s5] sm:$0xff]
    %v1345 = vld [vmem:[%s5 + $0x8] sm:$0xff]
    %v1346 = vld [vmem:[%s5 + $0x10] sm:$0xff]
    %v1347 = vld [vmem:[%s5 + $0x18] sm:$0xff]
    %v1348 = vld [vmem:[%s5 + $0x20] sm:$0xff]
    %v1349 = vld [vmem:[%s5 + $0x28] sm:$0xff]
    %v1350 = vld [vmem:[%s5 + $0x30] sm:$0xff]
    %v1351 = vld [vmem:[%s5 + $0x38] sm:$0xff]
    %1353 = vset.pattern.permute.xlu0 0
    %1354 = vperm.xlu0 %1353, %v1344
    %v1355 = vpop.permute.xlu0 %1354
    %1358 = vset.pattern.permute.xlu0 0
    %1359 = vperm.xlu0 %1358, %v1345
    %v1360 = vpop.permute.xlu0 %1359
    %1363 = vset.pattern.permute.xlu0 0
    %1364 = vperm.xlu0 %1363, %v1346
    %v1365 = vpop.permute.xlu0 %1364
    %1368 = vset.pattern.permute.xlu0 0
    %1369 = vperm.xlu0 %1368, %v1347
    %v1370 = vpop.permute.xlu0 %1369
    %1373 = vset.pattern.permute.xlu0 0
    %1374 = vperm.xlu0 %1373, %v1348
    %v1375 = vpop.permute.xlu0 %1374
    %1378 = vset.pattern.permute.xlu0 0
    %1379 = vperm.xlu0 %1378, %v1349
    %v1380 = vpop.permute.xlu0 %1379
    %1383 = vset.pattern.permute.xlu0 0
    %1384 = vperm.xlu0 %1383, %v1350
    %v1385 = vpop.permute.xlu0 %1384
    %1388 = vset.pattern.permute.xlu0 0
    %1389 = vperm.xlu0 %1388, %v1351
    %v1390 = vpop.permute.xlu0 %1389
    %vm1392 = vcmask 130048
    %v1394 = vsel %vm1392, %v1336, 0
    %v1397 = vsel %vm1392, %v1337, 0
    %v1400 = vsel %vm1392, %v1338, 0
    %v1403 = vsel %vm1392, %v1339, 0
    %v1406 = vsel %vm1392, %v1340, 0
    %v1409 = vsel %vm1392, %v1341, 0
    %v1412 = vsel %vm1392, %v1342, 0
    %v1415 = vsel %vm1392, %v1343, 0
    %1417 = vmatprep.subr.mxu0 0.0
    %1418 = vmatpush1.msra.mxu0 0.0
    %1419 = vmatprep.subr.mxu0 0.0
    %1420 = vmatpush1.msra.mxu0 0.0
    %1421 = vmatprep.subr.mxu0 0.0
    %1422 = vmatpush1.msra.mxu0 0.0
    %1423 = vmatprep.subr.mxu0 0.0
    %1424 = vmatpush1.msra.mxu0 0.0
    %1425 = vmatprep.subr.mxu0 0.0
    %1426 = vmatpush1.msra.mxu0 0.0
    %1427 = vmatprep.subr.mxu0 0.0
    %1428 = vmatpush1.msra.mxu0 0.0
    %1429 = vmatprep.subr.mxu0 0.0
    %1430 = vmatpush1.msra.mxu0 0.0
    %1431 = vmatprep.subr.mxu0 0.0
    %1432 = vmatpush1.msra.mxu0 0.0
    %1433 = vmatprep.subr.mxu0 0.0
    %1434 = vmatpush1.msra.mxu0 0.0
    %1435 = vmatprep.subr.mxu0 0.0
    %1436 = vmatpush1.msra.mxu0 0.0
    %1437 = vmatprep.subr.mxu0 0.0
    %1438 = vmatpush1.msra.mxu0 0.0
    %1439 = vmatprep.subr.mxu0 0.0
    %1440 = vmatpush1.msra.mxu0 0.0
    %1441 = vmatprep.subr.mxu0 0.0
    %1442 = vmatpush1.msra.mxu0 0.0
    %1443 = vmatprep.subr.mxu0 0.0
    %1444 = vmatpush1.msra.mxu0 0.0
    %1445 = vmatprep.subr.mxu0 0.0
    %1446 = vmatpush1.msra.mxu0 %v1333
    %1447 = vmatprep.subr.mxu0 0.0
    %1448 = vmatpush1.msra.mxu0 %v1328
    %1449 = vmatprep.subr.mxu0 0.0
    %1450 = vmatpush2.msra.mxu0 0.0
    %1451 = vmatprep.subr.mxu0 0.0
    %1452 = vmatpush2.msra.mxu0 0.0
    %1453 = vmatprep.subr.mxu0 0.0
    %1454 = vmatpush2.msra.mxu0 0.0
    %1455 = vmatprep.subr.mxu0 0.0
    %1456 = vmatpush2.msra.mxu0 0.0
    %1457 = vmatprep.subr.mxu0 0.0
    %1458 = vmatpush2.msra.mxu0 0.0
    %1459 = vmatprep.subr.mxu0 0.0
    %1460 = vmatpush2.msra.mxu0 0.0
    %1461 = vmatprep.subr.mxu0 0.0
    %1462 = vmatpush2.msra.mxu0 0.0
    %1463 = vmatprep.subr.mxu0 0.0
    %1464 = vmatpush2.msra.mxu0 0.0
    %1465 = vmatprep.subr.mxu0 0.0
    %1466 = vmatpush2.msra.mxu0 0.0
    %1467 = vmatprep.subr.mxu0 0.0
    %1468 = vmatpush2.msra.mxu0 0.0
    %1469 = vmatprep.subr.mxu0 0.0
    %1470 = vmatpush2.msra.mxu0 0.0
    %1471 = vmatprep.subr.mxu0 0.0
    %1472 = vmatpush2.msra.mxu0 0.0
    %1473 = vmatprep.subr.mxu0 0.0
    %1474 = vmatpush2.msra.mxu0 0.0
    %1475 = vmatprep.subr.mxu0 0.0
    %1476 = vmatpush2.msra.mxu0 0.0
    %1477 = vmatprep.subr.mxu0 0.0
    %1478 = vmatpush2.msra.mxu0 0.0
    %1479 = vmatprep.subr.mxu0 0.0
    %1480 = vmatpush2.msra.mxu0 0.0
    %1481 = vmatprep.mubr.f32.mxu0 0.0
    %1482 = vmatmul.mubr.f32.gmra.mxu0 %v1394
    %v1483 = vpop.f32.mrf.mxu0
    %v1484 = vadd.f32 %v1355, %v1483
    %v1485 = vpop.f32.mrf.mxu0
    %1486 = vmatprep.mubr.f32.mxu0 0.0
    %1487 = vmatmul.mubr.f32.gmra.mxu0 %v1397
    %v1488 = vpop.f32.mrf.mxu0
    %v1489 = vadd.f32 %v1360, %v1488
    %v1490 = vpop.f32.mrf.mxu0
    %1491 = vmatprep.mubr.f32.mxu0 0.0
    %1492 = vmatmul.mubr.f32.gmra.mxu0 %v1400
    %v1493 = vpop.f32.mrf.mxu0
    %v1494 = vadd.f32 %v1365, %v1493
    %v1495 = vpop.f32.mrf.mxu0
    %1496 = vmatprep.mubr.f32.mxu0 0.0
    %1497 = vmatmul.mubr.f32.gmra.mxu0 %v1403
    %v1498 = vpop.f32.mrf.mxu0
    %v1499 = vadd.f32 %v1370, %v1498
    %v1500 = vpop.f32.mrf.mxu0
    %1501 = vmatprep.mubr.f32.mxu0 0.0
    %1502 = vmatmul.mubr.f32.gmra.mxu0 %v1406
    %v1503 = vpop.f32.mrf.mxu0
    %v1504 = vadd.f32 %v1375, %v1503
    %v1505 = vpop.f32.mrf.mxu0
    %1506 = vmatprep.mubr.f32.mxu0 0.0
    %1507 = vmatmul.mubr.f32.gmra.mxu0 %v1409
    %v1508 = vpop.f32.mrf.mxu0
    %v1509 = vadd.f32 %v1380, %v1508
    %v1510 = vpop.f32.mrf.mxu0
    %1511 = vmatprep.mubr.f32.mxu0 0.0
    %1512 = vmatmul.mubr.f32.gmra.mxu0 %v1412
    %v1513 = vpop.f32.mrf.mxu0
    %v1514 = vadd.f32 %v1385, %v1513
    %v1515 = vpop.f32.mrf.mxu0
    %1516 = vmatprep.mubr.f32.mxu0 0.0
    %1517 = vmatmul.mubr.f32.gmra.mxu0 %v1415
    %v1518 = vpop.f32.mrf.mxu0
    %v1519 = vadd.f32 %v1390, %v1518
    %v1520 = vpop.f32.mrf.mxu0
    %1521 = vdwg.mxu0
    %v1522 = vmul.f32 %v1484, 0.01
    %v1523 = vmul.f32 %v1489, 0.01
    %v1524 = vmul.f32 %v1494, 0.01
    %v1525 = vmul.f32 %v1499, 0.01
    %v1526 = vmul.f32 %v1504, 0.01
    %v1527 = vmul.f32 %v1509, 0.01
    %v1528 = vmul.f32 %v1514, 0.01
    %v1529 = vmul.f32 %v1519, 0.01
    %v1530 = vmax.f32 %v1484, %v1522
    %v1531 = vmax.f32 %v1489, %v1523
    %v1532 = vmax.f32 %v1494, %v1524
    %v1533 = vmax.f32 %v1499, %v1525
    %v1534 = vmax.f32 %v1504, %v1526
    %v1535 = vmax.f32 %v1509, %v1527
    %v1536 = vmax.f32 %v1514, %v1528
    %v1537 = vmax.f32 %v1519, %v1529
    %v1538 = vld [vmem:[%s6] sm:$0xff]
    %v1539 = vld [vmem:[%s6 + $0x8] sm:$0xff]
    %v1540 = vld [vmem:[%s6 + $0x10] sm:$0xff]
    %v1541 = vld [vmem:[%s6 + $0x18] sm:$0xff]
    %v1542 = vld [vmem:[%s7] sm:$0xff]
    %v1543 = vld [vmem:[%s7 + $0x8] sm:$0xff]
    %v1544 = vld [vmem:[%s7 + $0x10] sm:$0xff]
    %v1545 = vld [vmem:[%s7 + $0x18] sm:$0xff]
    %1547 = vset.pattern.permute.xlu0 0
    %1548 = vperm.xlu0 %1547, %v1542
    %v1549 = vpop.permute.xlu0 %1548
    %1552 = vset.pattern.permute.xlu0 0
    %1553 = vperm.xlu0 %1552, %v1543
    %v1554 = vpop.permute.xlu0 %1553
    %1557 = vset.pattern.permute.xlu0 0
    %1558 = vperm.xlu0 %1557, %v1544
    %v1559 = vpop.permute.xlu0 %1558
    %1562 = vset.pattern.permute.xlu0 0
    %1563 = vperm.xlu0 %1562, %v1545
    %v1564 = vpop.permute.xlu0 %1563
    %vm1566 = vcmask 523264
    %v1568 = vsel %vm1566, %v1538, 0
    %v1571 = vsel %vm1566, %v1539, 0
    %v1574 = vsel %vm1566, %v1540, 0
    %v1577 = vsel %vm1566, %v1541, 0
    %1579 = vmatprep.subr.mxu0 0.0
    %1580 = vmatpush1.msra.mxu0 0.0
    %1581 = vmatprep.subr.mxu0 0.0
    %1582 = vmatpush1.msra.mxu0 0.0
    %1583 = vmatprep.subr.mxu0 0.0
    %1584 = vmatpush1.msra.mxu0 0.0
    %1585 = vmatprep.subr.mxu0 0.0
    %1586 = vmatpush1.msra.mxu0 0.0
    %1587 = vmatprep.subr.mxu0 0.0
    %1588 = vmatpush1.msra.mxu0 0.0
    %1589 = vmatprep.subr.mxu0 0.0
    %1590 = vmatpush1.msra.mxu0 0.0
    %1591 = vmatprep.subr.mxu0 0.0
    %1592 = vmatpush1.msra.mxu0 0.0
    %1593 = vmatprep.subr.mxu0 0.0
    %1594 = vmatpush1.msra.mxu0 0.0
    %1595 = vmatprep.subr.mxu0 0.0
    %1596 = vmatpush1.msra.mxu0 %v1537
    %1597 = vmatprep.subr.mxu0 0.0
    %1598 = vmatpush1.msra.mxu0 %v1536
    %1599 = vmatprep.subr.mxu0 0.0
    %1600 = vmatpush1.msra.mxu0 %v1535
    %1601 = vmatprep.subr.mxu0 0.0
    %1602 = vmatpush1.msra.mxu0 %v1534
    %1603 = vmatprep.subr.mxu0 0.0
    %1604 = vmatpush1.msra.mxu0 %v1533
    %1605 = vmatprep.subr.mxu0 0.0
    %1606 = vmatpush1.msra.mxu0 %v1532
    %1607 = vmatprep.subr.mxu0 0.0
    %1608 = vmatpush1.msra.mxu0 %v1531
    %1609 = vmatprep.subr.mxu0 0.0
    %1610 = vmatpush1.msra.mxu0 %v1530
    %1611 = vmatprep.subr.mxu0 0.0
    %1612 = vmatpush2.msra.mxu0 0.0
    %1613 = vmatprep.subr.mxu0 0.0
    %1614 = vmatpush2.msra.mxu0 0.0
    %1615 = vmatprep.subr.mxu0 0.0
    %1616 = vmatpush2.msra.mxu0 0.0
    %1617 = vmatprep.subr.mxu0 0.0
    %1618 = vmatpush2.msra.mxu0 0.0
    %1619 = vmatprep.subr.mxu0 0.0
    %1620 = vmatpush2.msra.mxu0 0.0
    %1621 = vmatprep.subr.mxu0 0.0
    %1622 = vmatpush2.msra.mxu0 0.0
    %1623 = vmatprep.subr.mxu0 0.0
    %1624 = vmatpush2.msra.mxu0 0.0
    %1625 = vmatprep.subr.mxu0 0.0
    %1626 = vmatpush2.msra.mxu0 0.0
    %1627 = vmatprep.subr.mxu0 0.0
    %1628 = vmatpush2.msra.mxu0 0.0
    %1629 = vmatprep.subr.mxu0 0.0
    %1630 = vmatpush2.msra.mxu0 0.0
    %1631 = vmatprep.subr.mxu0 0.0
    %1632 = vmatpush2.msra.mxu0 0.0
    %1633 = vmatprep.subr.mxu0 0.0
    %1634 = vmatpush2.msra.mxu0 0.0
    %1635 = vmatprep.subr.mxu0 0.0
    %1636 = vmatpush2.msra.mxu0 0.0
    %1637 = vmatprep.subr.mxu0 0.0
    %1638 = vmatpush2.msra.mxu0 0.0
    %1639 = vmatprep.subr.mxu0 0.0
    %1640 = vmatpush2.msra.mxu0 0.0
    %1641 = vmatprep.subr.mxu0 0.0
    %1642 = vmatpush2.msra.mxu0 0.0
    %1643 = vmatprep.mubr.f32.mxu0 0.0
    %1644 = vmatmul.mubr.f32.gmra.mxu0 %v1568
    %v1645 = vpop.f32.mrf.mxu0
    %v1646 = vadd.f32 %v1549, %v1645
    %v1647 = vpop.f32.mrf.mxu0
    %1648 = vmatprep.mubr.f32.mxu0 0.0
    %1649 = vmatmul.mubr.f32.gmra.mxu0 %v1571
    %v1650 = vpop.f32.mrf.mxu0
    %v1651 = vadd.f32 %v1554, %v1650
    %v1652 = vpop.f32.mrf.mxu0
    %1653 = vmatprep.mubr.f32.mxu0 0.0
    %1654 = vmatmul.mubr.f32.gmra.mxu0 %v1574
    %v1655 = vpop.f32.mrf.mxu0
    %v1656 = vadd.f32 %v1559, %v1655
    %v1657 = vpop.f32.mrf.mxu0
    %1658 = vmatprep.mubr.f32.mxu0 0.0
    %1659 = vmatmul.mubr.f32.gmra.mxu0 %v1577
    %v1660 = vpop.f32.mrf.mxu0
    %v1661 = vadd.f32 %v1564, %v1660
    %v1662 = vpop.f32.mrf.mxu0
    %1663 = vdwg.mxu0
    %v1664 = vmul.f32 %v1646, 0.01
    %v1665 = vmul.f32 %v1651, 0.01
    %v1666 = vmul.f32 %v1656, 0.01
    %v1667 = vmul.f32 %v1661, 0.01
    %v1668 = vmax.f32 %v1646, %v1664
    %v1669 = vmax.f32 %v1651, %v1665
    %v1670 = vmax.f32 %v1656, %v1666
    %v1671 = vmax.f32 %v1661, %v1667
    %v1672 = vld [vmem:[%s8] sm:$0xff]
    %v1673 = vld [vmem:[%s8 + $0x8] sm:$0xff]
    %v1674 = vld [vmem:[%s8 + $0x10] sm:$0xff]
    %v1675 = vld [vmem:[%s8 + $0x18] sm:$0xff]
    %1677 = vset.pattern.permute.xlu0 0
    %1678 = vperm.xlu0 %1677, %v1672
    %v1679 = vpop.permute.xlu0 %1678
    %1682 = vset.pattern.permute.xlu0 0
    %1683 = vperm.xlu0 %1682, %v1673
    %v1684 = vpop.permute.xlu0 %1683
    %1687 = vset.pattern.permute.xlu0 0
    %1688 = vperm.xlu0 %1687, %v1674
    %v1689 = vpop.permute.xlu0 %1688
    %1692 = vset.pattern.permute.xlu0 0
    %1693 = vperm.xlu0 %1692, %v1675
    %v1694 = vpop.permute.xlu0 %1693
    %v1696 = vmul.f32 %v1668, %v1679
    %v1697 = vmul.f32 %v1669, %v1684
    %v1698 = vmul.f32 %v1670, %v1689
    %v1699 = vmul.f32 %v1671, %v1694
    %vm1700 = vcmask 64512
    %v1701 = vsel %vm1700, %v1696, 0.0
    %v1702 = vsel %vm1700, %v1697, 0.0
    %v1703 = vadd.f32 %v1701, %v1702
    %v1704 = vsel %vm1700, %v1698, 0.0
    %v1705 = vadd.f32 %v1703, %v1704
    %v1706 = vsel %vm1700, %v1699, 0.0
    %v1707 = vadd.f32 %v1705, %v1706
    %v1708 = vrot.slane %v1707, 4
    %v1709 = vadd.f32 %v1707, %v1708
    %v1710 = vrot.slane %v1709, 2
    %v1711 = vadd.f32 %v1709, %v1710
    %v1712 = vrot.slane %v1711, 1
    %v1713 = vadd.f32 %v1711, %v1712
    %v1714 = vld [vmem:[#allocation2] sm:$0x1]
    %1716 = vset.pattern.permute.xlu0 0
    %1717 = vperm.xlu0 %1716, %v1714
    %v1718 = vpop.permute.xlu0 %1717
    %v1720 = vlaneseq
    %v1721 = vshrl.u32 %v1720, 7
    %v1722 = vsub.s32 0, %v1721
    %v1723 = vrot.slane %v1718, %v1722
    %v1724 = vadd.f32 %v1713, %v1723
    %vm1725 = vcmask 57344
    %1726 = vst.msk [vmem:[#allocation3] sm:$0x1] %vm1725, %v1724
    // Predicated region
    $region42: #{tpu_custom_call.1} parent=1 // pred_check
      _
    $region43: #{tpu_custom_call.1} parent=1 // pred_check_branch
      %1728 = sbr.rel (0) target = $region45
    $region44: #{tpu_custom_call.1} parent=1 // pred_region
      %s1730 = ssub.s32 16, 16
      %1731 = vsyncadd [#allocation4], %s1730
      %s1733 = sshll.u32 [#allocation3], 4
      %s1734 = int_to_ptr.vmem [resolvable:$true] %s1733
      %1736 = dma.vmem_to_hbm [thread:$0]  %s1734, 16, %s10, [#allocation4]
    $region45: #{tpu_custom_call.1} parent=1 // pred_fallthru
      _
    // Predicated region
    $region46: #{tpu_custom_call.1} parent=1 // pred_check
      _
    $region47: #{tpu_custom_call.1} parent=1 // pred_check_branch
      %1738 = sbr.rel (0) target = $region49
    $region48: #{tpu_custom_call.1} parent=1 // pred_region
      %1739 = dma.done [#allocation4], 16
    $region49: #{tpu_custom_call.1} parent=1 // pred_fallthru
      _
    %1740 = vsyncpa [#allocation4], 1

</llo_original>
